<compile_context>
chip_gen: v7x
topology: tpu7x:2x2x1
jax: 0.10.0
libtpu: 0.0.40
codegen_flags: <defaults>
</compile_context>

<pallas_src>
import jax
import jax.numpy as jnp
from jax.experimental import pallas as pl
from jax.experimental.pallas import tpu as pltpu


# ---------------------------------------------------------------------------
# In-kernel helpers
# ---------------------------------------------------------------------------
def _pad_hw1(x):
    """Zero-pad a (H, W, C) value by 1 on each side of H and W (stays on-chip)."""
    H, W, C = x.shape
    zrow = jnp.zeros((1, W, C), x.dtype)
    x = jnp.concatenate([zrow, x, zrow], axis=0)        # (H+2, W, C)
    zcol = jnp.zeros((H + 2, 1, C), x.dtype)
    return jnp.concatenate([zcol, x, zcol], axis=1)     # (H+2, W+2, C)


def _im2col_3x3(xp, cols_ref, H, W, C):
    """Scatter the nine 3x3 tap windows of xp into cols_ref laid out (H, W, 9*C)."""
    for dh in range(3):
        for dw in range(3):
            j = dh * 3 + dw
            cols_ref[:, :, j * C:(j + 1) * C] = xp[dh:dh + H, dw:dw + W, :]
    return cols_ref[...].reshape(H * W, 9 * C)


def _convlayer_kernel(x_ref, w1_ref, s1_ref, t1_ref, w2_ref, s2_ref, t2_ref,
                      o_ref, cols1_ref, cols2_ref):
    """Fused [Conv3x3(pad=1) -> BN(eval) -> ReLU] x 2 for one batch element.

    x_ref  : (1, H, W, Cin)   NHWC input tile
    w1_ref : (9*Cin,  Cmid)   conv1 weight, row index = (3*dh+dw)*Cin + ci
    s1/t1  : (1, Cmid)        conv1 bias + BN1 folded into scale / shift
    w2_ref : (9*Cmid, Cout)   conv2 weight
    s2/t2  : (1, Cout)        conv2 bias + BN2 folded into scale / shift
    o_ref  : (1, H*W, Cout)
    cols*  : VMEM im2col scratch, shape (H, W, 9*C)
    """
    H, W, Cin = x_ref.shape[1], x_ref.shape[2], x_ref.shape[3]
    Cmid = s1_ref.shape[1]

    # ---- stage 1: conv1 + BN1 + ReLU --------------------------------------
    xp1 = _pad_hw1(x_ref[0].astype(jnp.float32))
    cols1 = _im2col_3x3(xp1, cols1_ref, H, W, Cin)              # (H*W, 9*Cin)
    # Single MXU dot with K = 9*Cin (consolidated; no per-tap broadcasts).
    # For bf16 models, cast cols/w to bf16 here (v6e/v7x) keeping f32 accum.
    h1 = jnp.dot(cols1, w1_ref[...], preferred_element_type=jnp.float32)
    h1 = jnp.maximum(h1 * s1_ref[...] + t1_ref[...], 0.0)       # bias+BN+ReLU fused

    # ---- stage 2: conv2 + BN2 + ReLU (h1 never leaves VMEM) ---------------
    xp2 = _pad_hw1(h1.reshape(H, W, Cmid))
    cols2 = _im2col_3x3(xp2, cols2_ref, H, W, Cmid)             # (H*W, 9*Cmid)
    h2 = jnp.dot(cols2, w2_ref[...], preferred_element_type=jnp.float32)
    o_ref[0] = jnp.maximum(h2 * s2_ref[...] + t2_ref[...], 0.0).astype(o_ref.dtype)


# ---------------------------------------------------------------------------
# pallas_call wrapper (NCHW in -> NCHW out, like the PyTorch module)
# ---------------------------------------------------------------------------
def conv_layer_forward(params, x_nchw):
    B, Cin, H, W = x_nchw.shape
    c1, c2 = params["c1"], params["c2"]
    Cmid = c1["scale"].shape[0]
    Cout = c2["scale"].shape[0]

    x_nhwc = jnp.transpose(x_nchw, (0, 2, 3, 1))   # channels -> 128-lane axis

    out_flat = pl.pallas_call(
        _convlayer_kernel,
        out_shape=jax.ShapeDtypeStruct((B, H * W, Cout), x_nchw.dtype),
        grid=(B,),
        in_specs=[
            pl.BlockSpec((1, H, W, Cin), lambda b: (b, 0, 0, 0)),
            pl.BlockSpec((9 * Cin, Cmid), lambda b: (0, 0)),
            pl.BlockSpec((1, Cmid), lambda b: (0, 0)),
            pl.BlockSpec((1, Cmid), lambda b: (0, 0)),
            pl.BlockSpec((9 * Cmid, Cout), lambda b: (0, 0)),
            pl.BlockSpec((1, Cout), lambda b: (0, 0)),
            pl.BlockSpec((1, Cout), lambda b: (0, 0)),
        ],
        out_specs=pl.BlockSpec((1, H * W, Cout), lambda b: (b, 0, 0)),
        scratch_shapes=[
            pltpu.VMEM((H, W, 9 * Cin), jnp.float32),
            pltpu.VMEM((H, W, 9 * Cmid), jnp.float32),
        ],
        compiler_params=pltpu.CompilerParams(
            dimension_semantics=("parallel",)),
    )(x_nhwc,
      c1["w_mat"], c1["scale"].reshape(1, Cmid), c1["shift"].reshape(1, Cmid),
      c2["w_mat"], c2["scale"].reshape(1, Cout), c2["shift"].reshape(1, Cout))

    # (B, H*W, Cout) -> (B, Cout, H, W): metadata reshape + one small transpose.
    return jnp.transpose(out_flat.reshape(B, H, W, Cout), (0, 3, 1, 2))


# ---------------------------------------------------------------------------
# Deterministic parameter initialization (shapes follow the PyTorch module)
# ---------------------------------------------------------------------------
def init_conv_layer_params(key, in_ch, out_ch, eps=1e-5):
    keys = jax.random.split(key, 12)

    def conv_bn(ks, cin, cout):
        kw, kb, kg, kbt, km, kv = ks
        fan_in = float(cin * 9)
        w = jax.random.normal(kw, (3, 3, cin, cout), jnp.float32) / jnp.sqrt(fan_in)
        b = 0.1 * jax.random.normal(kb, (cout,), jnp.float32)
        gamma = 1.0 + 0.1 * jax.random.normal(kg, (cout,), jnp.float32)
        beta = 0.1 * jax.random.normal(kbt, (cout,), jnp.float32)
        mean = 0.1 * jax.random.normal(km, (cout,), jnp.float32)
        var = 1.0 + 0.1 * jnp.abs(jax.random.normal(kv, (cout,), jnp.float32))
        # TODO(synk): training-mode BatchNorm (per-batch statistics) not
        # implemented; eval-mode BN is folded into a single scale/shift.
        scale = gamma / jnp.sqrt(var + eps)
        shift = (b - mean) * scale + beta          # conv bias folded in
        return dict(w=w, b=b, gamma=gamma, beta=beta, mean=mean, var=var,
                    w_mat=w.reshape(9 * cin, cout),  # row = (3*dh+dw)*cin + ci
                    scale=scale, shift=shift)

    return dict(c1=conv_bn(keys[0:6], in_ch, out_ch),
                c2=conv_bn(keys[6:12], out_ch, out_ch))


# ---------------------------------------------------------------------------
# Pure-JAX reference (correctness check only)
# ---------------------------------------------------------------------------
def conv_layer_ref(params, x_nchw, eps=1e-5):
    def block(p, h):
        B, H, W, _ = h.shape
        hp = jnp.pad(h, ((0, 0), (1, 1), (1, 1), (0, 0)))
        acc = jnp.zeros(h.shape[:3] + (p["b"].shape[0],), jnp.float32)
        for dh in range(3):
            for dw in range(3):
                acc = acc + jnp.einsum(
                    "bhwc,co->bhwo", hp[:, dh:dh + H, dw:dw + W, :],
                    p["w"][dh, dw], precision=jax.lax.Precision.HIGHEST)
        acc = acc + p["b"]
        acc = (acc - p["mean"]) / jnp.sqrt(p["var"] + eps) * p["gamma"] + p["beta"]
        return jnp.maximum(acc, 0.0)

    h = jnp.transpose(x_nchw, (0, 2, 3, 1)).astype(jnp.float32)
    h = block(params["c1"], h)
    h = block(params["c2"], h)
    return jnp.transpose(h, (0, 3, 1, 2))


# ---------------------------------------------------------------------------
if __name__ == "__main__":
    B, in_ch, H, W = 2, 4, 16, 16
    out_ch = 128   # multiple of 128 -> lane-dense stores (perf feedback)

    key = jax.random.PRNGKey(0)
    kx, kp = jax.random.split(key)
    x = jax.random.normal(kx, (B, in_ch, H, W), jnp.float32)   # NCHW, like PyTorch
    params = init_conv_layer_params(kp, in_ch, out_ch)

    out = jax.block_until_ready(conv_layer_forward(params, x))
    ref = jax.block_until_ready(conv_layer_ref(params, x))

    assert out.shape == (B, out_ch, H, W), out.shape
    # Tolerance covers possible bf16-pass MXU rounding of the f32 dots.
    if not jnp.allclose(out, ref, atol=2e-2, rtol=2e-2):
        max_err = float(jnp.max(jnp.abs(out - ref)))
        raise AssertionError(f"Pallas/ref mismatch, max abs err = {max_err}")

    print("KERNEL_OK")
</pallas_src>

<mosaic_0001>
module attributes {stable_mosaic.version = 11 : i64} {
  func.func @_convlayer_kernel(%arg0: i32, %arg1: memref<1x16x16x4xf32, #tpu.memory_space<vmem>>, %arg2: memref<36x128xf32, #tpu.memory_space<vmem>>, %arg3: memref<1x128xf32, #tpu.memory_space<vmem>>, %arg4: memref<1x128xf32, #tpu.memory_space<vmem>>, %arg5: memref<1152x128xf32, #tpu.memory_space<vmem>>, %arg6: memref<1x128xf32, #tpu.memory_space<vmem>>, %arg7: memref<1x128xf32, #tpu.memory_space<vmem>>, %arg8: memref<1x256x128xf32, #tpu.memory_space<vmem>>, %arg9: memref<16x16x36xf32, #tpu.memory_space<vmem>>, %arg10: memref<16x16x1152xf32, #tpu.memory_space<vmem>>) attributes {dimension_semantics = [#tpu.dimension_semantics<parallel>], iteration_bounds = array<i64: 2>, scalar_prefetch = 0 : i64, scratch_operands = 2 : i64, tpu.core_type = #tpu.core_type<tc>, window_params = [{transform_indices = @transform_0, window_bounds = array<i64: 1, 16, 16, 4>}, {pipeline_mode = #tpu.pipeline_mode<synchronous>, transform_indices = @transform_1, window_bounds = array<i64: 36, 128>}, {pipeline_mode = #tpu.pipeline_mode<synchronous>, transform_indices = @transform_2, window_bounds = array<i64: 1, 128>}, {pipeline_mode = #tpu.pipeline_mode<synchronous>, transform_indices = @transform_3, window_bounds = array<i64: 1, 128>}, {pipeline_mode = #tpu.pipeline_mode<synchronous>, transform_indices = @transform_4, window_bounds = array<i64: 1152, 128>}, {pipeline_mode = #tpu.pipeline_mode<synchronous>, transform_indices = @transform_5, window_bounds = array<i64: 1, 128>}, {pipeline_mode = #tpu.pipeline_mode<synchronous>, transform_indices = @transform_6, window_bounds = array<i64: 1, 128>}, {transform_indices = @transform_7, window_bounds = array<i64: 1, 256, 128>}]} {
    %c0 = arith.constant 0 : index
    %c0_0 = arith.constant 0 : index
    %c0_1 = arith.constant 0 : index
    %c0_2 = arith.constant 0 : index
    %0 = vector.load %arg1[%c0, %c0_0, %c0_1, %c0_2] : memref<1x16x16x4xf32, #tpu.memory_space<vmem>>, vector<1x16x16x4xf32>
    %1 = vector.shape_cast %0 : vector<1x16x16x4xf32> to vector<16x16x4xf32>
    %cst = arith.constant 0.000000e+00 : f32
    %2 = vector.broadcast %cst : f32 to vector<1x16x4xf32>
    %3 = tpu.concatenate %2, %1, %2 in 0 : vector<1x16x4xf32>, vector<16x16x4xf32>, vector<1x16x4xf32> -> vector<18x16x4xf32>
    %cst_3 = arith.constant 0.000000e+00 : f32
    %4 = vector.broadcast %cst_3 : f32 to vector<18x1x4xf32>
    %5 = tpu.concatenate %4, %3, %4 in 1 : vector<18x1x4xf32>, vector<18x16x4xf32>, vector<18x1x4xf32> -> vector<18x18x4xf32>
    %6 = vector.extract_strided_slice %5 {offsets = [0, 0, 0], sizes = [16, 16, 4], strides = [1, 1, 1]} : vector<18x18x4xf32> to vector<16x16x4xf32>
    %c0_4 = arith.constant 0 : index
    %c0_5 = arith.constant 0 : index
    %c0_6 = arith.constant 0 : index
    %7 = vector.load %arg9[%c0_4, %c0_5, %c0_6] : memref<16x16x36xf32, #tpu.memory_space<vmem>>, vector<16x16x4xf32>
    tpu.vector_store %arg9[%c0_4, %c0_5, %c0_6], %6 {strides = array<i32>} : memref<16x16x36xf32, #tpu.memory_space<vmem>>, vector<16x16x4xf32>,
    %8 = vector.extract_strided_slice %5 {offsets = [0, 1, 0], sizes = [16, 16, 4], strides = [1, 1, 1]} : vector<18x18x4xf32> to vector<16x16x4xf32>
    %c0_7 = arith.constant 0 : index
    %c0_8 = arith.constant 0 : index
    %c4 = arith.constant 4 : index
    %9 = vector.load %arg9[%c0_7, %c0_8, %c4] : memref<16x16x36xf32, #tpu.memory_space<vmem>>, vector<16x16x4xf32>
    tpu.vector_store %arg9[%c0_7, %c0_8, %c4], %8 {strides = array<i32>} : memref<16x16x36xf32, #tpu.memory_space<vmem>>, vector<16x16x4xf32>,
    %10 = vector.extract_strided_slice %5 {offsets = [0, 2, 0], sizes = [16, 16, 4], strides = [1, 1, 1]} : vector<18x18x4xf32> to vector<16x16x4xf32>
    %c0_9 = arith.constant 0 : index
    %c0_10 = arith.constant 0 : index
    %c8 = arith.constant 8 : index
    %11 = vector.load %arg9[%c0_9, %c0_10, %c8] : memref<16x16x36xf32, #tpu.memory_space<vmem>>, vector<16x16x4xf32>
    tpu.vector_store %arg9[%c0_9, %c0_10, %c8], %10 {strides = array<i32>} : memref<16x16x36xf32, #tpu.memory_space<vmem>>, vector<16x16x4xf32>,
    %12 = vector.extract_strided_slice %5 {offsets = [1, 0, 0], sizes = [16, 16, 4], strides = [1, 1, 1]} : vector<18x18x4xf32> to vector<16x16x4xf32>
    %c0_11 = arith.constant 0 : index
    %c0_12 = arith.constant 0 : index
    %c12 = arith.constant 12 : index
    %13 = vector.load %arg9[%c0_11, %c0_12, %c12] : memref<16x16x36xf32, #tpu.memory_space<vmem>>, vector<16x16x4xf32>
    tpu.vector_store %arg9[%c0_11, %c0_12, %c12], %12 {strides = array<i32>} : memref<16x16x36xf32, #tpu.memory_space<vmem>>, vector<16x16x4xf32>,
    %14 = vector.extract_strided_slice %5 {offsets = [1, 1, 0], sizes = [16, 16, 4], strides = [1, 1, 1]} : vector<18x18x4xf32> to vector<16x16x4xf32>
    %c0_13 = arith.constant 0 : index
    %c0_14 = arith.constant 0 : index
    %c16 = arith.constant 16 : index
    %15 = vector.load %arg9[%c0_13, %c0_14, %c16] : memref<16x16x36xf32, #tpu.memory_space<vmem>>, vector<16x16x4xf32>
    tpu.vector_store %arg9[%c0_13, %c0_14, %c16], %14 {strides = array<i32>} : memref<16x16x36xf32, #tpu.memory_space<vmem>>, vector<16x16x4xf32>,
    %16 = vector.extract_strided_slice %5 {offsets = [1, 2, 0], sizes = [16, 16, 4], strides = [1, 1, 1]} : vector<18x18x4xf32> to vector<16x16x4xf32>
    %c0_15 = arith.constant 0 : index
    %c0_16 = arith.constant 0 : index
    %c20 = arith.constant 20 : index
    %17 = vector.load %arg9[%c0_15, %c0_16, %c20] : memref<16x16x36xf32, #tpu.memory_space<vmem>>, vector<16x16x4xf32>
    tpu.vector_store %arg9[%c0_15, %c0_16, %c20], %16 {strides = array<i32>} : memref<16x16x36xf32, #tpu.memory_space<vmem>>, vector<16x16x4xf32>,
    %18 = vector.extract_strided_slice %5 {offsets = [2, 0, 0], sizes = [16, 16, 4], strides = [1, 1, 1]} : vector<18x18x4xf32> to vector<16x16x4xf32>
    %c0_17 = arith.constant 0 : index
    %c0_18 = arith.constant 0 : index
    %c24 = arith.constant 24 : index
    %19 = vector.load %arg9[%c0_17, %c0_18, %c24] : memref<16x16x36xf32, #tpu.memory_space<vmem>>, vector<16x16x4xf32>
    tpu.vector_store %arg9[%c0_17, %c0_18, %c24], %18 {strides = array<i32>} : memref<16x16x36xf32, #tpu.memory_space<vmem>>, vector<16x16x4xf32>,
    %20 = vector.extract_strided_slice %5 {offsets = [2, 1, 0], sizes = [16, 16, 4], strides = [1, 1, 1]} : vector<18x18x4xf32> to vector<16x16x4xf32>
    %c0_19 = arith.constant 0 : index
    %c0_20 = arith.constant 0 : index
    %c28 = arith.constant 28 : index
    %21 = vector.load %arg9[%c0_19, %c0_20, %c28] : memref<16x16x36xf32, #tpu.memory_space<vmem>>, vector<16x16x4xf32>
    tpu.vector_store %arg9[%c0_19, %c0_20, %c28], %20 {strides = array<i32>} : memref<16x16x36xf32, #tpu.memory_space<vmem>>, vector<16x16x4xf32>,
    %22 = vector.extract_strided_slice %5 {offsets = [2, 2, 0], sizes = [16, 16, 4], strides = [1, 1, 1]} : vector<18x18x4xf32> to vector<16x16x4xf32>
    %c0_21 = arith.constant 0 : index
    %c0_22 = arith.constant 0 : index
    %c32 = arith.constant 32 : index
    %23 = vector.load %arg9[%c0_21, %c0_22, %c32] : memref<16x16x36xf32, #tpu.memory_space<vmem>>, vector<16x16x4xf32>
    tpu.vector_store %arg9[%c0_21, %c0_22, %c32], %22 {strides = array<i32>} : memref<16x16x36xf32, #tpu.memory_space<vmem>>, vector<16x16x4xf32>,
    %c0_23 = arith.constant 0 : index
    %c0_24 = arith.constant 0 : index
    %c0_25 = arith.constant 0 : index
    %24 = vector.load %arg9[%c0_23, %c0_24, %c0_25] : memref<16x16x36xf32, #tpu.memory_space<vmem>>, vector<16x16x36xf32>
    %25 = vector.shape_cast %24 : vector<16x16x36xf32> to vector<256x36xf32>
    %c0_26 = arith.constant 0 : index
    %c0_27 = arith.constant 0 : index
    %26 = vector.load %arg2[%c0_26, %c0_27] : memref<36x128xf32, #tpu.memory_space<vmem>>, vector<36x128xf32>
    %cst_28 = arith.constant dense<0.000000e+00> : vector<256x128xf32>
    %27 = tpu.matmul %25, %26, %cst_28 {dimension_numbers = #tpu.dot_dimension_numbers<[1], [0], [0], [1], [0, 0, 1, 1], [], []>} : vector<256x36xf32>, vector<36x128xf32>, vector<256x128xf32> -> vector<256x128xf32>
    %c0_29 = arith.constant 0 : index
    %c0_30 = arith.constant 0 : index
    %28 = vector.load %arg3[%c0_29, %c0_30] : memref<1x128xf32, #tpu.memory_space<vmem>>, vector<1x128xf32>
    %29 = vector.broadcast %28 : vector<1x128xf32> to vector<256x128xf32>
    %30 = arith.mulf %27, %29 : vector<256x128xf32>
    %c0_31 = arith.constant 0 : index
    %c0_32 = arith.constant 0 : index
    %31 = vector.load %arg4[%c0_31, %c0_32] : memref<1x128xf32, #tpu.memory_space<vmem>>, vector<1x128xf32>
    %32 = vector.broadcast %31 : vector<1x128xf32> to vector<256x128xf32>
    %33 = arith.addf %30, %32 : vector<256x128xf32>
    %cst_33 = arith.constant 0.000000e+00 : f32
    %34 = vector.broadcast %cst_33 : f32 to vector<256x128xf32>
    %35 = arith.maximumf %33, %34 : vector<256x128xf32>
    %36 = vector.shape_cast %35 : vector<256x128xf32> to vector<16x16x128xf32>
    %cst_34 = arith.constant 0.000000e+00 : f32
    %37 = vector.broadcast %cst_34 : f32 to vector<1x16x128xf32>
    %38 = tpu.concatenate %37, %36, %37 in 0 : vector<1x16x128xf32>, vector<16x16x128xf32>, vector<1x16x128xf32> -> vector<18x16x128xf32>
    %cst_35 = arith.constant 0.000000e+00 : f32
    %39 = vector.broadcast %cst_35 : f32 to vector<18x1x128xf32>
    %40 = tpu.concatenate %39, %38, %39 in 1 : vector<18x1x128xf32>, vector<18x16x128xf32>, vector<18x1x128xf32> -> vector<18x18x128xf32>
    %41 = vector.extract_strided_slice %40 {offsets = [0, 0, 0], sizes = [16, 16, 128], strides = [1, 1, 1]} : vector<18x18x128xf32> to vector<16x16x128xf32>
    %c0_36 = arith.constant 0 : index
    %c0_37 = arith.constant 0 : index
    %c0_38 = arith.constant 0 : index
    %42 = vector.load %arg10[%c0_36, %c0_37, %c0_38] : memref<16x16x1152xf32, #tpu.memory_space<vmem>>, vector<16x16x128xf32>
    tpu.vector_store %arg10[%c0_36, %c0_37, %c0_38], %41 {strides = array<i32>} : memref<16x16x1152xf32, #tpu.memory_space<vmem>>, vector<16x16x128xf32>,
    %43 = vector.extract_strided_slice %40 {offsets = [0, 1, 0], sizes = [16, 16, 128], strides = [1, 1, 1]} : vector<18x18x128xf32> to vector<16x16x128xf32>
    %c0_39 = arith.constant 0 : index
    %c0_40 = arith.constant 0 : index
    %c128 = arith.constant 128 : index
    %44 = vector.load %arg10[%c0_39, %c0_40, %c128] : memref<16x16x1152xf32, #tpu.memory_space<vmem>>, vector<16x16x128xf32>
    tpu.vector_store %arg10[%c0_39, %c0_40, %c128], %43 {strides = array<i32>} : memref<16x16x1152xf32, #tpu.memory_space<vmem>>, vector<16x16x128xf32>,
    %45 = vector.extract_strided_slice %40 {offsets = [0, 2, 0], sizes = [16, 16, 128], strides = [1, 1, 1]} : vector<18x18x128xf32> to vector<16x16x128xf32>
    %c0_41 = arith.constant 0 : index
    %c0_42 = arith.constant 0 : index
    %c256 = arith.constant 256 : index
    %46 = vector.load %arg10[%c0_41, %c0_42, %c256] : memref<16x16x1152xf32, #tpu.memory_space<vmem>>, vector<16x16x128xf32>
    tpu.vector_store %arg10[%c0_41, %c0_42, %c256], %45 {strides = array<i32>} : memref<16x16x1152xf32, #tpu.memory_space<vmem>>, vector<16x16x128xf32>,
    %47 = vector.extract_strided_slice %40 {offsets = [1, 0, 0], sizes = [16, 16, 128], strides = [1, 1, 1]} : vector<18x18x128xf32> to vector<16x16x128xf32>
    %c0_43 = arith.constant 0 : index
    %c0_44 = arith.constant 0 : index
    %c384 = arith.constant 384 : index
    %48 = vector.load %arg10[%c0_43, %c0_44, %c384] : memref<16x16x1152xf32, #tpu.memory_space<vmem>>, vector<16x16x128xf32>
    tpu.vector_store %arg10[%c0_43, %c0_44, %c384], %47 {strides = array<i32>} : memref<16x16x1152xf32, #tpu.memory_space<vmem>>, vector<16x16x128xf32>,
    %49 = vector.extract_strided_slice %40 {offsets = [1, 1, 0], sizes = [16, 16, 128], strides = [1, 1, 1]} : vector<18x18x128xf32> to vector<16x16x128xf32>
    %c0_45 = arith.constant 0 : index
    %c0_46 = arith.constant 0 : index
    %c512 = arith.constant 512 : index
    %50 = vector.load %arg10[%c0_45, %c0_46, %c512] : memref<16x16x1152xf32, #tpu.memory_space<vmem>>, vector<16x16x128xf32>
    tpu.vector_store %arg10[%c0_45, %c0_46, %c512], %49 {strides = array<i32>} : memref<16x16x1152xf32, #tpu.memory_space<vmem>>, vector<16x16x128xf32>,
    %51 = vector.extract_strided_slice %40 {offsets = [1, 2, 0], sizes = [16, 16, 128], strides = [1, 1, 1]} : vector<18x18x128xf32> to vector<16x16x128xf32>
    %c0_47 = arith.constant 0 : index
    %c0_48 = arith.constant 0 : index
    %c640 = arith.constant 640 : index
    %52 = vector.load %arg10[%c0_47, %c0_48, %c640] : memref<16x16x1152xf32, #tpu.memory_space<vmem>>, vector<16x16x128xf32>
    tpu.vector_store %arg10[%c0_47, %c0_48, %c640], %51 {strides = array<i32>} : memref<16x16x1152xf32, #tpu.memory_space<vmem>>, vector<16x16x128xf32>,
    %53 = vector.extract_strided_slice %40 {offsets = [2, 0, 0], sizes = [16, 16, 128], strides = [1, 1, 1]} : vector<18x18x128xf32> to vector<16x16x128xf32>
    %c0_49 = arith.constant 0 : index
    %c0_50 = arith.constant 0 : index
    %c768 = arith.constant 768 : index
    %54 = vector.load %arg10[%c0_49, %c0_50, %c768] : memref<16x16x1152xf32, #tpu.memory_space<vmem>>, vector<16x16x128xf32>
    tpu.vector_store %arg10[%c0_49, %c0_50, %c768], %53 {strides = array<i32>} : memref<16x16x1152xf32, #tpu.memory_space<vmem>>, vector<16x16x128xf32>,
    %55 = vector.extract_strided_slice %40 {offsets = [2, 1, 0], sizes = [16, 16, 128], strides = [1, 1, 1]} : vector<18x18x128xf32> to vector<16x16x128xf32>
    %c0_51 = arith.constant 0 : index
    %c0_52 = arith.constant 0 : index
    %c896 = arith.constant 896 : index
    %56 = vector.load %arg10[%c0_51, %c0_52, %c896] : memref<16x16x1152xf32, #tpu.memory_space<vmem>>, vector<16x16x128xf32>
    tpu.vector_store %arg10[%c0_51, %c0_52, %c896], %55 {strides = array<i32>} : memref<16x16x1152xf32, #tpu.memory_space<vmem>>, vector<16x16x128xf32>,
    %57 = vector.extract_strided_slice %40 {offsets = [2, 2, 0], sizes = [16, 16, 128], strides = [1, 1, 1]} : vector<18x18x128xf32> to vector<16x16x128xf32>
    %c0_53 = arith.constant 0 : index
    %c0_54 = arith.constant 0 : index
    %c1024 = arith.constant 1024 : index
    %58 = vector.load %arg10[%c0_53, %c0_54, %c1024] : memref<16x16x1152xf32, #tpu.memory_space<vmem>>, vector<16x16x128xf32>
    tpu.vector_store %arg10[%c0_53, %c0_54, %c1024], %57 {strides = array<i32>} : memref<16x16x1152xf32, #tpu.memory_space<vmem>>, vector<16x16x128xf32>,
    %c0_55 = arith.constant 0 : index
    %c0_56 = arith.constant 0 : index
    %c0_57 = arith.constant 0 : index
    %59 = vector.load %arg10[%c0_55, %c0_56, %c0_57] : memref<16x16x1152xf32, #tpu.memory_space<vmem>>, vector<16x16x1152xf32>
    %60 = vector.shape_cast %59 : vector<16x16x1152xf32> to vector<256x1152xf32>
    %c0_58 = arith.constant 0 : index
    %c0_59 = arith.constant 0 : index
    %61 = vector.load %arg5[%c0_58, %c0_59] : memref<1152x128xf32, #tpu.memory_space<vmem>>, vector<1152x128xf32>
    %cst_60 = arith.constant dense<0.000000e+00> : vector<256x128xf32>
    %62 = tpu.matmul %60, %61, %cst_60 {dimension_numbers = #tpu.dot_dimension_numbers<[1], [0], [0], [1], [0, 0, 1, 1], [], []>} : vector<256x1152xf32>, vector<1152x128xf32>, vector<256x128xf32> -> vector<256x128xf32>
    %c0_61 = arith.constant 0 : index
    %c0_62 = arith.constant 0 : index
    %63 = vector.load %arg6[%c0_61, %c0_62] : memref<1x128xf32, #tpu.memory_space<vmem>>, vector<1x128xf32>
    %64 = vector.broadcast %63 : vector<1x128xf32> to vector<256x128xf32>
    %65 = arith.mulf %62, %64 : vector<256x128xf32>
    %c0_63 = arith.constant 0 : index
    %c0_64 = arith.constant 0 : index
    %66 = vector.load %arg7[%c0_63, %c0_64] : memref<1x128xf32, #tpu.memory_space<vmem>>, vector<1x128xf32>
    %67 = vector.broadcast %66 : vector<1x128xf32> to vector<256x128xf32>
    %68 = arith.addf %65, %67 : vector<256x128xf32>
    %cst_65 = arith.constant 0.000000e+00 : f32
    %69 = vector.broadcast %cst_65 : f32 to vector<256x128xf32>
    %70 = arith.maximumf %68, %69 : vector<256x128xf32>
    %c0_66 = arith.constant 0 : index
    %c0_67 = arith.constant 0 : index
    %c0_68 = arith.constant 0 : index
    %71 = vector.load %arg8[%c0_66, %c0_67, %c0_68] : memref<1x256x128xf32, #tpu.memory_space<vmem>>, vector<1x256x128xf32>
    %72 = vector.shape_cast %71 : vector<1x256x128xf32> to vector<256x128xf32>
    %73 = vector.shape_cast %70 : vector<256x128xf32> to vector<1x256x128xf32>
    tpu.vector_store %arg8[%c0_66, %c0_67, %c0_68], %73 {strides = array<i32>} : memref<1x256x128xf32, #tpu.memory_space<vmem>>, vector<1x256x128xf32>,
    return
  }
  func.func @transform_0(%arg0: i32) -> (i32, i32, i32, i32) {
    %c0_i32 = arith.constant 0 : i32
    %c0_i32_0 = arith.constant 0 : i32
    %c0_i32_1 = arith.constant 0 : i32
    %c0_i32_2 = arith.constant 0 : i32
    return %arg0, %c0_i32, %c0_i32_0, %c0_i32_1 : i32, i32, i32, i32
  }
  func.func @transform_1(%arg0: i32) -> (i32, i32) {
    %c0_i32 = arith.constant 0 : i32
    %c0_i32_0 = arith.constant 0 : i32
    %c0_i32_1 = arith.constant 0 : i32
    return %c0_i32, %c0_i32_0 : i32, i32
  }
  func.func @transform_2(%arg0: i32) -> (i32, i32) {
    %c0_i32 = arith.constant 0 : i32
    %c0_i32_0 = arith.constant 0 : i32
    %c0_i32_1 = arith.constant 0 : i32
    return %c0_i32, %c0_i32_0 : i32, i32
  }
  func.func @transform_3(%arg0: i32) -> (i32, i32) {
    %c0_i32 = arith.constant 0 : i32
    %c0_i32_0 = arith.constant 0 : i32
    %c0_i32_1 = arith.constant 0 : i32
    return %c0_i32, %c0_i32_0 : i32, i32
  }
  func.func @transform_4(%arg0: i32) -> (i32, i32) {
    %c0_i32 = arith.constant 0 : i32
    %c0_i32_0 = arith.constant 0 : i32
    %c0_i32_1 = arith.constant 0 : i32
    return %c0_i32, %c0_i32_0 : i32, i32
  }
  func.func @transform_5(%arg0: i32) -> (i32, i32) {
    %c0_i32 = arith.constant 0 : i32
    %c0_i32_0 = arith.constant 0 : i32
    %c0_i32_1 = arith.constant 0 : i32
    return %c0_i32, %c0_i32_0 : i32, i32
  }
  func.func @transform_6(%arg0: i32) -> (i32, i32) {
    %c0_i32 = arith.constant 0 : i32
    %c0_i32_0 = arith.constant 0 : i32
    %c0_i32_1 = arith.constant 0 : i32
    return %c0_i32, %c0_i32_0 : i32, i32
  }
  func.func @transform_7(%arg0: i32) -> (i32, i32, i32) {
    %c0_i32 = arith.constant 0 : i32
    %c0_i32_0 = arith.constant 0 : i32
    %c0_i32_1 = arith.constant 0 : i32
    return %arg0, %c0_i32, %c0_i32_0 : i32, i32, i32
  }
}

</mosaic_0001>

<llo_original>
// kernel: tpu_custom_call.1
$region0: #{tpu_custom_call.1}
  #allocation0 [shape = 'u32[]', space=smem, size = 0x4, offset = 0x4, fixed_abs, tag = 'smem constant byte address 0x4 - core index']
  #allocation1 [shape = 'u32[144,128]{1,0:T(1,128)}', space=vmem, size = 0x12000, scoped, tag = 'internal scratch']
  #allocation2 [shape = 'f32[16,16,36]{2,1,0:T(8,128)}', space=vmem, size = 0x20000, scoped, tag = 'scratch operand']
  #allocation3 [shape = 'f32[16,16,1152]{2,1,0:T(8,128)}', space=vmem, size = 0x120000, scoped, tag = 'scratch operand']
  %s0 = inlined_call_operand.vmem [shape: f32[2,16,16,4], index: 0, kind: input, shape index: {}]
  %s1 = inlined_call_operand.vmem [shape: f32[36,128], index: 1, kind: input, shape index: {}]
  %s2 = inlined_call_operand.vmem [shape: f32[1,128], index: 2, kind: input, shape index: {}]
  %s3 = inlined_call_operand.vmem [shape: f32[1,128], index: 3, kind: input, shape index: {}]
  %s4 = inlined_call_operand.hbm [shape: f32[1152,128], index: 4, kind: input, shape index: {}]
  %s5 = inlined_call_operand.vmem [shape: f32[1,128], index: 5, kind: input, shape index: {}]
  %s6 = inlined_call_operand.vmem [shape: f32[1,128], index: 6, kind: input, shape index: {}]
  %s7 = inlined_call_operand.hbm [shape: f32[2,256,128], index: 7, kind: output, shape index: {}]
  %s8 = sld [smem:[#allocation0]]
  $region65: #{tpu_custom_call.1} parent=0
    _
  %s10 = ssub.s32 1, %s8
  %s11 = scalar_select 0, %s10, %s8
  $region1: #{tpu_custom_call.1} parent=0
    #allocation4 [shape = 'u8[589824]{0}', space=vmem, size = 0x90000, scoped, tag = 'input window, operand 4, single buffered']
    #allocation5 [shape = 's32[2]{0}', space=sflag, size = 0x8, scoped, tag = 'scoped memory for tpu_custom_call.1']
    #allocation6 [shape = 's32[2]{0}', space=sflag, size = 0x8, scoped, tag = 'scoped memory for tpu_custom_call.1']
    #allocation7 [shape = 'u8[262144]{0}', space=vmem, size = 0x40000, scoped, tag = 'output window, operand 0']
    %12 = vsyncpa [#allocation5], 0
    %13 = vsyncpa [#allocation6], 0
    %s14 = scalar_lea.sflag [#allocation6], 1
    %15 = vsyncpa %s14, 0
    loop: start=0, step=1, limit=4
    $region2: #{tpu_custom_call.1} parent=1 // loop_pre_header
      _
    $region3: #{tpu_custom_call.1} parent=1 // loop_header
      %s17 = sphi 0, %s21
      %p18 = scmp.ge.s32.totalorder %s17, 4
      %s27 = sphi 0, %s29
      %s30 = sphi 0, %s27
      %s31 = sphi 0, %s30
      %s47 = sphi 0, %s31
      %s51 = sphi 0, %s51
      %s53 = sphi 0, %s51
      %s54 = sphi 0, %s53
      %s68 = sphi 0, %s54
      %s72 = sphi 0, %s72
      %s74 = sphi 0, %s72
      %s75 = sphi 0, %s74
      %s89 = sphi 0, %s75
      %s93 = sphi 0, %s93
      %s95 = sphi 0, %s93
      %s96 = sphi 0, %s95
      %s110 = sphi 0, %s96
      %s114 = sphi 0, %s114
      %s116 = sphi 0, %s114
      %s117 = sphi 0, %s116
      %s131 = sphi 0, %s117
      %s135 = sphi 0, %s135
      %s137 = sphi 0, %s135
      %s138 = sphi 0, %s137
      %s152 = sphi 0, %s138
      %s156 = sphi 0, %s156
      %s158 = sphi 0, %s156
      %s159 = sphi 0, %s158
      %s173 = sphi 0, %s159
      %s179 = sphi 0, %s181
      %s182 = sphi 0, %s179
      %s183 = sphi 0, %s182
      %s199 = sphi 0, %s183
    $region4: #{tpu_custom_call.1} parent=1 // loop_header_branch
      %20 = sbr.rel (%p18) target = $region8
    $region5: #{tpu_custom_call.1} parent=1 // loop_body
      %s22 = ssub.s32 %s17, 1
      %s23 = ssub.s32 %s17, 2
      %s24 = sadd.s32 %s17, 1
      %s25 = ssub.s32 %s17, %s24
      %p26 = scmp.eq.s32.totalorder %s25, 0
      %s28 = sadd.s32 %s27, 1
      %s29 = scalar_select %p26, %s27, %s28
      %p32 = pneg %p26
      %p33 = scmp.eq.s32.totalorder %s17, 1
      %p34 = por %p32, %p33
      %p35 = scmp.ne.s32.totalorder %s27, %s30
      %p36 = scmp.eq.s32.totalorder %s17, 0
      %p37 = por %p35, %p36
      %p38 = scmp.ne.s32.totalorder %s27, %s30
      %p39 = scmp.eq.s32.totalorder %s22, 1
      %p40 = por %p38, %p39
      %p41 = scmp.ne.s32.totalorder %s30, %s31
      %p42 = scmp.eq.s32.totalorder %s22, 0
      %p43 = por %p41, %p42
      %p44 = scmp.ne.s32.totalorder %s30, %s31
      %p45 = scmp.eq.s32.totalorder %s23, 1
      %p46 = por %p44, %p45
      %p48 = scmp.ne.s32.totalorder %s31, %s47
      %p49 = scmp.eq.s32.totalorder %s23, 0
      %p50 = por %p48, %p49
      %s52 = sadd.s32 %s51, 1
      %p55 = scmp.eq.s32.totalorder %s17, 1
      %p56 = scmp.ne.s32.totalorder %s51, %s53
      %p57 = scmp.eq.s32.totalorder %s17, 0
      %p58 = por %p56, %p57
      %p59 = scmp.ne.s32.totalorder %s51, %s53
      %p60 = scmp.eq.s32.totalorder %s22, 1
      %p61 = por %p59, %p60
      %p62 = scmp.ne.s32.totalorder %s53, %s54
      %p63 = scmp.eq.s32.totalorder %s22, 0
      %p64 = por %p62, %p63
      %p65 = scmp.ne.s32.totalorder %s53, %s54
      %p66 = scmp.eq.s32.totalorder %s23, 1
      %p67 = por %p65, %p66
      %p69 = scmp.ne.s32.totalorder %s54, %s68
      %p70 = scmp.eq.s32.totalorder %s23, 0
      %p71 = por %p69, %p70
      %s73 = sadd.s32 %s72, 1
      %p76 = scmp.eq.s32.totalorder %s17, 1
      %p77 = scmp.ne.s32.totalorder %s72, %s74
      %p78 = scmp.eq.s32.totalorder %s17, 0
      %p79 = por %p77, %p78
      %p80 = scmp.ne.s32.totalorder %s72, %s74
      %p81 = scmp.eq.s32.totalorder %s22, 1
      %p82 = por %p80, %p81
      %p83 = scmp.ne.s32.totalorder %s74, %s75
      %p84 = scmp.eq.s32.totalorder %s22, 0
      %p85 = por %p83, %p84
      %p86 = scmp.ne.s32.totalorder %s74, %s75
      %p87 = scmp.eq.s32.totalorder %s23, 1
      %p88 = por %p86, %p87
      %p90 = scmp.ne.s32.totalorder %s75, %s89
      %p91 = scmp.eq.s32.totalorder %s23, 0
      %p92 = por %p90, %p91
      %s94 = sadd.s32 %s93, 1
      %p97 = scmp.eq.s32.totalorder %s17, 1
      %p98 = scmp.ne.s32.totalorder %s93, %s95
      %p99 = scmp.eq.s32.totalorder %s17, 0
      %p100 = por %p98, %p99
      %p101 = scmp.ne.s32.totalorder %s93, %s95
      %p102 = scmp.eq.s32.totalorder %s22, 1
      %p103 = por %p101, %p102
      %p104 = scmp.ne.s32.totalorder %s95, %s96
      %p105 = scmp.eq.s32.totalorder %s22, 0
      %p106 = por %p104, %p105
      %p107 = scmp.ne.s32.totalorder %s95, %s96
      %p108 = scmp.eq.s32.totalorder %s23, 1
      %p109 = por %p107, %p108
      %p111 = scmp.ne.s32.totalorder %s96, %s110
      %p112 = scmp.eq.s32.totalorder %s23, 0
      %p113 = por %p111, %p112
      %s115 = sadd.s32 %s114, 1
      %p118 = scmp.eq.s32.totalorder %s17, 1
      %p119 = scmp.ne.s32.totalorder %s114, %s116
      %p120 = scmp.eq.s32.totalorder %s17, 0
      %p121 = por %p119, %p120
      %p122 = scmp.ne.s32.totalorder %s114, %s116
      %p123 = scmp.eq.s32.totalorder %s22, 1
      %p124 = por %p122, %p123
      %p125 = scmp.ne.s32.totalorder %s116, %s117
      %p126 = scmp.eq.s32.totalorder %s22, 0
      %p127 = por %p125, %p126
      %p128 = scmp.ne.s32.totalorder %s116, %s117
      %p129 = scmp.eq.s32.totalorder %s23, 1
      %p130 = por %p128, %p129
      %p132 = scmp.ne.s32.totalorder %s117, %s131
      %p133 = scmp.eq.s32.totalorder %s23, 0
      %p134 = por %p132, %p133
      %s136 = sadd.s32 %s135, 1
      %p139 = scmp.eq.s32.totalorder %s17, 1
      %p140 = scmp.ne.s32.totalorder %s135, %s137
      %p141 = scmp.eq.s32.totalorder %s17, 0
      %p142 = por %p140, %p141
      %p143 = scmp.ne.s32.totalorder %s135, %s137
      %p144 = scmp.eq.s32.totalorder %s22, 1
      %p145 = por %p143, %p144
      %p146 = scmp.ne.s32.totalorder %s137, %s138
      %p147 = scmp.eq.s32.totalorder %s22, 0
      %p148 = por %p146, %p147
      %p149 = scmp.ne.s32.totalorder %s137, %s138
      %p150 = scmp.eq.s32.totalorder %s23, 1
      %p151 = por %p149, %p150
      %p153 = scmp.ne.s32.totalorder %s138, %s152
      %p154 = scmp.eq.s32.totalorder %s23, 0
      %p155 = por %p153, %p154
      %s157 = sadd.s32 %s156, 1
      %p160 = scmp.eq.s32.totalorder %s17, 1
      %p161 = scmp.ne.s32.totalorder %s156, %s158
      %p162 = scmp.eq.s32.totalorder %s17, 0
      %p163 = por %p161, %p162
      %p164 = scmp.ne.s32.totalorder %s156, %s158
      %p165 = scmp.eq.s32.totalorder %s22, 1
      %p166 = por %p164, %p165
      %p167 = scmp.ne.s32.totalorder %s158, %s159
      %p168 = scmp.eq.s32.totalorder %s22, 0
      %p169 = por %p167, %p168
      %p170 = scmp.ne.s32.totalorder %s158, %s159
      %p171 = scmp.eq.s32.totalorder %s23, 1
      %p172 = por %p170, %p171
      %p174 = scmp.ne.s32.totalorder %s159, %s173
      %p175 = scmp.eq.s32.totalorder %s23, 0
      %p176 = por %p174, %p175
      %s177 = ssub.s32 %s17, %s24
      %p178 = scmp.eq.s32.totalorder %s177, 0
      %s180 = sadd.s32 %s179, 1
      %s181 = scalar_select %p178, %s179, %s180
      %p184 = pneg %p178
      %p185 = scmp.eq.s32.totalorder %s17, 1
      %p186 = por %p184, %p185
      %p187 = scmp.ne.s32.totalorder %s179, %s182
      %p188 = scmp.eq.s32.totalorder %s17, 0
      %p189 = por %p187, %p188
      %p190 = scmp.ne.s32.totalorder %s179, %s182
      %p191 = scmp.eq.s32.totalorder %s22, 1
      %p192 = por %p190, %p191
      %p193 = scmp.ne.s32.totalorder %s182, %s183
      %p194 = scmp.eq.s32.totalorder %s22, 0
      %p195 = por %p193, %p194
      %p196 = scmp.ne.s32.totalorder %s182, %s183
      %p197 = scmp.eq.s32.totalorder %s23, 1
      %p198 = por %p196, %p197
      %p200 = scmp.ne.s32.totalorder %s183, %s199
      %p201 = scmp.eq.s32.totalorder %s23, 0
      %p202 = por %p200, %p201
      %p203 = scmp.le.s32.totalorder 1, %s17
      %p204 = scmp.lt.s32.totalorder %s17, 3
      %p205 = pnand %p203, %p204
      %p206 = pneg %p205
      // Predicated region
      $region9: #{tpu_custom_call.1} parent=5 // pred_check
        _
      $region10: #{tpu_custom_call.1} parent=5 // pred_check_branch
        %208 = sbr.rel (%p205) target = $region12
      $region11: #{tpu_custom_call.1} parent=5 // pred_region
        %s209 = ssub.s32 %s17, 1
        // Predicated region
        $region13: #{tpu_custom_call.1} parent=11 // pred_check
          %p210 = pneg %p64
        $region14: #{tpu_custom_call.1} parent=11 // pred_check_branch
          %212 = sbr.rel (%p210) target = $region16
        $region15: #{tpu_custom_call.1} parent=11 // pred_region
          _
        $region16: #{tpu_custom_call.1} parent=11 // pred_fallthru
          _
        // Predicated region
        $region17: #{tpu_custom_call.1} parent=11 // pred_check
          %p213 = pneg %p85
        $region18: #{tpu_custom_call.1} parent=11 // pred_check_branch
          %215 = sbr.rel (%p213) target = $region20
        $region19: #{tpu_custom_call.1} parent=11 // pred_region
          _
        $region20: #{tpu_custom_call.1} parent=11 // pred_fallthru
          _
        // Predicated region
        $region21: #{tpu_custom_call.1} parent=11 // pred_check
          %p216 = pneg %p106
        $region22: #{tpu_custom_call.1} parent=11 // pred_check_branch
          %218 = sbr.rel (%p216) target = $region24
        $region23: #{tpu_custom_call.1} parent=11 // pred_region
          _
        $region24: #{tpu_custom_call.1} parent=11 // pred_fallthru
          _
        // Predicated region
        $region25: #{tpu_custom_call.1} parent=11 // pred_check
          %p219 = pneg %p127
        $region26: #{tpu_custom_call.1} parent=11 // pred_check_branch
          %221 = sbr.rel (%p219) target = $region28
        $region27: #{tpu_custom_call.1} parent=11 // pred_region
          %s223 = ssub.s32 18432, 18432
          %224 = vsyncadd [#allocation5], %s223
          %s225 = sshll.u32 [#allocation4], 4
          %s226 = int_to_ptr.vmem [resolvable:$true] %s225
          %231 = dma.hbm_to_vmem [thread:$0]  %s4, 18432, %s226, [#allocation5], 128, 128, 8
        $region28: #{tpu_custom_call.1} parent=11 // pred_fallthru
          _
        // Predicated region
        $region29: #{tpu_custom_call.1} parent=11 // pred_check
          %p232 = pneg %p148
        $region30: #{tpu_custom_call.1} parent=11 // pred_check_branch
          %234 = sbr.rel (%p232) target = $region32
        $region31: #{tpu_custom_call.1} parent=11 // pred_region
          _
        $region32: #{tpu_custom_call.1} parent=11 // pred_fallthru
          _
        // Predicated region
        $region33: #{tpu_custom_call.1} parent=11 // pred_check
          %p235 = pneg %p169
        $region34: #{tpu_custom_call.1} parent=11 // pred_check_branch
          %237 = sbr.rel (%p235) target = $region36
        $region35: #{tpu_custom_call.1} parent=11 // pred_region
          _
        $region36: #{tpu_custom_call.1} parent=11 // pred_fallthru
          _
      $region12: #{tpu_custom_call.1} parent=5 // pred_fallthru
        _
      %p238 = scmp.lt.s32.totalorder %s17, 2
      // Predicated region
      $region37: #{tpu_custom_call.1} parent=5 // pred_check
        %p239 = pneg %p238
      $region38: #{tpu_custom_call.1} parent=5 // pred_check_branch
        %241 = sbr.rel (%p239) target = $region40
      $region39: #{tpu_custom_call.1} parent=5 // pred_region
        // Predicated region
        $region41: #{tpu_custom_call.1} parent=39 // pred_check
          %p242 = pneg %p37
        $region42: #{tpu_custom_call.1} parent=39 // pred_check_branch
          %244 = sbr.rel (%p242) target = $region44
        $region43: #{tpu_custom_call.1} parent=39 // pred_region
          %p245 = scmp.lt.s32.totalorder %s17, 1
          %s246 = scalar_select %p245, %s17, 1
          %s247 = smul.addr %s246, 32
          %s248 = smul.addr %s247, 8
          %s249 = scalar_lea.vmem %s0, %s248
        $region44: #{tpu_custom_call.1} parent=39 // pred_fallthru
          _
      $region40: #{tpu_custom_call.1} parent=5 // pred_fallthru
        _
      %p250 = scmp.le.s32.totalorder 1, %s17
      %p251 = scmp.lt.s32.totalorder %s17, 3
      %p252 = pnand %p250, %p251
      %p253 = pneg %p252
      // Predicated region
      $region45: #{tpu_custom_call.1} parent=5 // pred_check
        _
      $region46: #{tpu_custom_call.1} parent=5 // pred_check_branch
        %255 = sbr.rel (%p252) target = $region48
      $region47: #{tpu_custom_call.1} parent=5 // pred_region
        %s256 = ssub.s32 %s17, 1
        // Predicated region
        $region49: #{tpu_custom_call.1} parent=47 // pred_check
          %p257 = pneg %p127
        $region50: #{tpu_custom_call.1} parent=47 // pred_check_branch
          %259 = sbr.rel (%p257) target = $region52
        $region51: #{tpu_custom_call.1} parent=47 // pred_region
          %260 = dma.done [#allocation5], 18432
        $region52: #{tpu_custom_call.1} parent=47 // pred_fallthru
          _
        %p261 = scmp.lt.s32.totalorder %s22, 1
        %s262 = scalar_select %p261, %s22, 1
        %s263 = smul.addr %s262, 32
        %s264 = smul.addr %s263, 8
        %s265 = scalar_lea.vmem %s0, %s264
        %p266 = pneg %p43
        %p267 = pneg %p40
        %p268 = pneg %p64
        %p269 = pneg %p61
        %p270 = pneg %p85
        %p271 = pneg %p82
        %p272 = pneg %p106
        %p273 = pneg %p103
        %p274 = pneg %p127
        %p275 = pneg %p124
        %p276 = pneg %p148
        %p277 = pneg %p145
        %p278 = pneg %p169
        %p279 = pneg %p166
        %p280 = pneg %p195
        %p281 = pneg %p192
        %s282 = sand.u32 %s182, 1
        %s283 = scalar_lea.sflag [#allocation6], %s282
        %s284 = sand.u32 %s182, 1
        %s285 = smul.addr %s284, 256
        %s286 = scalar_lea.vmem [#allocation7], %s285
        %p287 = scmp.lt.s32.totalorder %s22, 1
        %s288 = scalar_select %p287, %s22, 1
        %s289 = smul.addr %s288, 32
        %s290 = smul.addr %s289, 8
        %s291 = scalar_lea.vmem %s0, %s290
        %v292 = vld [vmem:[%s291] sm:$0xff]
        %v293 = vld [vmem:[%s291 + $0x8] sm:$0xff]
        %v294 = vld [vmem:[%s291 + $0x10] sm:$0xff]
        %v295 = vld [vmem:[%s291 + $0x18] sm:$0xff]
        %v296 = vld [vmem:[%s291 + $0x20] sm:$0xff]
        %v297 = vld [vmem:[%s291 + $0x28] sm:$0xff]
        %v298 = vld [vmem:[%s291 + $0x30] sm:$0xff]
        %v299 = vld [vmem:[%s291 + $0x38] sm:$0xff]
        %v300 = vld [vmem:[%s291 + $0x40] sm:$0xff]
        %v301 = vld [vmem:[%s291 + $0x48] sm:$0xff]
        %v302 = vld [vmem:[%s291 + $0x50] sm:$0xff]
        %v303 = vld [vmem:[%s291 + $0x58] sm:$0xff]
        %v304 = vld [vmem:[%s291 + $0x60] sm:$0xff]
        %v305 = vld [vmem:[%s291 + $0x68] sm:$0xff]
        %v306 = vld [vmem:[%s291 + $0x70] sm:$0xff]
        %v307 = vld [vmem:[%s291 + $0x78] sm:$0xff]
        %v308 = vld [vmem:[%s291 + $0x80] sm:$0xff]
        %v309 = vld [vmem:[%s291 + $0x88] sm:$0xff]
        %v310 = vld [vmem:[%s291 + $0x90] sm:$0xff]
        %v311 = vld [vmem:[%s291 + $0x98] sm:$0xff]
        %v312 = vld [vmem:[%s291 + $0xa0] sm:$0xff]
        %v313 = vld [vmem:[%s291 + $0xa8] sm:$0xff]
        %v314 = vld [vmem:[%s291 + $0xb0] sm:$0xff]
        %v315 = vld [vmem:[%s291 + $0xb8] sm:$0xff]
        %v316 = vld [vmem:[%s291 + $0xc0] sm:$0xff]
        %v317 = vld [vmem:[%s291 + $0xc8] sm:$0xff]
        %v318 = vld [vmem:[%s291 + $0xd0] sm:$0xff]
        %v319 = vld [vmem:[%s291 + $0xd8] sm:$0xff]
        %v320 = vld [vmem:[%s291 + $0xe0] sm:$0xff]
        %v321 = vld [vmem:[%s291 + $0xe8] sm:$0xff]
        %v322 = vld [vmem:[%s291 + $0xf0] sm:$0xff]
        %v323 = vld [vmem:[%s291 + $0xf8] sm:$0xff]
        %vm357 = vcmask 1040384
        %v358 = vrot.slane 0.0, 7
        %v359 = vsel %vm357, %v358, %v358
        %v360 = vrot.slane %v292, 7
        %v361 = vrot.slane %v293, 7
        %v362 = vsel %vm357, %v360, %v361
        %v363 = vrot.slane %v294, 7
        %v364 = vrot.slane %v295, 7
        %v365 = vsel %vm357, %v363, %v364
        %v366 = vrot.slane %v296, 7
        %v367 = vrot.slane %v297, 7
        %v368 = vsel %vm357, %v366, %v367
        %v369 = vrot.slane %v298, 7
        %v370 = vrot.slane %v299, 7
        %v371 = vsel %vm357, %v369, %v370
        %v372 = vrot.slane %v300, 7
        %v373 = vrot.slane %v301, 7
        %v374 = vsel %vm357, %v372, %v373
        %v375 = vrot.slane %v302, 7
        %v376 = vrot.slane %v303, 7
        %v377 = vsel %vm357, %v375, %v376
        %v378 = vrot.slane %v304, 7
        %v379 = vrot.slane %v305, 7
        %v380 = vsel %vm357, %v378, %v379
        %v381 = vrot.slane %v306, 7
        %v382 = vrot.slane %v307, 7
        %v383 = vsel %vm357, %v381, %v382
        %v384 = vrot.slane %v308, 7
        %v385 = vrot.slane %v309, 7
        %v386 = vsel %vm357, %v384, %v385
        %v387 = vrot.slane %v310, 7
        %v388 = vrot.slane %v311, 7
        %v389 = vsel %vm357, %v387, %v388
        %v390 = vrot.slane %v312, 7
        %v391 = vrot.slane %v313, 7
        %v392 = vsel %vm357, %v390, %v391
        %v393 = vrot.slane %v314, 7
        %v394 = vrot.slane %v315, 7
        %v395 = vsel %vm357, %v393, %v394
        %v396 = vrot.slane %v316, 7
        %v397 = vrot.slane %v317, 7
        %v398 = vsel %vm357, %v396, %v397
        %v399 = vrot.slane %v318, 7
        %v400 = vrot.slane %v319, 7
        %v401 = vsel %vm357, %v399, %v400
        %v402 = vrot.slane %v320, 7
        %v403 = vrot.slane %v321, 7
        %v404 = vsel %vm357, %v402, %v403
        %v405 = vrot.slane %v322, 7
        %v406 = vrot.slane %v323, 7
        %v407 = vsel %vm357, %v405, %v406
        %v457 = vsel %vm357, 0.0, %v358
        %v458 = vsel %vm357, 0.0, %v360
        %v459 = vsel %vm357, 0.0, %v363
        %v460 = vsel %vm357, 0.0, %v366
        %v461 = vsel %vm357, 0.0, %v369
        %v462 = vsel %vm357, 0.0, %v372
        %v463 = vsel %vm357, 0.0, %v375
        %v464 = vsel %vm357, 0.0, %v378
        %v465 = vsel %vm357, 0.0, %v381
        %v466 = vsel %vm357, 0.0, %v384
        %v467 = vsel %vm357, 0.0, %v387
        %v468 = vsel %vm357, 0.0, %v390
        %v469 = vsel %vm357, 0.0, %v393
        %v470 = vsel %vm357, 0.0, %v396
        %v471 = vsel %vm357, 0.0, %v399
        %v472 = vsel %vm357, 0.0, %v402
        %v473 = vsel %vm357, 0.0, %v405
        %v474 = vsel %vm357, %v358, 0.0
        %v475 = vsel %vm357, %v361, 0.0
        %v476 = vsel %vm357, %v364, 0.0
        %v477 = vsel %vm357, %v367, 0.0
        %v478 = vsel %vm357, %v370, 0.0
        %v479 = vsel %vm357, %v373, 0.0
        %v480 = vsel %vm357, %v376, 0.0
        %v481 = vsel %vm357, %v379, 0.0
        %v482 = vsel %vm357, %v382, 0.0
        %v483 = vsel %vm357, %v385, 0.0
        %v484 = vsel %vm357, %v388, 0.0
        %v485 = vsel %vm357, %v391, 0.0
        %v486 = vsel %vm357, %v394, 0.0
        %v487 = vsel %vm357, %v397, 0.0
        %v488 = vsel %vm357, %v400, 0.0
        %v489 = vsel %vm357, %v403, 0.0
        %v490 = vsel %vm357, %v406, 0.0
        %vm491 = vcmask 31744
        %492 = vst.msk [vmem:[#allocation2] sm:$0xff] %vm491, %v457
        %493 = vst.msk [vmem:[#allocation2 + $0x8] sm:$0xff] %vm491, %v359
        %494 = vst.msk [vmem:[#allocation2 + $0x10] sm:$0xff] %vm491, %v458
        %495 = vst.msk [vmem:[#allocation2 + $0x18] sm:$0xff] %vm491, %v362
        %496 = vst.msk [vmem:[#allocation2 + $0x20] sm:$0xff] %vm491, %v459
        %497 = vst.msk [vmem:[#allocation2 + $0x28] sm:$0xff] %vm491, %v365
        %498 = vst.msk [vmem:[#allocation2 + $0x30] sm:$0xff] %vm491, %v460
        %499 = vst.msk [vmem:[#allocation2 + $0x38] sm:$0xff] %vm491, %v368
        %500 = vst.msk [vmem:[#allocation2 + $0x40] sm:$0xff] %vm491, %v461
        %501 = vst.msk [vmem:[#allocation2 + $0x48] sm:$0xff] %vm491, %v371
        %502 = vst.msk [vmem:[#allocation2 + $0x50] sm:$0xff] %vm491, %v462
        %503 = vst.msk [vmem:[#allocation2 + $0x58] sm:$0xff] %vm491, %v374
        %504 = vst.msk [vmem:[#allocation2 + $0x60] sm:$0xff] %vm491, %v463
        %505 = vst.msk [vmem:[#allocation2 + $0x68] sm:$0xff] %vm491, %v377
        %506 = vst.msk [vmem:[#allocation2 + $0x70] sm:$0xff] %vm491, %v464
        %507 = vst.msk [vmem:[#allocation2 + $0x78] sm:$0xff] %vm491, %v380
        %508 = vst.msk [vmem:[#allocation2 + $0x80] sm:$0xff] %vm491, %v465
        %509 = vst.msk [vmem:[#allocation2 + $0x88] sm:$0xff] %vm491, %v383
        %510 = vst.msk [vmem:[#allocation2 + $0x90] sm:$0xff] %vm491, %v466
        %511 = vst.msk [vmem:[#allocation2 + $0x98] sm:$0xff] %vm491, %v386
        %512 = vst.msk [vmem:[#allocation2 + $0xa0] sm:$0xff] %vm491, %v467
        %513 = vst.msk [vmem:[#allocation2 + $0xa8] sm:$0xff] %vm491, %v389
        %514 = vst.msk [vmem:[#allocation2 + $0xb0] sm:$0xff] %vm491, %v468
        %515 = vst.msk [vmem:[#allocation2 + $0xb8] sm:$0xff] %vm491, %v392
        %516 = vst.msk [vmem:[#allocation2 + $0xc0] sm:$0xff] %vm491, %v469
        %517 = vst.msk [vmem:[#allocation2 + $0xc8] sm:$0xff] %vm491, %v395
        %518 = vst.msk [vmem:[#allocation2 + $0xd0] sm:$0xff] %vm491, %v470
        %519 = vst.msk [vmem:[#allocation2 + $0xd8] sm:$0xff] %vm491, %v398
        %520 = vst.msk [vmem:[#allocation2 + $0xe0] sm:$0xff] %vm491, %v471
        %521 = vst.msk [vmem:[#allocation2 + $0xe8] sm:$0xff] %vm491, %v401
        %522 = vst.msk [vmem:[#allocation2 + $0xf0] sm:$0xff] %vm491, %v472
        %523 = vst.msk [vmem:[#allocation2 + $0xf8] sm:$0xff] %vm491, %v404
        %556 = vrot.lane.b32.xlu0 %v457, 4
        %v557 = vpop.permute.xlu0 %556
        %558 = vrot.lane.b32.xlu0 %v359, 4
        %v559 = vpop.permute.xlu0 %558
        %560 = vrot.lane.b32.xlu0 %v474, 4
        %v561 = vpop.permute.xlu0 %560
        %562 = vrot.lane.b32.xlu0 %v458, 4
        %v563 = vpop.permute.xlu0 %562
        %564 = vrot.lane.b32.xlu0 %v362, 4
        %v565 = vpop.permute.xlu0 %564
        %566 = vrot.lane.b32.xlu0 %v475, 4
        %v567 = vpop.permute.xlu0 %566
        %568 = vrot.lane.b32.xlu0 %v459, 4
        %v569 = vpop.permute.xlu0 %568
        %570 = vrot.lane.b32.xlu0 %v365, 4
        %v571 = vpop.permute.xlu0 %570
        %572 = vrot.lane.b32.xlu0 %v476, 4
        %v573 = vpop.permute.xlu0 %572
        %574 = vrot.lane.b32.xlu0 %v460, 4
        %v575 = vpop.permute.xlu0 %574
        %576 = vrot.lane.b32.xlu0 %v368, 4
        %v577 = vpop.permute.xlu0 %576
        %578 = vrot.lane.b32.xlu0 %v477, 4
        %v579 = vpop.permute.xlu0 %578
        %580 = vrot.lane.b32.xlu0 %v461, 4
        %v581 = vpop.permute.xlu0 %580
        %582 = vrot.lane.b32.xlu0 %v371, 4
        %v583 = vpop.permute.xlu0 %582
        %584 = vrot.lane.b32.xlu0 %v478, 4
        %v585 = vpop.permute.xlu0 %584
        %586 = vrot.lane.b32.xlu0 %v462, 4
        %v587 = vpop.permute.xlu0 %586
        %588 = vrot.lane.b32.xlu0 %v374, 4
        %v589 = vpop.permute.xlu0 %588
        %590 = vrot.lane.b32.xlu0 %v479, 4
        %v591 = vpop.permute.xlu0 %590
        %592 = vrot.lane.b32.xlu0 %v463, 4
        %v593 = vpop.permute.xlu0 %592
        %594 = vrot.lane.b32.xlu0 %v377, 4
        %v595 = vpop.permute.xlu0 %594
        %596 = vrot.lane.b32.xlu0 %v480, 4
        %v597 = vpop.permute.xlu0 %596
        %598 = vrot.lane.b32.xlu0 %v464, 4
        %v599 = vpop.permute.xlu0 %598
        %600 = vrot.lane.b32.xlu0 %v380, 4
        %v601 = vpop.permute.xlu0 %600
        %602 = vrot.lane.b32.xlu0 %v481, 4
        %v603 = vpop.permute.xlu0 %602
        %604 = vrot.lane.b32.xlu0 %v465, 4
        %v605 = vpop.permute.xlu0 %604
        %606 = vrot.lane.b32.xlu0 %v383, 4
        %v607 = vpop.permute.xlu0 %606
        %608 = vrot.lane.b32.xlu0 %v482, 4
        %v609 = vpop.permute.xlu0 %608
        %610 = vrot.lane.b32.xlu0 %v466, 4
        %v611 = vpop.permute.xlu0 %610
        %612 = vrot.lane.b32.xlu0 %v386, 4
        %v613 = vpop.permute.xlu0 %612
        %614 = vrot.lane.b32.xlu0 %v483, 4
        %v615 = vpop.permute.xlu0 %614
        %616 = vrot.lane.b32.xlu0 %v467, 4
        %v617 = vpop.permute.xlu0 %616
        %618 = vrot.lane.b32.xlu0 %v389, 4
        %v619 = vpop.permute.xlu0 %618
        %620 = vrot.lane.b32.xlu0 %v484, 4
        %v621 = vpop.permute.xlu0 %620
        %622 = vrot.lane.b32.xlu0 %v468, 4
        %v623 = vpop.permute.xlu0 %622
        %624 = vrot.lane.b32.xlu0 %v392, 4
        %v625 = vpop.permute.xlu0 %624
        %626 = vrot.lane.b32.xlu0 %v485, 4
        %v627 = vpop.permute.xlu0 %626
        %628 = vrot.lane.b32.xlu0 %v469, 4
        %v629 = vpop.permute.xlu0 %628
        %630 = vrot.lane.b32.xlu0 %v395, 4
        %v631 = vpop.permute.xlu0 %630
        %632 = vrot.lane.b32.xlu0 %v486, 4
        %v633 = vpop.permute.xlu0 %632
        %634 = vrot.lane.b32.xlu0 %v470, 4
        %v635 = vpop.permute.xlu0 %634
        %636 = vrot.lane.b32.xlu0 %v398, 4
        %v637 = vpop.permute.xlu0 %636
        %638 = vrot.lane.b32.xlu0 %v487, 4
        %v639 = vpop.permute.xlu0 %638
        %640 = vrot.lane.b32.xlu0 %v471, 4
        %v641 = vpop.permute.xlu0 %640
        %642 = vrot.lane.b32.xlu0 %v401, 4
        %v643 = vpop.permute.xlu0 %642
        %644 = vrot.lane.b32.xlu0 %v488, 4
        %v645 = vpop.permute.xlu0 %644
        %646 = vrot.lane.b32.xlu0 %v472, 4
        %v647 = vpop.permute.xlu0 %646
        %648 = vrot.lane.b32.xlu0 %v404, 4
        %v649 = vpop.permute.xlu0 %648
        %650 = vrot.lane.b32.xlu0 %v489, 4
        %v651 = vpop.permute.xlu0 %650
        %vm700 = vcmask 64545
        %701 = vst.msk [vmem:[#allocation2 - $0x1] sm:$0xfe] %vm700, %v557
        %vm702 = vcmask 64544
        %703 = vst.msk [vmem:[#allocation2 + $0x7] sm:$0xff] %vm702, %v559
        %vm704 = vcmask 57376
        %705 = vst.msk [vmem:[#allocation2 + $0xf] sm:$0x1] %vm704, %v561
        %706 = vst.msk [vmem:[#allocation2 + $0xf] sm:$0xfe] %vm700, %v563
        %707 = vst.msk [vmem:[#allocation2 + $0x17] sm:$0xff] %vm702, %v565
        %708 = vst.msk [vmem:[#allocation2 + $0x1f] sm:$0x1] %vm704, %v567
        %709 = vst.msk [vmem:[#allocation2 + $0x1f] sm:$0xfe] %vm700, %v569
        %710 = vst.msk [vmem:[#allocation2 + $0x27] sm:$0xff] %vm702, %v571
        %711 = vst.msk [vmem:[#allocation2 + $0x2f] sm:$0x1] %vm704, %v573
        %712 = vst.msk [vmem:[#allocation2 + $0x2f] sm:$0xfe] %vm700, %v575
        %713 = vst.msk [vmem:[#allocation2 + $0x37] sm:$0xff] %vm702, %v577
        %714 = vst.msk [vmem:[#allocation2 + $0x3f] sm:$0x1] %vm704, %v579
        %715 = vst.msk [vmem:[#allocation2 + $0x3f] sm:$0xfe] %vm700, %v581
        %716 = vst.msk [vmem:[#allocation2 + $0x47] sm:$0xff] %vm702, %v583
        %717 = vst.msk [vmem:[#allocation2 + $0x4f] sm:$0x1] %vm704, %v585
        %718 = vst.msk [vmem:[#allocation2 + $0x4f] sm:$0xfe] %vm700, %v587
        %719 = vst.msk [vmem:[#allocation2 + $0x57] sm:$0xff] %vm702, %v589
        %720 = vst.msk [vmem:[#allocation2 + $0x5f] sm:$0x1] %vm704, %v591
        %721 = vst.msk [vmem:[#allocation2 + $0x5f] sm:$0xfe] %vm700, %v593
        %722 = vst.msk [vmem:[#allocation2 + $0x67] sm:$0xff] %vm702, %v595
        %723 = vst.msk [vmem:[#allocation2 + $0x6f] sm:$0x1] %vm704, %v597
        %724 = vst.msk [vmem:[#allocation2 + $0x6f] sm:$0xfe] %vm700, %v599
        %725 = vst.msk [vmem:[#allocation2 + $0x77] sm:$0xff] %vm702, %v601
        %726 = vst.msk [vmem:[#allocation2 + $0x7f] sm:$0x1] %vm704, %v603
        %727 = vst.msk [vmem:[#allocation2 + $0x7f] sm:$0xfe] %vm700, %v605
        %728 = vst.msk [vmem:[#allocation2 + $0x87] sm:$0xff] %vm702, %v607
        %729 = vst.msk [vmem:[#allocation2 + $0x8f] sm:$0x1] %vm704, %v609
        %730 = vst.msk [vmem:[#allocation2 + $0x8f] sm:$0xfe] %vm700, %v611
        %731 = vst.msk [vmem:[#allocation2 + $0x97] sm:$0xff] %vm702, %v613
        %732 = vst.msk [vmem:[#allocation2 + $0x9f] sm:$0x1] %vm704, %v615
        %733 = vst.msk [vmem:[#allocation2 + $0x9f] sm:$0xfe] %vm700, %v617
        %734 = vst.msk [vmem:[#allocation2 + $0xa7] sm:$0xff] %vm702, %v619
        %735 = vst.msk [vmem:[#allocation2 + $0xaf] sm:$0x1] %vm704, %v621
        %736 = vst.msk [vmem:[#allocation2 + $0xaf] sm:$0xfe] %vm700, %v623
        %737 = vst.msk [vmem:[#allocation2 + $0xb7] sm:$0xff] %vm702, %v625
        %738 = vst.msk [vmem:[#allocation2 + $0xbf] sm:$0x1] %vm704, %v627
        %739 = vst.msk [vmem:[#allocation2 + $0xbf] sm:$0xfe] %vm700, %v629
        %740 = vst.msk [vmem:[#allocation2 + $0xc7] sm:$0xff] %vm702, %v631
        %741 = vst.msk [vmem:[#allocation2 + $0xcf] sm:$0x1] %vm704, %v633
        %742 = vst.msk [vmem:[#allocation2 + $0xcf] sm:$0xfe] %vm700, %v635
        %743 = vst.msk [vmem:[#allocation2 + $0xd7] sm:$0xff] %vm702, %v637
        %744 = vst.msk [vmem:[#allocation2 + $0xdf] sm:$0x1] %vm704, %v639
        %745 = vst.msk [vmem:[#allocation2 + $0xdf] sm:$0xfe] %vm700, %v641
        %746 = vst.msk [vmem:[#allocation2 + $0xe7] sm:$0xff] %vm702, %v643
        %747 = vst.msk [vmem:[#allocation2 + $0xef] sm:$0x1] %vm704, %v645
        %748 = vst.msk [vmem:[#allocation2 + $0xef] sm:$0xfe] %vm700, %v647
        %749 = vst.msk [vmem:[#allocation2 + $0xf7] sm:$0xff] %vm702, %v649
        %750 = vst.msk [vmem:[#allocation2 + $0xff] sm:$0x1] %vm704, %v651
        %751 = vrot.lane.b32.xlu0 %v457, 8
        %v752 = vpop.permute.xlu0 %751
        %753 = vrot.lane.b32.xlu0 %v359, 8
        %v754 = vpop.permute.xlu0 %753
        %755 = vrot.lane.b32.xlu0 %v474, 8
        %v756 = vpop.permute.xlu0 %755
        %757 = vrot.lane.b32.xlu0 %v458, 8
        %v758 = vpop.permute.xlu0 %757
        %759 = vrot.lane.b32.xlu0 %v362, 8
        %v760 = vpop.permute.xlu0 %759
        %761 = vrot.lane.b32.xlu0 %v475, 8
        %v762 = vpop.permute.xlu0 %761
        %763 = vrot.lane.b32.xlu0 %v459, 8
        %v764 = vpop.permute.xlu0 %763
        %765 = vrot.lane.b32.xlu0 %v365, 8
        %v766 = vpop.permute.xlu0 %765
        %767 = vrot.lane.b32.xlu0 %v476, 8
        %v768 = vpop.permute.xlu0 %767
        %769 = vrot.lane.b32.xlu0 %v460, 8
        %v770 = vpop.permute.xlu0 %769
        %771 = vrot.lane.b32.xlu0 %v368, 8
        %v772 = vpop.permute.xlu0 %771
        %773 = vrot.lane.b32.xlu0 %v477, 8
        %v774 = vpop.permute.xlu0 %773
        %775 = vrot.lane.b32.xlu0 %v461, 8
        %v776 = vpop.permute.xlu0 %775
        %777 = vrot.lane.b32.xlu0 %v371, 8
        %v778 = vpop.permute.xlu0 %777
        %779 = vrot.lane.b32.xlu0 %v478, 8
        %v780 = vpop.permute.xlu0 %779
        %781 = vrot.lane.b32.xlu0 %v462, 8
        %v782 = vpop.permute.xlu0 %781
        %783 = vrot.lane.b32.xlu0 %v374, 8
        %v784 = vpop.permute.xlu0 %783
        %785 = vrot.lane.b32.xlu0 %v479, 8
        %v786 = vpop.permute.xlu0 %785
        %787 = vrot.lane.b32.xlu0 %v463, 8
        %v788 = vpop.permute.xlu0 %787
        %789 = vrot.lane.b32.xlu0 %v377, 8
        %v790 = vpop.permute.xlu0 %789
        %791 = vrot.lane.b32.xlu0 %v480, 8
        %v792 = vpop.permute.xlu0 %791
        %793 = vrot.lane.b32.xlu0 %v464, 8
        %v794 = vpop.permute.xlu0 %793
        %795 = vrot.lane.b32.xlu0 %v380, 8
        %v796 = vpop.permute.xlu0 %795
        %797 = vrot.lane.b32.xlu0 %v481, 8
        %v798 = vpop.permute.xlu0 %797
        %799 = vrot.lane.b32.xlu0 %v465, 8
        %v800 = vpop.permute.xlu0 %799
        %801 = vrot.lane.b32.xlu0 %v383, 8
        %v802 = vpop.permute.xlu0 %801
        %803 = vrot.lane.b32.xlu0 %v482, 8
        %v804 = vpop.permute.xlu0 %803
        %805 = vrot.lane.b32.xlu0 %v466, 8
        %v806 = vpop.permute.xlu0 %805
        %807 = vrot.lane.b32.xlu0 %v386, 8
        %v808 = vpop.permute.xlu0 %807
        %809 = vrot.lane.b32.xlu0 %v483, 8
        %v810 = vpop.permute.xlu0 %809
        %811 = vrot.lane.b32.xlu0 %v467, 8
        %v812 = vpop.permute.xlu0 %811
        %813 = vrot.lane.b32.xlu0 %v389, 8
        %v814 = vpop.permute.xlu0 %813
        %815 = vrot.lane.b32.xlu0 %v484, 8
        %v816 = vpop.permute.xlu0 %815
        %817 = vrot.lane.b32.xlu0 %v468, 8
        %v818 = vpop.permute.xlu0 %817
        %819 = vrot.lane.b32.xlu0 %v392, 8
        %v820 = vpop.permute.xlu0 %819
        %821 = vrot.lane.b32.xlu0 %v485, 8
        %v822 = vpop.permute.xlu0 %821
        %823 = vrot.lane.b32.xlu0 %v469, 8
        %v824 = vpop.permute.xlu0 %823
        %825 = vrot.lane.b32.xlu0 %v395, 8
        %v826 = vpop.permute.xlu0 %825
        %827 = vrot.lane.b32.xlu0 %v486, 8
        %v828 = vpop.permute.xlu0 %827
        %829 = vrot.lane.b32.xlu0 %v470, 8
        %v830 = vpop.permute.xlu0 %829
        %831 = vrot.lane.b32.xlu0 %v398, 8
        %v832 = vpop.permute.xlu0 %831
        %833 = vrot.lane.b32.xlu0 %v487, 8
        %v834 = vpop.permute.xlu0 %833
        %835 = vrot.lane.b32.xlu0 %v471, 8
        %v836 = vpop.permute.xlu0 %835
        %837 = vrot.lane.b32.xlu0 %v401, 8
        %v838 = vpop.permute.xlu0 %837
        %839 = vrot.lane.b32.xlu0 %v488, 8
        %v840 = vpop.permute.xlu0 %839
        %841 = vrot.lane.b32.xlu0 %v472, 8
        %v842 = vpop.permute.xlu0 %841
        %843 = vrot.lane.b32.xlu0 %v404, 8
        %v844 = vpop.permute.xlu0 %843
        %845 = vrot.lane.b32.xlu0 %v489, 8
        %v846 = vpop.permute.xlu0 %845
        %vm895 = vcmask 97346
        %896 = vst.msk [vmem:[#allocation2 - $0x2] sm:$0xfc] %vm895, %v752
        %vm897 = vcmask 97344
        %898 = vst.msk [vmem:[#allocation2 + $0x6] sm:$0xff] %vm897, %v754
        %vm899 = vcmask 91200
        %900 = vst.msk [vmem:[#allocation2 + $0xe] sm:$0x3] %vm899, %v756
        %901 = vst.msk [vmem:[#allocation2 + $0xe] sm:$0xfc] %vm895, %v758
        %902 = vst.msk [vmem:[#allocation2 + $0x16] sm:$0xff] %vm897, %v760
        %903 = vst.msk [vmem:[#allocation2 + $0x1e] sm:$0x3] %vm899, %v762
        %904 = vst.msk [vmem:[#allocation2 + $0x1e] sm:$0xfc] %vm895, %v764
        %905 = vst.msk [vmem:[#allocation2 + $0x26] sm:$0xff] %vm897, %v766
        %906 = vst.msk [vmem:[#allocation2 + $0x2e] sm:$0x3] %vm899, %v768
        %907 = vst.msk [vmem:[#allocation2 + $0x2e] sm:$0xfc] %vm895, %v770
        %908 = vst.msk [vmem:[#allocation2 + $0x36] sm:$0xff] %vm897, %v772
        %909 = vst.msk [vmem:[#allocation2 + $0x3e] sm:$0x3] %vm899, %v774
        %910 = vst.msk [vmem:[#allocation2 + $0x3e] sm:$0xfc] %vm895, %v776
        %911 = vst.msk [vmem:[#allocation2 + $0x46] sm:$0xff] %vm897, %v778
        %912 = vst.msk [vmem:[#allocation2 + $0x4e] sm:$0x3] %vm899, %v780
        %913 = vst.msk [vmem:[#allocation2 + $0x4e] sm:$0xfc] %vm895, %v782
        %914 = vst.msk [vmem:[#allocation2 + $0x56] sm:$0xff] %vm897, %v784
        %915 = vst.msk [vmem:[#allocation2 + $0x5e] sm:$0x3] %vm899, %v786
        %916 = vst.msk [vmem:[#allocation2 + $0x5e] sm:$0xfc] %vm895, %v788
        %917 = vst.msk [vmem:[#allocation2 + $0x66] sm:$0xff] %vm897, %v790
        %918 = vst.msk [vmem:[#allocation2 + $0x6e] sm:$0x3] %vm899, %v792
        %919 = vst.msk [vmem:[#allocation2 + $0x6e] sm:$0xfc] %vm895, %v794
        %920 = vst.msk [vmem:[#allocation2 + $0x76] sm:$0xff] %vm897, %v796
        %921 = vst.msk [vmem:[#allocation2 + $0x7e] sm:$0x3] %vm899, %v798
        %922 = vst.msk [vmem:[#allocation2 + $0x7e] sm:$0xfc] %vm895, %v800
        %923 = vst.msk [vmem:[#allocation2 + $0x86] sm:$0xff] %vm897, %v802
        %924 = vst.msk [vmem:[#allocation2 + $0x8e] sm:$0x3] %vm899, %v804
        %925 = vst.msk [vmem:[#allocation2 + $0x8e] sm:$0xfc] %vm895, %v806
        %926 = vst.msk [vmem:[#allocation2 + $0x96] sm:$0xff] %vm897, %v808
        %927 = vst.msk [vmem:[#allocation2 + $0x9e] sm:$0x3] %vm899, %v810
        %928 = vst.msk [vmem:[#allocation2 + $0x9e] sm:$0xfc] %vm895, %v812
        %929 = vst.msk [vmem:[#allocation2 + $0xa6] sm:$0xff] %vm897, %v814
        %930 = vst.msk [vmem:[#allocation2 + $0xae] sm:$0x3] %vm899, %v816
        %931 = vst.msk [vmem:[#allocation2 + $0xae] sm:$0xfc] %vm895, %v818
        %932 = vst.msk [vmem:[#allocation2 + $0xb6] sm:$0xff] %vm897, %v820
        %933 = vst.msk [vmem:[#allocation2 + $0xbe] sm:$0x3] %vm899, %v822
        %934 = vst.msk [vmem:[#allocation2 + $0xbe] sm:$0xfc] %vm895, %v824
        %935 = vst.msk [vmem:[#allocation2 + $0xc6] sm:$0xff] %vm897, %v826
        %936 = vst.msk [vmem:[#allocation2 + $0xce] sm:$0x3] %vm899, %v828
        %937 = vst.msk [vmem:[#allocation2 + $0xce] sm:$0xfc] %vm895, %v830
        %938 = vst.msk [vmem:[#allocation2 + $0xd6] sm:$0xff] %vm897, %v832
        %939 = vst.msk [vmem:[#allocation2 + $0xde] sm:$0x3] %vm899, %v834
        %940 = vst.msk [vmem:[#allocation2 + $0xde] sm:$0xfc] %vm895, %v836
        %941 = vst.msk [vmem:[#allocation2 + $0xe6] sm:$0xff] %vm897, %v838
        %942 = vst.msk [vmem:[#allocation2 + $0xee] sm:$0x3] %vm899, %v840
        %943 = vst.msk [vmem:[#allocation2 + $0xee] sm:$0xfc] %vm895, %v842
        %944 = vst.msk [vmem:[#allocation2 + $0xf6] sm:$0xff] %vm897, %v844
        %945 = vst.msk [vmem:[#allocation2 + $0xfe] sm:$0x3] %vm899, %v846
        %947 = vrot.lane.b32.xlu0 %v458, 12
        %v948 = vpop.permute.xlu0 %947
        %949 = vrot.lane.b32.xlu0 %v362, 12
        %v950 = vpop.permute.xlu0 %949
        %951 = vrot.lane.b32.xlu0 %v459, 12
        %v952 = vpop.permute.xlu0 %951
        %953 = vrot.lane.b32.xlu0 %v365, 12
        %v954 = vpop.permute.xlu0 %953
        %955 = vrot.lane.b32.xlu0 %v460, 12
        %v956 = vpop.permute.xlu0 %955
        %957 = vrot.lane.b32.xlu0 %v368, 12
        %v958 = vpop.permute.xlu0 %957
        %959 = vrot.lane.b32.xlu0 %v461, 12
        %v960 = vpop.permute.xlu0 %959
        %961 = vrot.lane.b32.xlu0 %v371, 12
        %v962 = vpop.permute.xlu0 %961
        %963 = vrot.lane.b32.xlu0 %v462, 12
        %v964 = vpop.permute.xlu0 %963
        %965 = vrot.lane.b32.xlu0 %v374, 12
        %v966 = vpop.permute.xlu0 %965
        %967 = vrot.lane.b32.xlu0 %v463, 12
        %v968 = vpop.permute.xlu0 %967
        %969 = vrot.lane.b32.xlu0 %v377, 12
        %v970 = vpop.permute.xlu0 %969
        %971 = vrot.lane.b32.xlu0 %v464, 12
        %v972 = vpop.permute.xlu0 %971
        %973 = vrot.lane.b32.xlu0 %v380, 12
        %v974 = vpop.permute.xlu0 %973
        %975 = vrot.lane.b32.xlu0 %v465, 12
        %v976 = vpop.permute.xlu0 %975
        %977 = vrot.lane.b32.xlu0 %v383, 12
        %v978 = vpop.permute.xlu0 %977
        %979 = vrot.lane.b32.xlu0 %v466, 12
        %v980 = vpop.permute.xlu0 %979
        %981 = vrot.lane.b32.xlu0 %v386, 12
        %v982 = vpop.permute.xlu0 %981
        %983 = vrot.lane.b32.xlu0 %v467, 12
        %v984 = vpop.permute.xlu0 %983
        %985 = vrot.lane.b32.xlu0 %v389, 12
        %v986 = vpop.permute.xlu0 %985
        %987 = vrot.lane.b32.xlu0 %v468, 12
        %v988 = vpop.permute.xlu0 %987
        %989 = vrot.lane.b32.xlu0 %v392, 12
        %v990 = vpop.permute.xlu0 %989
        %991 = vrot.lane.b32.xlu0 %v469, 12
        %v992 = vpop.permute.xlu0 %991
        %993 = vrot.lane.b32.xlu0 %v395, 12
        %v994 = vpop.permute.xlu0 %993
        %995 = vrot.lane.b32.xlu0 %v470, 12
        %v996 = vpop.permute.xlu0 %995
        %997 = vrot.lane.b32.xlu0 %v398, 12
        %v998 = vpop.permute.xlu0 %997
        %999 = vrot.lane.b32.xlu0 %v471, 12
        %v1000 = vpop.permute.xlu0 %999
        %1001 = vrot.lane.b32.xlu0 %v401, 12
        %v1002 = vpop.permute.xlu0 %1001
        %1003 = vrot.lane.b32.xlu0 %v472, 12
        %v1004 = vpop.permute.xlu0 %1003
        %1005 = vrot.lane.b32.xlu0 %v404, 12
        %v1006 = vpop.permute.xlu0 %1005
        %1007 = vrot.lane.b32.xlu0 %v473, 12
        %v1008 = vpop.permute.xlu0 %1007
        %1009 = vrot.lane.b32.xlu0 %v407, 12
        %v1010 = vpop.permute.xlu0 %1009
        %vm1043 = vcmask 130144
        %1044 = vst.msk [vmem:[#allocation2] sm:$0xff] %vm1043, %v948
        %1045 = vst.msk [vmem:[#allocation2 + $0x8] sm:$0xff] %vm1043, %v950
        %1046 = vst.msk [vmem:[#allocation2 + $0x10] sm:$0xff] %vm1043, %v952
        %1047 = vst.msk [vmem:[#allocation2 + $0x18] sm:$0xff] %vm1043, %v954
        %1048 = vst.msk [vmem:[#allocation2 + $0x20] sm:$0xff] %vm1043, %v956
        %1049 = vst.msk [vmem:[#allocation2 + $0x28] sm:$0xff] %vm1043, %v958
        %1050 = vst.msk [vmem:[#allocation2 + $0x30] sm:$0xff] %vm1043, %v960
        %1051 = vst.msk [vmem:[#allocation2 + $0x38] sm:$0xff] %vm1043, %v962
        %1052 = vst.msk [vmem:[#allocation2 + $0x40] sm:$0xff] %vm1043, %v964
        %1053 = vst.msk [vmem:[#allocation2 + $0x48] sm:$0xff] %vm1043, %v966
        %1054 = vst.msk [vmem:[#allocation2 + $0x50] sm:$0xff] %vm1043, %v968
        %1055 = vst.msk [vmem:[#allocation2 + $0x58] sm:$0xff] %vm1043, %v970
        %1056 = vst.msk [vmem:[#allocation2 + $0x60] sm:$0xff] %vm1043, %v972
        %1057 = vst.msk [vmem:[#allocation2 + $0x68] sm:$0xff] %vm1043, %v974
        %1058 = vst.msk [vmem:[#allocation2 + $0x70] sm:$0xff] %vm1043, %v976
        %1059 = vst.msk [vmem:[#allocation2 + $0x78] sm:$0xff] %vm1043, %v978
        %1060 = vst.msk [vmem:[#allocation2 + $0x80] sm:$0xff] %vm1043, %v980
        %1061 = vst.msk [vmem:[#allocation2 + $0x88] sm:$0xff] %vm1043, %v982
        %1062 = vst.msk [vmem:[#allocation2 + $0x90] sm:$0xff] %vm1043, %v984
        %1063 = vst.msk [vmem:[#allocation2 + $0x98] sm:$0xff] %vm1043, %v986
        %1064 = vst.msk [vmem:[#allocation2 + $0xa0] sm:$0xff] %vm1043, %v988
        %1065 = vst.msk [vmem:[#allocation2 + $0xa8] sm:$0xff] %vm1043, %v990
        %1066 = vst.msk [vmem:[#allocation2 + $0xb0] sm:$0xff] %vm1043, %v992
        %1067 = vst.msk [vmem:[#allocation2 + $0xb8] sm:$0xff] %vm1043, %v994
        %1068 = vst.msk [vmem:[#allocation2 + $0xc0] sm:$0xff] %vm1043, %v996
        %1069 = vst.msk [vmem:[#allocation2 + $0xc8] sm:$0xff] %vm1043, %v998
        %1070 = vst.msk [vmem:[#allocation2 + $0xd0] sm:$0xff] %vm1043, %v1000
        %1071 = vst.msk [vmem:[#allocation2 + $0xd8] sm:$0xff] %vm1043, %v1002
        %1072 = vst.msk [vmem:[#allocation2 + $0xe0] sm:$0xff] %vm1043, %v1004
        %1073 = vst.msk [vmem:[#allocation2 + $0xe8] sm:$0xff] %vm1043, %v1006
        %1074 = vst.msk [vmem:[#allocation2 + $0xf0] sm:$0xff] %vm1043, %v1008
        %1075 = vst.msk [vmem:[#allocation2 + $0xf8] sm:$0xff] %vm1043, %v1010
        %1077 = vrot.lane.b32.xlu0 %v458, 16
        %v1078 = vpop.permute.xlu0 %1077
        %1079 = vrot.lane.b32.xlu0 %v362, 16
        %v1080 = vpop.permute.xlu0 %1079
        %1081 = vrot.lane.b32.xlu0 %v475, 16
        %v1082 = vpop.permute.xlu0 %1081
        %1083 = vrot.lane.b32.xlu0 %v459, 16
        %v1084 = vpop.permute.xlu0 %1083
        %1085 = vrot.lane.b32.xlu0 %v365, 16
        %v1086 = vpop.permute.xlu0 %1085
        %1087 = vrot.lane.b32.xlu0 %v476, 16
        %v1088 = vpop.permute.xlu0 %1087
        %1089 = vrot.lane.b32.xlu0 %v460, 16
        %v1090 = vpop.permute.xlu0 %1089
        %1091 = vrot.lane.b32.xlu0 %v368, 16
        %v1092 = vpop.permute.xlu0 %1091
        %1093 = vrot.lane.b32.xlu0 %v477, 16
        %v1094 = vpop.permute.xlu0 %1093
        %1095 = vrot.lane.b32.xlu0 %v461, 16
        %v1096 = vpop.permute.xlu0 %1095
        %1097 = vrot.lane.b32.xlu0 %v371, 16
        %v1098 = vpop.permute.xlu0 %1097
        %1099 = vrot.lane.b32.xlu0 %v478, 16
        %v1100 = vpop.permute.xlu0 %1099
        %1101 = vrot.lane.b32.xlu0 %v462, 16
        %v1102 = vpop.permute.xlu0 %1101
        %1103 = vrot.lane.b32.xlu0 %v374, 16
        %v1104 = vpop.permute.xlu0 %1103
        %1105 = vrot.lane.b32.xlu0 %v479, 16
        %v1106 = vpop.permute.xlu0 %1105
        %1107 = vrot.lane.b32.xlu0 %v463, 16
        %v1108 = vpop.permute.xlu0 %1107
        %1109 = vrot.lane.b32.xlu0 %v377, 16
        %v1110 = vpop.permute.xlu0 %1109
        %1111 = vrot.lane.b32.xlu0 %v480, 16
        %v1112 = vpop.permute.xlu0 %1111
        %1113 = vrot.lane.b32.xlu0 %v464, 16
        %v1114 = vpop.permute.xlu0 %1113
        %1115 = vrot.lane.b32.xlu0 %v380, 16
        %v1116 = vpop.permute.xlu0 %1115
        %1117 = vrot.lane.b32.xlu0 %v481, 16
        %v1118 = vpop.permute.xlu0 %1117
        %1119 = vrot.lane.b32.xlu0 %v465, 16
        %v1120 = vpop.permute.xlu0 %1119
        %1121 = vrot.lane.b32.xlu0 %v383, 16
        %v1122 = vpop.permute.xlu0 %1121
        %1123 = vrot.lane.b32.xlu0 %v482, 16
        %v1124 = vpop.permute.xlu0 %1123
        %1125 = vrot.lane.b32.xlu0 %v466, 16
        %v1126 = vpop.permute.xlu0 %1125
        %1127 = vrot.lane.b32.xlu0 %v386, 16
        %v1128 = vpop.permute.xlu0 %1127
        %1129 = vrot.lane.b32.xlu0 %v483, 16
        %v1130 = vpop.permute.xlu0 %1129
        %1131 = vrot.lane.b32.xlu0 %v467, 16
        %v1132 = vpop.permute.xlu0 %1131
        %1133 = vrot.lane.b32.xlu0 %v389, 16
        %v1134 = vpop.permute.xlu0 %1133
        %1135 = vrot.lane.b32.xlu0 %v484, 16
        %v1136 = vpop.permute.xlu0 %1135
        %1137 = vrot.lane.b32.xlu0 %v468, 16
        %v1138 = vpop.permute.xlu0 %1137
        %1139 = vrot.lane.b32.xlu0 %v392, 16
        %v1140 = vpop.permute.xlu0 %1139
        %1141 = vrot.lane.b32.xlu0 %v485, 16
        %v1142 = vpop.permute.xlu0 %1141
        %1143 = vrot.lane.b32.xlu0 %v469, 16
        %v1144 = vpop.permute.xlu0 %1143
        %1145 = vrot.lane.b32.xlu0 %v395, 16
        %v1146 = vpop.permute.xlu0 %1145
        %1147 = vrot.lane.b32.xlu0 %v486, 16
        %v1148 = vpop.permute.xlu0 %1147
        %1149 = vrot.lane.b32.xlu0 %v470, 16
        %v1150 = vpop.permute.xlu0 %1149
        %1151 = vrot.lane.b32.xlu0 %v398, 16
        %v1152 = vpop.permute.xlu0 %1151
        %1153 = vrot.lane.b32.xlu0 %v487, 16
        %v1154 = vpop.permute.xlu0 %1153
        %1155 = vrot.lane.b32.xlu0 %v471, 16
        %v1156 = vpop.permute.xlu0 %1155
        %1157 = vrot.lane.b32.xlu0 %v401, 16
        %v1158 = vpop.permute.xlu0 %1157
        %1159 = vrot.lane.b32.xlu0 %v488, 16
        %v1160 = vpop.permute.xlu0 %1159
        %1161 = vrot.lane.b32.xlu0 %v472, 16
        %v1162 = vpop.permute.xlu0 %1161
        %1163 = vrot.lane.b32.xlu0 %v404, 16
        %v1164 = vpop.permute.xlu0 %1163
        %1165 = vrot.lane.b32.xlu0 %v489, 16
        %v1166 = vpop.permute.xlu0 %1165
        %1167 = vrot.lane.b32.xlu0 %v473, 16
        %v1168 = vpop.permute.xlu0 %1167
        %1169 = vrot.lane.b32.xlu0 %v407, 16
        %v1170 = vpop.permute.xlu0 %1169
        %1171 = vrot.lane.b32.xlu0 %v490, 16
        %v1172 = vpop.permute.xlu0 %1171
        %vm1221 = vcmask 162945
        %1222 = vst.msk [vmem:[#allocation2 - $0x1] sm:$0xfe] %vm1221, %v1078
        %vm1223 = vcmask 162944
        %1224 = vst.msk [vmem:[#allocation2 + $0x7] sm:$0xff] %vm1223, %v1080
        %vm1225 = vcmask 155776
        %1226 = vst.msk [vmem:[#allocation2 + $0xf] sm:$0x1] %vm1225, %v1082
        %1227 = vst.msk [vmem:[#allocation2 + $0xf] sm:$0xfe] %vm1221, %v1084
        %1228 = vst.msk [vmem:[#allocation2 + $0x17] sm:$0xff] %vm1223, %v1086
        %1229 = vst.msk [vmem:[#allocation2 + $0x1f] sm:$0x1] %vm1225, %v1088
        %1230 = vst.msk [vmem:[#allocation2 + $0x1f] sm:$0xfe] %vm1221, %v1090
        %1231 = vst.msk [vmem:[#allocation2 + $0x27] sm:$0xff] %vm1223, %v1092
        %1232 = vst.msk [vmem:[#allocation2 + $0x2f] sm:$0x1] %vm1225, %v1094
        %1233 = vst.msk [vmem:[#allocation2 + $0x2f] sm:$0xfe] %vm1221, %v1096
        %1234 = vst.msk [vmem:[#allocation2 + $0x37] sm:$0xff] %vm1223, %v1098
        %1235 = vst.msk [vmem:[#allocation2 + $0x3f] sm:$0x1] %vm1225, %v1100
        %1236 = vst.msk [vmem:[#allocation2 + $0x3f] sm:$0xfe] %vm1221, %v1102
        %1237 = vst.msk [vmem:[#allocation2 + $0x47] sm:$0xff] %vm1223, %v1104
        %1238 = vst.msk [vmem:[#allocation2 + $0x4f] sm:$0x1] %vm1225, %v1106
        %1239 = vst.msk [vmem:[#allocation2 + $0x4f] sm:$0xfe] %vm1221, %v1108
        %1240 = vst.msk [vmem:[#allocation2 + $0x57] sm:$0xff] %vm1223, %v1110
        %1241 = vst.msk [vmem:[#allocation2 + $0x5f] sm:$0x1] %vm1225, %v1112
        %1242 = vst.msk [vmem:[#allocation2 + $0x5f] sm:$0xfe] %vm1221, %v1114
        %1243 = vst.msk [vmem:[#allocation2 + $0x67] sm:$0xff] %vm1223, %v1116
        %1244 = vst.msk [vmem:[#allocation2 + $0x6f] sm:$0x1] %vm1225, %v1118
        %1245 = vst.msk [vmem:[#allocation2 + $0x6f] sm:$0xfe] %vm1221, %v1120
        %1246 = vst.msk [vmem:[#allocation2 + $0x77] sm:$0xff] %vm1223, %v1122
        %1247 = vst.msk [vmem:[#allocation2 + $0x7f] sm:$0x1] %vm1225, %v1124
        %1248 = vst.msk [vmem:[#allocation2 + $0x7f] sm:$0xfe] %vm1221, %v1126
        %1249 = vst.msk [vmem:[#allocation2 + $0x87] sm:$0xff] %vm1223, %v1128
        %1250 = vst.msk [vmem:[#allocation2 + $0x8f] sm:$0x1] %vm1225, %v1130
        %1251 = vst.msk [vmem:[#allocation2 + $0x8f] sm:$0xfe] %vm1221, %v1132
        %1252 = vst.msk [vmem:[#allocation2 + $0x97] sm:$0xff] %vm1223, %v1134
        %1253 = vst.msk [vmem:[#allocation2 + $0x9f] sm:$0x1] %vm1225, %v1136
        %1254 = vst.msk [vmem:[#allocation2 + $0x9f] sm:$0xfe] %vm1221, %v1138
        %1255 = vst.msk [vmem:[#allocation2 + $0xa7] sm:$0xff] %vm1223, %v1140
        %1256 = vst.msk [vmem:[#allocation2 + $0xaf] sm:$0x1] %vm1225, %v1142
        %1257 = vst.msk [vmem:[#allocation2 + $0xaf] sm:$0xfe] %vm1221, %v1144
        %1258 = vst.msk [vmem:[#allocation2 + $0xb7] sm:$0xff] %vm1223, %v1146
        %1259 = vst.msk [vmem:[#allocation2 + $0xbf] sm:$0x1] %vm1225, %v1148
        %1260 = vst.msk [vmem:[#allocation2 + $0xbf] sm:$0xfe] %vm1221, %v1150
        %1261 = vst.msk [vmem:[#allocation2 + $0xc7] sm:$0xff] %vm1223, %v1152
        %1262 = vst.msk [vmem:[#allocation2 + $0xcf] sm:$0x1] %vm1225, %v1154
        %1263 = vst.msk [vmem:[#allocation2 + $0xcf] sm:$0xfe] %vm1221, %v1156
        %1264 = vst.msk [vmem:[#allocation2 + $0xd7] sm:$0xff] %vm1223, %v1158
        %1265 = vst.msk [vmem:[#allocation2 + $0xdf] sm:$0x1] %vm1225, %v1160
        %1266 = vst.msk [vmem:[#allocation2 + $0xdf] sm:$0xfe] %vm1221, %v1162
        %1267 = vst.msk [vmem:[#allocation2 + $0xe7] sm:$0xff] %vm1223, %v1164
        %1268 = vst.msk [vmem:[#allocation2 + $0xef] sm:$0x1] %vm1225, %v1166
        %1269 = vst.msk [vmem:[#allocation2 + $0xef] sm:$0xfe] %vm1221, %v1168
        %1270 = vst.msk [vmem:[#allocation2 + $0xf7] sm:$0xff] %vm1223, %v1170
        %1271 = vst.msk [vmem:[#allocation2 + $0xff] sm:$0x1] %vm1225, %v1172
        %1272 = vrot.lane.b32.xlu0 %v458, 20
        %v1273 = vpop.permute.xlu0 %1272
        %1274 = vrot.lane.b32.xlu0 %v362, 20
        %v1275 = vpop.permute.xlu0 %1274
        %1276 = vrot.lane.b32.xlu0 %v475, 20
        %v1277 = vpop.permute.xlu0 %1276
        %1278 = vrot.lane.b32.xlu0 %v459, 20
        %v1279 = vpop.permute.xlu0 %1278
        %1280 = vrot.lane.b32.xlu0 %v365, 20
        %v1281 = vpop.permute.xlu0 %1280
        %1282 = vrot.lane.b32.xlu0 %v476, 20
        %v1283 = vpop.permute.xlu0 %1282
        %1284 = vrot.lane.b32.xlu0 %v460, 20
        %v1285 = vpop.permute.xlu0 %1284
        %1286 = vrot.lane.b32.xlu0 %v368, 20
        %v1287 = vpop.permute.xlu0 %1286
        %1288 = vrot.lane.b32.xlu0 %v477, 20
        %v1289 = vpop.permute.xlu0 %1288
        %1290 = vrot.lane.b32.xlu0 %v461, 20
        %v1291 = vpop.permute.xlu0 %1290
        %1292 = vrot.lane.b32.xlu0 %v371, 20
        %v1293 = vpop.permute.xlu0 %1292
        %1294 = vrot.lane.b32.xlu0 %v478, 20
        %v1295 = vpop.permute.xlu0 %1294
        %1296 = vrot.lane.b32.xlu0 %v462, 20
        %v1297 = vpop.permute.xlu0 %1296
        %1298 = vrot.lane.b32.xlu0 %v374, 20
        %v1299 = vpop.permute.xlu0 %1298
        %1300 = vrot.lane.b32.xlu0 %v479, 20
        %v1301 = vpop.permute.xlu0 %1300
        %1302 = vrot.lane.b32.xlu0 %v463, 20
        %v1303 = vpop.permute.xlu0 %1302
        %1304 = vrot.lane.b32.xlu0 %v377, 20
        %v1305 = vpop.permute.xlu0 %1304
        %1306 = vrot.lane.b32.xlu0 %v480, 20
        %v1307 = vpop.permute.xlu0 %1306
        %1308 = vrot.lane.b32.xlu0 %v464, 20
        %v1309 = vpop.permute.xlu0 %1308
        %1310 = vrot.lane.b32.xlu0 %v380, 20
        %v1311 = vpop.permute.xlu0 %1310
        %1312 = vrot.lane.b32.xlu0 %v481, 20
        %v1313 = vpop.permute.xlu0 %1312
        %1314 = vrot.lane.b32.xlu0 %v465, 20
        %v1315 = vpop.permute.xlu0 %1314
        %1316 = vrot.lane.b32.xlu0 %v383, 20
        %v1317 = vpop.permute.xlu0 %1316
        %1318 = vrot.lane.b32.xlu0 %v482, 20
        %v1319 = vpop.permute.xlu0 %1318
        %1320 = vrot.lane.b32.xlu0 %v466, 20
        %v1321 = vpop.permute.xlu0 %1320
        %1322 = vrot.lane.b32.xlu0 %v386, 20
        %v1323 = vpop.permute.xlu0 %1322
        %1324 = vrot.lane.b32.xlu0 %v483, 20
        %v1325 = vpop.permute.xlu0 %1324
        %1326 = vrot.lane.b32.xlu0 %v467, 20
        %v1327 = vpop.permute.xlu0 %1326
        %1328 = vrot.lane.b32.xlu0 %v389, 20
        %v1329 = vpop.permute.xlu0 %1328
        %1330 = vrot.lane.b32.xlu0 %v484, 20
        %v1331 = vpop.permute.xlu0 %1330
        %1332 = vrot.lane.b32.xlu0 %v468, 20
        %v1333 = vpop.permute.xlu0 %1332
        %1334 = vrot.lane.b32.xlu0 %v392, 20
        %v1335 = vpop.permute.xlu0 %1334
        %1336 = vrot.lane.b32.xlu0 %v485, 20
        %v1337 = vpop.permute.xlu0 %1336
        %1338 = vrot.lane.b32.xlu0 %v469, 20
        %v1339 = vpop.permute.xlu0 %1338
        %1340 = vrot.lane.b32.xlu0 %v395, 20
        %v1341 = vpop.permute.xlu0 %1340
        %1342 = vrot.lane.b32.xlu0 %v486, 20
        %v1343 = vpop.permute.xlu0 %1342
        %1344 = vrot.lane.b32.xlu0 %v470, 20
        %v1345 = vpop.permute.xlu0 %1344
        %1346 = vrot.lane.b32.xlu0 %v398, 20
        %v1347 = vpop.permute.xlu0 %1346
        %1348 = vrot.lane.b32.xlu0 %v487, 20
        %v1349 = vpop.permute.xlu0 %1348
        %1350 = vrot.lane.b32.xlu0 %v471, 20
        %v1351 = vpop.permute.xlu0 %1350
        %1352 = vrot.lane.b32.xlu0 %v401, 20
        %v1353 = vpop.permute.xlu0 %1352
        %1354 = vrot.lane.b32.xlu0 %v488, 20
        %v1355 = vpop.permute.xlu0 %1354
        %1356 = vrot.lane.b32.xlu0 %v472, 20
        %v1357 = vpop.permute.xlu0 %1356
        %1358 = vrot.lane.b32.xlu0 %v404, 20
        %v1359 = vpop.permute.xlu0 %1358
        %1360 = vrot.lane.b32.xlu0 %v489, 20
        %v1361 = vpop.permute.xlu0 %1360
        %1362 = vrot.lane.b32.xlu0 %v473, 20
        %v1363 = vpop.permute.xlu0 %1362
        %1364 = vrot.lane.b32.xlu0 %v407, 20
        %v1365 = vpop.permute.xlu0 %1364
        %1366 = vrot.lane.b32.xlu0 %v490, 20
        %v1367 = vpop.permute.xlu0 %1366
        %vm1416 = vcmask 195746
        %1417 = vst.msk [vmem:[#allocation2 - $0x2] sm:$0xfc] %vm1416, %v1273
        %vm1418 = vcmask 195744
        %1419 = vst.msk [vmem:[#allocation2 + $0x6] sm:$0xff] %vm1418, %v1275
        %vm1420 = vcmask 189600
        %1421 = vst.msk [vmem:[#allocation2 + $0xe] sm:$0x3] %vm1420, %v1277
        %1422 = vst.msk [vmem:[#allocation2 + $0xe] sm:$0xfc] %vm1416, %v1279
        %1423 = vst.msk [vmem:[#allocation2 + $0x16] sm:$0xff] %vm1418, %v1281
        %1424 = vst.msk [vmem:[#allocation2 + $0x1e] sm:$0x3] %vm1420, %v1283
        %1425 = vst.msk [vmem:[#allocation2 + $0x1e] sm:$0xfc] %vm1416, %v1285
        %1426 = vst.msk [vmem:[#allocation2 + $0x26] sm:$0xff] %vm1418, %v1287
        %1427 = vst.msk [vmem:[#allocation2 + $0x2e] sm:$0x3] %vm1420, %v1289
        %1428 = vst.msk [vmem:[#allocation2 + $0x2e] sm:$0xfc] %vm1416, %v1291
        %1429 = vst.msk [vmem:[#allocation2 + $0x36] sm:$0xff] %vm1418, %v1293
        %1430 = vst.msk [vmem:[#allocation2 + $0x3e] sm:$0x3] %vm1420, %v1295
        %1431 = vst.msk [vmem:[#allocation2 + $0x3e] sm:$0xfc] %vm1416, %v1297
        %1432 = vst.msk [vmem:[#allocation2 + $0x46] sm:$0xff] %vm1418, %v1299
        %1433 = vst.msk [vmem:[#allocation2 + $0x4e] sm:$0x3] %vm1420, %v1301
        %1434 = vst.msk [vmem:[#allocation2 + $0x4e] sm:$0xfc] %vm1416, %v1303
        %1435 = vst.msk [vmem:[#allocation2 + $0x56] sm:$0xff] %vm1418, %v1305
        %1436 = vst.msk [vmem:[#allocation2 + $0x5e] sm:$0x3] %vm1420, %v1307
        %1437 = vst.msk [vmem:[#allocation2 + $0x5e] sm:$0xfc] %vm1416, %v1309
        %1438 = vst.msk [vmem:[#allocation2 + $0x66] sm:$0xff] %vm1418, %v1311
        %1439 = vst.msk [vmem:[#allocation2 + $0x6e] sm:$0x3] %vm1420, %v1313
        %1440 = vst.msk [vmem:[#allocation2 + $0x6e] sm:$0xfc] %vm1416, %v1315
        %1441 = vst.msk [vmem:[#allocation2 + $0x76] sm:$0xff] %vm1418, %v1317
        %1442 = vst.msk [vmem:[#allocation2 + $0x7e] sm:$0x3] %vm1420, %v1319
        %1443 = vst.msk [vmem:[#allocation2 + $0x7e] sm:$0xfc] %vm1416, %v1321
        %1444 = vst.msk [vmem:[#allocation2 + $0x86] sm:$0xff] %vm1418, %v1323
        %1445 = vst.msk [vmem:[#allocation2 + $0x8e] sm:$0x3] %vm1420, %v1325
        %1446 = vst.msk [vmem:[#allocation2 + $0x8e] sm:$0xfc] %vm1416, %v1327
        %1447 = vst.msk [vmem:[#allocation2 + $0x96] sm:$0xff] %vm1418, %v1329
        %1448 = vst.msk [vmem:[#allocation2 + $0x9e] sm:$0x3] %vm1420, %v1331
        %1449 = vst.msk [vmem:[#allocation2 + $0x9e] sm:$0xfc] %vm1416, %v1333
        %1450 = vst.msk [vmem:[#allocation2 + $0xa6] sm:$0xff] %vm1418, %v1335
        %1451 = vst.msk [vmem:[#allocation2 + $0xae] sm:$0x3] %vm1420, %v1337
        %1452 = vst.msk [vmem:[#allocation2 + $0xae] sm:$0xfc] %vm1416, %v1339
        %1453 = vst.msk [vmem:[#allocation2 + $0xb6] sm:$0xff] %vm1418, %v1341
        %1454 = vst.msk [vmem:[#allocation2 + $0xbe] sm:$0x3] %vm1420, %v1343
        %1455 = vst.msk [vmem:[#allocation2 + $0xbe] sm:$0xfc] %vm1416, %v1345
        %1456 = vst.msk [vmem:[#allocation2 + $0xc6] sm:$0xff] %vm1418, %v1347
        %1457 = vst.msk [vmem:[#allocation2 + $0xce] sm:$0x3] %vm1420, %v1349
        %1458 = vst.msk [vmem:[#allocation2 + $0xce] sm:$0xfc] %vm1416, %v1351
        %1459 = vst.msk [vmem:[#allocation2 + $0xd6] sm:$0xff] %vm1418, %v1353
        %1460 = vst.msk [vmem:[#allocation2 + $0xde] sm:$0x3] %vm1420, %v1355
        %1461 = vst.msk [vmem:[#allocation2 + $0xde] sm:$0xfc] %vm1416, %v1357
        %1462 = vst.msk [vmem:[#allocation2 + $0xe6] sm:$0xff] %vm1418, %v1359
        %1463 = vst.msk [vmem:[#allocation2 + $0xee] sm:$0x3] %vm1420, %v1361
        %1464 = vst.msk [vmem:[#allocation2 + $0xee] sm:$0xfc] %vm1416, %v1363
        %1465 = vst.msk [vmem:[#allocation2 + $0xf6] sm:$0xff] %vm1418, %v1365
        %1466 = vst.msk [vmem:[#allocation2 + $0xfe] sm:$0x3] %vm1420, %v1367
        %1467 = vrot.lane.b32.xlu0 %v459, 24
        %v1468 = vpop.permute.xlu0 %1467
        %1469 = vrot.lane.b32.xlu0 %v365, 24
        %v1470 = vpop.permute.xlu0 %1469
        %1471 = vrot.lane.b32.xlu0 %v460, 24
        %v1472 = vpop.permute.xlu0 %1471
        %1473 = vrot.lane.b32.xlu0 %v368, 24
        %v1474 = vpop.permute.xlu0 %1473
        %1475 = vrot.lane.b32.xlu0 %v461, 24
        %v1476 = vpop.permute.xlu0 %1475
        %1477 = vrot.lane.b32.xlu0 %v371, 24
        %v1478 = vpop.permute.xlu0 %1477
        %1479 = vrot.lane.b32.xlu0 %v462, 24
        %v1480 = vpop.permute.xlu0 %1479
        %1481 = vrot.lane.b32.xlu0 %v374, 24
        %v1482 = vpop.permute.xlu0 %1481
        %1483 = vrot.lane.b32.xlu0 %v463, 24
        %v1484 = vpop.permute.xlu0 %1483
        %1485 = vrot.lane.b32.xlu0 %v377, 24
        %v1486 = vpop.permute.xlu0 %1485
        %1487 = vrot.lane.b32.xlu0 %v464, 24
        %v1488 = vpop.permute.xlu0 %1487
        %1489 = vrot.lane.b32.xlu0 %v380, 24
        %v1490 = vpop.permute.xlu0 %1489
        %1491 = vrot.lane.b32.xlu0 %v465, 24
        %v1492 = vpop.permute.xlu0 %1491
        %1493 = vrot.lane.b32.xlu0 %v383, 24
        %v1494 = vpop.permute.xlu0 %1493
        %1495 = vrot.lane.b32.xlu0 %v466, 24
        %v1496 = vpop.permute.xlu0 %1495
        %1497 = vrot.lane.b32.xlu0 %v386, 24
        %v1498 = vpop.permute.xlu0 %1497
        %1499 = vrot.lane.b32.xlu0 %v467, 24
        %v1500 = vpop.permute.xlu0 %1499
        %1501 = vrot.lane.b32.xlu0 %v389, 24
        %v1502 = vpop.permute.xlu0 %1501
        %1503 = vrot.lane.b32.xlu0 %v468, 24
        %v1504 = vpop.permute.xlu0 %1503
        %1505 = vrot.lane.b32.xlu0 %v392, 24
        %v1506 = vpop.permute.xlu0 %1505
        %1507 = vrot.lane.b32.xlu0 %v469, 24
        %v1508 = vpop.permute.xlu0 %1507
        %1509 = vrot.lane.b32.xlu0 %v395, 24
        %v1510 = vpop.permute.xlu0 %1509
        %1511 = vrot.lane.b32.xlu0 %v470, 24
        %v1512 = vpop.permute.xlu0 %1511
        %1513 = vrot.lane.b32.xlu0 %v398, 24
        %v1514 = vpop.permute.xlu0 %1513
        %1515 = vrot.lane.b32.xlu0 %v471, 24
        %v1516 = vpop.permute.xlu0 %1515
        %1517 = vrot.lane.b32.xlu0 %v401, 24
        %v1518 = vpop.permute.xlu0 %1517
        %1519 = vrot.lane.b32.xlu0 %v472, 24
        %v1520 = vpop.permute.xlu0 %1519
        %1521 = vrot.lane.b32.xlu0 %v404, 24
        %v1522 = vpop.permute.xlu0 %1521
        %1523 = vrot.lane.b32.xlu0 %v473, 24
        %v1524 = vpop.permute.xlu0 %1523
        %1525 = vrot.lane.b32.xlu0 %v407, 24
        %v1526 = vpop.permute.xlu0 %1525
        %1527 = vrot.lane.b32.xlu0 %v457, 24
        %v1528 = vpop.permute.xlu0 %1527
        %1529 = vrot.lane.b32.xlu0 %v359, 24
        %v1530 = vpop.permute.xlu0 %1529
        %vm1563 = vcmask 228544
        %1564 = vst.msk [vmem:[#allocation2] sm:$0xff] %vm1563, %v1468
        %1565 = vst.msk [vmem:[#allocation2 + $0x8] sm:$0xff] %vm1563, %v1470
        %1566 = vst.msk [vmem:[#allocation2 + $0x10] sm:$0xff] %vm1563, %v1472
        %1567 = vst.msk [vmem:[#allocation2 + $0x18] sm:$0xff] %vm1563, %v1474
        %1568 = vst.msk [vmem:[#allocation2 + $0x20] sm:$0xff] %vm1563, %v1476
        %1569 = vst.msk [vmem:[#allocation2 + $0x28] sm:$0xff] %vm1563, %v1478
        %1570 = vst.msk [vmem:[#allocation2 + $0x30] sm:$0xff] %vm1563, %v1480
        %1571 = vst.msk [vmem:[#allocation2 + $0x38] sm:$0xff] %vm1563, %v1482
        %1572 = vst.msk [vmem:[#allocation2 + $0x40] sm:$0xff] %vm1563, %v1484
        %1573 = vst.msk [vmem:[#allocation2 + $0x48] sm:$0xff] %vm1563, %v1486
        %1574 = vst.msk [vmem:[#allocation2 + $0x50] sm:$0xff] %vm1563, %v1488
        %1575 = vst.msk [vmem:[#allocation2 + $0x58] sm:$0xff] %vm1563, %v1490
        %1576 = vst.msk [vmem:[#allocation2 + $0x60] sm:$0xff] %vm1563, %v1492
        %1577 = vst.msk [vmem:[#allocation2 + $0x68] sm:$0xff] %vm1563, %v1494
        %1578 = vst.msk [vmem:[#allocation2 + $0x70] sm:$0xff] %vm1563, %v1496
        %1579 = vst.msk [vmem:[#allocation2 + $0x78] sm:$0xff] %vm1563, %v1498
        %1580 = vst.msk [vmem:[#allocation2 + $0x80] sm:$0xff] %vm1563, %v1500
        %1581 = vst.msk [vmem:[#allocation2 + $0x88] sm:$0xff] %vm1563, %v1502
        %1582 = vst.msk [vmem:[#allocation2 + $0x90] sm:$0xff] %vm1563, %v1504
        %1583 = vst.msk [vmem:[#allocation2 + $0x98] sm:$0xff] %vm1563, %v1506
        %1584 = vst.msk [vmem:[#allocation2 + $0xa0] sm:$0xff] %vm1563, %v1508
        %1585 = vst.msk [vmem:[#allocation2 + $0xa8] sm:$0xff] %vm1563, %v1510
        %1586 = vst.msk [vmem:[#allocation2 + $0xb0] sm:$0xff] %vm1563, %v1512
        %1587 = vst.msk [vmem:[#allocation2 + $0xb8] sm:$0xff] %vm1563, %v1514
        %1588 = vst.msk [vmem:[#allocation2 + $0xc0] sm:$0xff] %vm1563, %v1516
        %1589 = vst.msk [vmem:[#allocation2 + $0xc8] sm:$0xff] %vm1563, %v1518
        %1590 = vst.msk [vmem:[#allocation2 + $0xd0] sm:$0xff] %vm1563, %v1520
        %1591 = vst.msk [vmem:[#allocation2 + $0xd8] sm:$0xff] %vm1563, %v1522
        %1592 = vst.msk [vmem:[#allocation2 + $0xe0] sm:$0xff] %vm1563, %v1524
        %1593 = vst.msk [vmem:[#allocation2 + $0xe8] sm:$0xff] %vm1563, %v1526
        %1594 = vst.msk [vmem:[#allocation2 + $0xf0] sm:$0xff] %vm1563, %v1528
        %1595 = vst.msk [vmem:[#allocation2 + $0xf8] sm:$0xff] %vm1563, %v1530
        %1596 = vrot.lane.b32.xlu0 %v459, 28
        %v1597 = vpop.permute.xlu0 %1596
        %1598 = vrot.lane.b32.xlu0 %v365, 28
        %v1599 = vpop.permute.xlu0 %1598
        %1600 = vrot.lane.b32.xlu0 %v476, 28
        %v1601 = vpop.permute.xlu0 %1600
        %1602 = vrot.lane.b32.xlu0 %v460, 28
        %v1603 = vpop.permute.xlu0 %1602
        %1604 = vrot.lane.b32.xlu0 %v368, 28
        %v1605 = vpop.permute.xlu0 %1604
        %1606 = vrot.lane.b32.xlu0 %v477, 28
        %v1607 = vpop.permute.xlu0 %1606
        %1608 = vrot.lane.b32.xlu0 %v461, 28
        %v1609 = vpop.permute.xlu0 %1608
        %1610 = vrot.lane.b32.xlu0 %v371, 28
        %v1611 = vpop.permute.xlu0 %1610
        %1612 = vrot.lane.b32.xlu0 %v478, 28
        %v1613 = vpop.permute.xlu0 %1612
        %1614 = vrot.lane.b32.xlu0 %v462, 28
        %v1615 = vpop.permute.xlu0 %1614
        %1616 = vrot.lane.b32.xlu0 %v374, 28
        %v1617 = vpop.permute.xlu0 %1616
        %1618 = vrot.lane.b32.xlu0 %v479, 28
        %v1619 = vpop.permute.xlu0 %1618
        %1620 = vrot.lane.b32.xlu0 %v463, 28
        %v1621 = vpop.permute.xlu0 %1620
        %1622 = vrot.lane.b32.xlu0 %v377, 28
        %v1623 = vpop.permute.xlu0 %1622
        %1624 = vrot.lane.b32.xlu0 %v480, 28
        %v1625 = vpop.permute.xlu0 %1624
        %1626 = vrot.lane.b32.xlu0 %v464, 28
        %v1627 = vpop.permute.xlu0 %1626
        %1628 = vrot.lane.b32.xlu0 %v380, 28
        %v1629 = vpop.permute.xlu0 %1628
        %1630 = vrot.lane.b32.xlu0 %v481, 28
        %v1631 = vpop.permute.xlu0 %1630
        %1632 = vrot.lane.b32.xlu0 %v465, 28
        %v1633 = vpop.permute.xlu0 %1632
        %1634 = vrot.lane.b32.xlu0 %v383, 28
        %v1635 = vpop.permute.xlu0 %1634
        %1636 = vrot.lane.b32.xlu0 %v482, 28
        %v1637 = vpop.permute.xlu0 %1636
        %1638 = vrot.lane.b32.xlu0 %v466, 28
        %v1639 = vpop.permute.xlu0 %1638
        %1640 = vrot.lane.b32.xlu0 %v386, 28
        %v1641 = vpop.permute.xlu0 %1640
        %1642 = vrot.lane.b32.xlu0 %v483, 28
        %v1643 = vpop.permute.xlu0 %1642
        %1644 = vrot.lane.b32.xlu0 %v467, 28
        %v1645 = vpop.permute.xlu0 %1644
        %1646 = vrot.lane.b32.xlu0 %v389, 28
        %v1647 = vpop.permute.xlu0 %1646
        %1648 = vrot.lane.b32.xlu0 %v484, 28
        %v1649 = vpop.permute.xlu0 %1648
        %1650 = vrot.lane.b32.xlu0 %v468, 28
        %v1651 = vpop.permute.xlu0 %1650
        %1652 = vrot.lane.b32.xlu0 %v392, 28
        %v1653 = vpop.permute.xlu0 %1652
        %1654 = vrot.lane.b32.xlu0 %v485, 28
        %v1655 = vpop.permute.xlu0 %1654
        %1656 = vrot.lane.b32.xlu0 %v469, 28
        %v1657 = vpop.permute.xlu0 %1656
        %1658 = vrot.lane.b32.xlu0 %v395, 28
        %v1659 = vpop.permute.xlu0 %1658
        %1660 = vrot.lane.b32.xlu0 %v486, 28
        %v1661 = vpop.permute.xlu0 %1660
        %1662 = vrot.lane.b32.xlu0 %v470, 28
        %v1663 = vpop.permute.xlu0 %1662
        %1664 = vrot.lane.b32.xlu0 %v398, 28
        %v1665 = vpop.permute.xlu0 %1664
        %1666 = vrot.lane.b32.xlu0 %v487, 28
        %v1667 = vpop.permute.xlu0 %1666
        %1668 = vrot.lane.b32.xlu0 %v471, 28
        %v1669 = vpop.permute.xlu0 %1668
        %1670 = vrot.lane.b32.xlu0 %v401, 28
        %v1671 = vpop.permute.xlu0 %1670
        %1672 = vrot.lane.b32.xlu0 %v488, 28
        %v1673 = vpop.permute.xlu0 %1672
        %1674 = vrot.lane.b32.xlu0 %v472, 28
        %v1675 = vpop.permute.xlu0 %1674
        %1676 = vrot.lane.b32.xlu0 %v404, 28
        %v1677 = vpop.permute.xlu0 %1676
        %1678 = vrot.lane.b32.xlu0 %v489, 28
        %v1679 = vpop.permute.xlu0 %1678
        %1680 = vrot.lane.b32.xlu0 %v473, 28
        %v1681 = vpop.permute.xlu0 %1680
        %1682 = vrot.lane.b32.xlu0 %v407, 28
        %v1683 = vpop.permute.xlu0 %1682
        %1684 = vrot.lane.b32.xlu0 %v490, 28
        %v1685 = vpop.permute.xlu0 %1684
        %1686 = vrot.lane.b32.xlu0 %v457, 28
        %v1687 = vpop.permute.xlu0 %1686
        %1688 = vrot.lane.b32.xlu0 %v359, 28
        %v1689 = vpop.permute.xlu0 %1688
        %1690 = vrot.lane.b32.xlu0 %v474, 28
        %v1691 = vpop.permute.xlu0 %1690
        %vm1740 = vcmask 261345
        %1741 = vst.msk [vmem:[#allocation2 - $0x1] sm:$0xfe] %vm1740, %v1597
        %vm1742 = vcmask 261344
        %1743 = vst.msk [vmem:[#allocation2 + $0x7] sm:$0xff] %vm1742, %v1599
        %vm1744 = vcmask 254176
        %1745 = vst.msk [vmem:[#allocation2 + $0xf] sm:$0x1] %vm1744, %v1601
        %1746 = vst.msk [vmem:[#allocation2 + $0xf] sm:$0xfe] %vm1740, %v1603
        %1747 = vst.msk [vmem:[#allocation2 + $0x17] sm:$0xff] %vm1742, %v1605
        %1748 = vst.msk [vmem:[#allocation2 + $0x1f] sm:$0x1] %vm1744, %v1607
        %1749 = vst.msk [vmem:[#allocation2 + $0x1f] sm:$0xfe] %vm1740, %v1609
        %1750 = vst.msk [vmem:[#allocation2 + $0x27] sm:$0xff] %vm1742, %v1611
        %1751 = vst.msk [vmem:[#allocation2 + $0x2f] sm:$0x1] %vm1744, %v1613
        %1752 = vst.msk [vmem:[#allocation2 + $0x2f] sm:$0xfe] %vm1740, %v1615
        %1753 = vst.msk [vmem:[#allocation2 + $0x37] sm:$0xff] %vm1742, %v1617
        %1754 = vst.msk [vmem:[#allocation2 + $0x3f] sm:$0x1] %vm1744, %v1619
        %1755 = vst.msk [vmem:[#allocation2 + $0x3f] sm:$0xfe] %vm1740, %v1621
        %1756 = vst.msk [vmem:[#allocation2 + $0x47] sm:$0xff] %vm1742, %v1623
        %1757 = vst.msk [vmem:[#allocation2 + $0x4f] sm:$0x1] %vm1744, %v1625
        %1758 = vst.msk [vmem:[#allocation2 + $0x4f] sm:$0xfe] %vm1740, %v1627
        %1759 = vst.msk [vmem:[#allocation2 + $0x57] sm:$0xff] %vm1742, %v1629
        %1760 = vst.msk [vmem:[#allocation2 + $0x5f] sm:$0x1] %vm1744, %v1631
        %1761 = vst.msk [vmem:[#allocation2 + $0x5f] sm:$0xfe] %vm1740, %v1633
        %1762 = vst.msk [vmem:[#allocation2 + $0x67] sm:$0xff] %vm1742, %v1635
        %1763 = vst.msk [vmem:[#allocation2 + $0x6f] sm:$0x1] %vm1744, %v1637
        %1764 = vst.msk [vmem:[#allocation2 + $0x6f] sm:$0xfe] %vm1740, %v1639
        %1765 = vst.msk [vmem:[#allocation2 + $0x77] sm:$0xff] %vm1742, %v1641
        %1766 = vst.msk [vmem:[#allocation2 + $0x7f] sm:$0x1] %vm1744, %v1643
        %1767 = vst.msk [vmem:[#allocation2 + $0x7f] sm:$0xfe] %vm1740, %v1645
        %1768 = vst.msk [vmem:[#allocation2 + $0x87] sm:$0xff] %vm1742, %v1647
        %1769 = vst.msk [vmem:[#allocation2 + $0x8f] sm:$0x1] %vm1744, %v1649
        %1770 = vst.msk [vmem:[#allocation2 + $0x8f] sm:$0xfe] %vm1740, %v1651
        %1771 = vst.msk [vmem:[#allocation2 + $0x97] sm:$0xff] %vm1742, %v1653
        %1772 = vst.msk [vmem:[#allocation2 + $0x9f] sm:$0x1] %vm1744, %v1655
        %1773 = vst.msk [vmem:[#allocation2 + $0x9f] sm:$0xfe] %vm1740, %v1657
        %1774 = vst.msk [vmem:[#allocation2 + $0xa7] sm:$0xff] %vm1742, %v1659
        %1775 = vst.msk [vmem:[#allocation2 + $0xaf] sm:$0x1] %vm1744, %v1661
        %1776 = vst.msk [vmem:[#allocation2 + $0xaf] sm:$0xfe] %vm1740, %v1663
        %1777 = vst.msk [vmem:[#allocation2 + $0xb7] sm:$0xff] %vm1742, %v1665
        %1778 = vst.msk [vmem:[#allocation2 + $0xbf] sm:$0x1] %vm1744, %v1667
        %1779 = vst.msk [vmem:[#allocation2 + $0xbf] sm:$0xfe] %vm1740, %v1669
        %1780 = vst.msk [vmem:[#allocation2 + $0xc7] sm:$0xff] %vm1742, %v1671
        %1781 = vst.msk [vmem:[#allocation2 + $0xcf] sm:$0x1] %vm1744, %v1673
        %1782 = vst.msk [vmem:[#allocation2 + $0xcf] sm:$0xfe] %vm1740, %v1675
        %1783 = vst.msk [vmem:[#allocation2 + $0xd7] sm:$0xff] %vm1742, %v1677
        %1784 = vst.msk [vmem:[#allocation2 + $0xdf] sm:$0x1] %vm1744, %v1679
        %1785 = vst.msk [vmem:[#allocation2 + $0xdf] sm:$0xfe] %vm1740, %v1681
        %1786 = vst.msk [vmem:[#allocation2 + $0xe7] sm:$0xff] %vm1742, %v1683
        %1787 = vst.msk [vmem:[#allocation2 + $0xef] sm:$0x1] %vm1744, %v1685
        %1788 = vst.msk [vmem:[#allocation2 + $0xef] sm:$0xfe] %vm1740, %v1687
        %1789 = vst.msk [vmem:[#allocation2 + $0xf7] sm:$0xff] %vm1742, %v1689
        %1790 = vst.msk [vmem:[#allocation2 + $0xff] sm:$0x1] %vm1744, %v1691
        %1791 = vrot.lane.b32.xlu0 %v459, 32
        %v1792 = vpop.permute.xlu0 %1791
        %1793 = vrot.lane.b32.xlu0 %v365, 32
        %v1794 = vpop.permute.xlu0 %1793
        %1795 = vrot.lane.b32.xlu0 %v476, 32
        %v1796 = vpop.permute.xlu0 %1795
        %1797 = vrot.lane.b32.xlu0 %v460, 32
        %v1798 = vpop.permute.xlu0 %1797
        %1799 = vrot.lane.b32.xlu0 %v368, 32
        %v1800 = vpop.permute.xlu0 %1799
        %1801 = vrot.lane.b32.xlu0 %v477, 32
        %v1802 = vpop.permute.xlu0 %1801
        %1803 = vrot.lane.b32.xlu0 %v461, 32
        %v1804 = vpop.permute.xlu0 %1803
        %1805 = vrot.lane.b32.xlu0 %v371, 32
        %v1806 = vpop.permute.xlu0 %1805
        %1807 = vrot.lane.b32.xlu0 %v478, 32
        %v1808 = vpop.permute.xlu0 %1807
        %1809 = vrot.lane.b32.xlu0 %v462, 32
        %v1810 = vpop.permute.xlu0 %1809
        %1811 = vrot.lane.b32.xlu0 %v374, 32
        %v1812 = vpop.permute.xlu0 %1811
        %1813 = vrot.lane.b32.xlu0 %v479, 32
        %v1814 = vpop.permute.xlu0 %1813
        %1815 = vrot.lane.b32.xlu0 %v463, 32
        %v1816 = vpop.permute.xlu0 %1815
        %1817 = vrot.lane.b32.xlu0 %v377, 32
        %v1818 = vpop.permute.xlu0 %1817
        %1819 = vrot.lane.b32.xlu0 %v480, 32
        %v1820 = vpop.permute.xlu0 %1819
        %1821 = vrot.lane.b32.xlu0 %v464, 32
        %v1822 = vpop.permute.xlu0 %1821
        %1823 = vrot.lane.b32.xlu0 %v380, 32
        %v1824 = vpop.permute.xlu0 %1823
        %1825 = vrot.lane.b32.xlu0 %v481, 32
        %v1826 = vpop.permute.xlu0 %1825
        %1827 = vrot.lane.b32.xlu0 %v465, 32
        %v1828 = vpop.permute.xlu0 %1827
        %1829 = vrot.lane.b32.xlu0 %v383, 32
        %v1830 = vpop.permute.xlu0 %1829
        %1831 = vrot.lane.b32.xlu0 %v482, 32
        %v1832 = vpop.permute.xlu0 %1831
        %1833 = vrot.lane.b32.xlu0 %v466, 32
        %v1834 = vpop.permute.xlu0 %1833
        %1835 = vrot.lane.b32.xlu0 %v386, 32
        %v1836 = vpop.permute.xlu0 %1835
        %1837 = vrot.lane.b32.xlu0 %v483, 32
        %v1838 = vpop.permute.xlu0 %1837
        %1839 = vrot.lane.b32.xlu0 %v467, 32
        %v1840 = vpop.permute.xlu0 %1839
        %1841 = vrot.lane.b32.xlu0 %v389, 32
        %v1842 = vpop.permute.xlu0 %1841
        %1843 = vrot.lane.b32.xlu0 %v484, 32
        %v1844 = vpop.permute.xlu0 %1843
        %1845 = vrot.lane.b32.xlu0 %v468, 32
        %v1846 = vpop.permute.xlu0 %1845
        %1847 = vrot.lane.b32.xlu0 %v392, 32
        %v1848 = vpop.permute.xlu0 %1847
        %1849 = vrot.lane.b32.xlu0 %v485, 32
        %v1850 = vpop.permute.xlu0 %1849
        %1851 = vrot.lane.b32.xlu0 %v469, 32
        %v1852 = vpop.permute.xlu0 %1851
        %1853 = vrot.lane.b32.xlu0 %v395, 32
        %v1854 = vpop.permute.xlu0 %1853
        %1855 = vrot.lane.b32.xlu0 %v486, 32
        %v1856 = vpop.permute.xlu0 %1855
        %1857 = vrot.lane.b32.xlu0 %v470, 32
        %v1858 = vpop.permute.xlu0 %1857
        %1859 = vrot.lane.b32.xlu0 %v398, 32
        %v1860 = vpop.permute.xlu0 %1859
        %1861 = vrot.lane.b32.xlu0 %v487, 32
        %v1862 = vpop.permute.xlu0 %1861
        %1863 = vrot.lane.b32.xlu0 %v471, 32
        %v1864 = vpop.permute.xlu0 %1863
        %1865 = vrot.lane.b32.xlu0 %v401, 32
        %v1866 = vpop.permute.xlu0 %1865
        %1867 = vrot.lane.b32.xlu0 %v488, 32
        %v1868 = vpop.permute.xlu0 %1867
        %1869 = vrot.lane.b32.xlu0 %v472, 32
        %v1870 = vpop.permute.xlu0 %1869
        %1871 = vrot.lane.b32.xlu0 %v404, 32
        %v1872 = vpop.permute.xlu0 %1871
        %1873 = vrot.lane.b32.xlu0 %v489, 32
        %v1874 = vpop.permute.xlu0 %1873
        %1875 = vrot.lane.b32.xlu0 %v473, 32
        %v1876 = vpop.permute.xlu0 %1875
        %1877 = vrot.lane.b32.xlu0 %v407, 32
        %v1878 = vpop.permute.xlu0 %1877
        %1879 = vrot.lane.b32.xlu0 %v490, 32
        %v1880 = vpop.permute.xlu0 %1879
        %1881 = vrot.lane.b32.xlu0 %v457, 32
        %v1882 = vpop.permute.xlu0 %1881
        %1883 = vrot.lane.b32.xlu0 %v359, 32
        %v1884 = vpop.permute.xlu0 %1883
        %1885 = vrot.lane.b32.xlu0 %v474, 32
        %v1886 = vpop.permute.xlu0 %1885
        %vm1935 = vcmask 294146
        %1936 = vst.msk [vmem:[#allocation2 - $0x2] sm:$0xfc] %vm1935, %v1792
        %vm1937 = vcmask 294144
        %1938 = vst.msk [vmem:[#allocation2 + $0x6] sm:$0xff] %vm1937, %v1794
        %vm1939 = vcmask 288000
        %1940 = vst.msk [vmem:[#allocation2 + $0xe] sm:$0x3] %vm1939, %v1796
        %1941 = vst.msk [vmem:[#allocation2 + $0xe] sm:$0xfc] %vm1935, %v1798
        %1942 = vst.msk [vmem:[#allocation2 + $0x16] sm:$0xff] %vm1937, %v1800
        %1943 = vst.msk [vmem:[#allocation2 + $0x1e] sm:$0x3] %vm1939, %v1802
        %1944 = vst.msk [vmem:[#allocation2 + $0x1e] sm:$0xfc] %vm1935, %v1804
        %1945 = vst.msk [vmem:[#allocation2 + $0x26] sm:$0xff] %vm1937, %v1806
        %1946 = vst.msk [vmem:[#allocation2 + $0x2e] sm:$0x3] %vm1939, %v1808
        %1947 = vst.msk [vmem:[#allocation2 + $0x2e] sm:$0xfc] %vm1935, %v1810
        %1948 = vst.msk [vmem:[#allocation2 + $0x36] sm:$0xff] %vm1937, %v1812
        %1949 = vst.msk [vmem:[#allocation2 + $0x3e] sm:$0x3] %vm1939, %v1814
        %1950 = vst.msk [vmem:[#allocation2 + $0x3e] sm:$0xfc] %vm1935, %v1816
        %1951 = vst.msk [vmem:[#allocation2 + $0x46] sm:$0xff] %vm1937, %v1818
        %1952 = vst.msk [vmem:[#allocation2 + $0x4e] sm:$0x3] %vm1939, %v1820
        %1953 = vst.msk [vmem:[#allocation2 + $0x4e] sm:$0xfc] %vm1935, %v1822
        %1954 = vst.msk [vmem:[#allocation2 + $0x56] sm:$0xff] %vm1937, %v1824
        %1955 = vst.msk [vmem:[#allocation2 + $0x5e] sm:$0x3] %vm1939, %v1826
        %1956 = vst.msk [vmem:[#allocation2 + $0x5e] sm:$0xfc] %vm1935, %v1828
        %1957 = vst.msk [vmem:[#allocation2 + $0x66] sm:$0xff] %vm1937, %v1830
        %1958 = vst.msk [vmem:[#allocation2 + $0x6e] sm:$0x3] %vm1939, %v1832
        %1959 = vst.msk [vmem:[#allocation2 + $0x6e] sm:$0xfc] %vm1935, %v1834
        %1960 = vst.msk [vmem:[#allocation2 + $0x76] sm:$0xff] %vm1937, %v1836
        %1961 = vst.msk [vmem:[#allocation2 + $0x7e] sm:$0x3] %vm1939, %v1838
        %1962 = vst.msk [vmem:[#allocation2 + $0x7e] sm:$0xfc] %vm1935, %v1840
        %1963 = vst.msk [vmem:[#allocation2 + $0x86] sm:$0xff] %vm1937, %v1842
        %1964 = vst.msk [vmem:[#allocation2 + $0x8e] sm:$0x3] %vm1939, %v1844
        %1965 = vst.msk [vmem:[#allocation2 + $0x8e] sm:$0xfc] %vm1935, %v1846
        %1966 = vst.msk [vmem:[#allocation2 + $0x96] sm:$0xff] %vm1937, %v1848
        %1967 = vst.msk [vmem:[#allocation2 + $0x9e] sm:$0x3] %vm1939, %v1850
        %1968 = vst.msk [vmem:[#allocation2 + $0x9e] sm:$0xfc] %vm1935, %v1852
        %1969 = vst.msk [vmem:[#allocation2 + $0xa6] sm:$0xff] %vm1937, %v1854
        %1970 = vst.msk [vmem:[#allocation2 + $0xae] sm:$0x3] %vm1939, %v1856
        %1971 = vst.msk [vmem:[#allocation2 + $0xae] sm:$0xfc] %vm1935, %v1858
        %1972 = vst.msk [vmem:[#allocation2 + $0xb6] sm:$0xff] %vm1937, %v1860
        %1973 = vst.msk [vmem:[#allocation2 + $0xbe] sm:$0x3] %vm1939, %v1862
        %1974 = vst.msk [vmem:[#allocation2 + $0xbe] sm:$0xfc] %vm1935, %v1864
        %1975 = vst.msk [vmem:[#allocation2 + $0xc6] sm:$0xff] %vm1937, %v1866
        %1976 = vst.msk [vmem:[#allocation2 + $0xce] sm:$0x3] %vm1939, %v1868
        %1977 = vst.msk [vmem:[#allocation2 + $0xce] sm:$0xfc] %vm1935, %v1870
        %1978 = vst.msk [vmem:[#allocation2 + $0xd6] sm:$0xff] %vm1937, %v1872
        %1979 = vst.msk [vmem:[#allocation2 + $0xde] sm:$0x3] %vm1939, %v1874
        %1980 = vst.msk [vmem:[#allocation2 + $0xde] sm:$0xfc] %vm1935, %v1876
        %1981 = vst.msk [vmem:[#allocation2 + $0xe6] sm:$0xff] %vm1937, %v1878
        %1982 = vst.msk [vmem:[#allocation2 + $0xee] sm:$0x3] %vm1939, %v1880
        %1983 = vst.msk [vmem:[#allocation2 + $0xee] sm:$0xfc] %vm1935, %v1882
        %1984 = vst.msk [vmem:[#allocation2 + $0xf6] sm:$0xff] %vm1937, %v1884
        %1985 = vst.msk [vmem:[#allocation2 + $0xfe] sm:$0x3] %vm1939, %v1886
        %v1986 = vld [vmem:[#allocation2] sm:$0xff]
        %v1987 = vld [vmem:[#allocation2 + $0x8] sm:$0xff]
        %v1988 = vld [vmem:[#allocation2 + $0x10] sm:$0xff]
        %v1989 = vld [vmem:[#allocation2 + $0x18] sm:$0xff]
        %v1990 = vld [vmem:[#allocation2 + $0x20] sm:$0xff]
        %v1991 = vld [vmem:[#allocation2 + $0x28] sm:$0xff]
        %v1992 = vld [vmem:[#allocation2 + $0x30] sm:$0xff]
        %v1993 = vld [vmem:[#allocation2 + $0x38] sm:$0xff]
        %v1994 = vld [vmem:[#allocation2 + $0x40] sm:$0xff]
        %v1995 = vld [vmem:[#allocation2 + $0x48] sm:$0xff]
        %v1996 = vld [vmem:[#allocation2 + $0x50] sm:$0xff]
        %v1997 = vld [vmem:[#allocation2 + $0x58] sm:$0xff]
        %v1998 = vld [vmem:[#allocation2 + $0x60] sm:$0xff]
        %v1999 = vld [vmem:[#allocation2 + $0x68] sm:$0xff]
        %v2000 = vld [vmem:[#allocation2 + $0x70] sm:$0xff]
        %v2001 = vld [vmem:[#allocation2 + $0x78] sm:$0xff]
        %v2002 = vld [vmem:[#allocation2 + $0x80] sm:$0xff]
        %v2003 = vld [vmem:[#allocation2 + $0x88] sm:$0xff]
        %v2004 = vld [vmem:[#allocation2 + $0x90] sm:$0xff]
        %v2005 = vld [vmem:[#allocation2 + $0x98] sm:$0xff]
        %v2006 = vld [vmem:[#allocation2 + $0xa0] sm:$0xff]
        %v2007 = vld [vmem:[#allocation2 + $0xa8] sm:$0xff]
        %v2008 = vld [vmem:[#allocation2 + $0xb0] sm:$0xff]
        %v2009 = vld [vmem:[#allocation2 + $0xb8] sm:$0xff]
        %v2010 = vld [vmem:[#allocation2 + $0xc0] sm:$0xff]
        %v2011 = vld [vmem:[#allocation2 + $0xc8] sm:$0xff]
        %v2012 = vld [vmem:[#allocation2 + $0xd0] sm:$0xff]
        %v2013 = vld [vmem:[#allocation2 + $0xd8] sm:$0xff]
        %v2014 = vld [vmem:[#allocation2 + $0xe0] sm:$0xff]
        %v2015 = vld [vmem:[#allocation2 + $0xe8] sm:$0xff]
        %v2016 = vld [vmem:[#allocation2 + $0xf0] sm:$0xff]
        %v2017 = vld [vmem:[#allocation2 + $0xf8] sm:$0xff]
        %v2018 = vld [vmem:[%s1] sm:$0xff]
        %v2019 = vld [vmem:[%s1 + $0x8] sm:$0xff]
        %v2020 = vld [vmem:[%s1 + $0x10] sm:$0xff]
        %v2021 = vld [vmem:[%s1 + $0x18] sm:$0xff]
        %v2022 = vld [vmem:[%s1 + $0x20] sm:$0xf]
        %vm2023 = vcmask 293888
        %v2025 = vsel %vm2023, %v1986, 0
        %v2028 = vsel %vm2023, %v1987, 0
        %v2031 = vsel %vm2023, %v1988, 0
        %v2034 = vsel %vm2023, %v1989, 0
        %v2037 = vsel %vm2023, %v1990, 0
        %v2040 = vsel %vm2023, %v1991, 0
        %v2043 = vsel %vm2023, %v1992, 0
        %v2046 = vsel %vm2023, %v1993, 0
        %v2049 = vsel %vm2023, %v1994, 0
        %v2052 = vsel %vm2023, %v1995, 0
        %v2055 = vsel %vm2023, %v1996, 0
        %v2058 = vsel %vm2023, %v1997, 0
        %v2061 = vsel %vm2023, %v1998, 0
        %v2064 = vsel %vm2023, %v1999, 0
        %v2067 = vsel %vm2023, %v2000, 0
        %v2070 = vsel %vm2023, %v2001, 0
        %v2073 = vsel %vm2023, %v2002, 0
        %v2076 = vsel %vm2023, %v2003, 0
        %v2079 = vsel %vm2023, %v2004, 0
        %v2082 = vsel %vm2023, %v2005, 0
        %v2085 = vsel %vm2023, %v2006, 0
        %v2088 = vsel %vm2023, %v2007, 0
        %v2091 = vsel %vm2023, %v2008, 0
        %v2094 = vsel %vm2023, %v2009, 0
        %v2097 = vsel %vm2023, %v2010, 0
        %v2100 = vsel %vm2023, %v2011, 0
        %v2103 = vsel %vm2023, %v2012, 0
        %v2106 = vsel %vm2023, %v2013, 0
        %v2109 = vsel %vm2023, %v2014, 0
        %v2112 = vsel %vm2023, %v2015, 0
        %v2115 = vsel %vm2023, %v2016, 0
        %v2118 = vsel %vm2023, %v2017, 0
        %vm2120 = vcmask 1043456
        %v2122 = vsel %vm2120, %v2022, 0
        %2124 = vmatprep.subr.mxu0 0.0
        %2125 = vmatpush1.msra.mxu0 %v2018
        %2126 = vmatprep.subr.mxu0 0.0
        %2127 = vmatpush1.msra.mxu0 %v2019
        %2128 = vmatprep.subr.mxu0 0.0
        %2129 = vmatpush1.msra.mxu0 %v2020
        %2130 = vmatprep.subr.mxu0 0.0
        %2131 = vmatpush1.msra.mxu0 %v2021
        %2132 = vmatprep.subr.mxu0 0.0
        %2133 = vmatpush1.msra.mxu0 %v2122
        %2134 = vmatprep.subr.mxu0 0.0
        %2135 = vmatpush1.msra.mxu0 0.0
        %2136 = vmatprep.subr.mxu0 0.0
        %2137 = vmatpush1.msra.mxu0 0.0
        %2138 = vmatprep.subr.mxu0 0.0
        %2139 = vmatpush1.msra.mxu0 0.0
        %2140 = vmatprep.subr.mxu0 0.0
        %2141 = vmatpush1.msra.mxu0 0.0
        %2142 = vmatprep.subr.mxu0 0.0
        %2143 = vmatpush1.msra.mxu0 0.0
        %2144 = vmatprep.subr.mxu0 0.0
        %2145 = vmatpush1.msra.mxu0 0.0
        %2146 = vmatprep.subr.mxu0 0.0
        %2147 = vmatpush1.msra.mxu0 0.0
        %2148 = vmatprep.subr.mxu0 0.0
        %2149 = vmatpush1.msra.mxu0 0.0
        %2150 = vmatprep.subr.mxu0 0.0
        %2151 = vmatpush1.msra.mxu0 0.0
        %2152 = vmatprep.subr.mxu0 0.0
        %2153 = vmatpush1.msra.mxu0 0.0
        %2154 = vmatprep.subr.mxu0 0.0
        %2155 = vmatpush1.msra.mxu0 0.0
        %2156 = vmatprep.subr.mxu0 0.0
        %2157 = vmatpush1.msra.mxu0 0.0
        %2158 = vmatprep.subr.mxu0 0.0
        %2159 = vmatpush1.msra.mxu0 0.0
        %2160 = vmatprep.subr.mxu0 0.0
        %2161 = vmatpush1.msra.mxu0 0.0
        %2162 = vmatprep.subr.mxu0 0.0
        %2163 = vmatpush1.msra.mxu0 0.0
        %2164 = vmatprep.subr.mxu0 0.0
        %2165 = vmatpush1.msra.mxu0 0.0
        %2166 = vmatprep.subr.mxu0 0.0
        %2167 = vmatpush1.msra.mxu0 0.0
        %2168 = vmatprep.subr.mxu0 0.0
        %2169 = vmatpush1.msra.mxu0 0.0
        %2170 = vmatprep.subr.mxu0 0.0
        %2171 = vmatpush1.msra.mxu0 0.0
        %2172 = vmatprep.subr.mxu0 0.0
        %2173 = vmatpush1.msra.mxu0 0.0
        %2174 = vmatprep.subr.mxu0 0.0
        %2175 = vmatpush1.msra.mxu0 0.0
        %2176 = vmatprep.subr.mxu0 0.0
        %2177 = vmatpush1.msra.mxu0 0.0
        %2178 = vmatprep.subr.mxu0 0.0
        %2179 = vmatpush1.msra.mxu0 0.0
        %2180 = vmatprep.subr.mxu0 0.0
        %2181 = vmatpush1.msra.mxu0 0.0
        %2182 = vmatprep.subr.mxu0 0.0
        %2183 = vmatpush1.msra.mxu0 0.0
        %2184 = vmatprep.subr.mxu0 0.0
        %2185 = vmatpush1.msra.mxu0 0.0
        %2186 = vmatprep.subr.mxu0 0.0
        %2187 = vmatpush1.msra.mxu0 0.0
        %2188 = vmatprep.mubr.f32.mxu0 0.0
        %2189 = vmatmul.mubr.f32.gmra.mrb[0].mxu0 %v2025
        %v2190 = vpop.f32.mrb[0].mxu0
        %v2191 = vadd.f32 0.0, %v2190
        %v2192 = vpop.f32.mrb[0].mxu0
        %2193 = vmatprep.mubr.f32.mxu0 0.0
        %2194 = vmatmul.mubr.f32.gmra.mrb[0].mxu0 %v2028
        %v2195 = vpop.f32.mrb[0].mxu0
        %v2196 = vadd.f32 0.0, %v2195
        %v2197 = vpop.f32.mrb[0].mxu0
        %2198 = vmatprep.mubr.f32.mxu0 0.0
        %2199 = vmatmul.mubr.f32.gmra.mrb[0].mxu0 %v2031
        %v2200 = vpop.f32.mrb[0].mxu0
        %v2201 = vadd.f32 0.0, %v2200
        %v2202 = vpop.f32.mrb[0].mxu0
        %2203 = vmatprep.mubr.f32.mxu0 0.0
        %2204 = vmatmul.mubr.f32.gmra.mrb[0].mxu0 %v2034
        %v2205 = vpop.f32.mrb[0].mxu0
        %v2206 = vadd.f32 0.0, %v2205
        %v2207 = vpop.f32.mrb[0].mxu0
        %2208 = vmatprep.mubr.f32.mxu0 0.0
        %2209 = vmatmul.mubr.f32.gmra.mrb[0].mxu0 %v2037
        %v2210 = vpop.f32.mrb[0].mxu0
        %v2211 = vadd.f32 0.0, %v2210
        %v2212 = vpop.f32.mrb[0].mxu0
        %2213 = vmatprep.mubr.f32.mxu0 0.0
        %2214 = vmatmul.mubr.f32.gmra.mrb[0].mxu0 %v2040
        %v2215 = vpop.f32.mrb[0].mxu0
        %v2216 = vadd.f32 0.0, %v2215
        %v2217 = vpop.f32.mrb[0].mxu0
        %2218 = vmatprep.mubr.f32.mxu0 0.0
        %2219 = vmatmul.mubr.f32.gmra.mrb[0].mxu0 %v2043
        %v2220 = vpop.f32.mrb[0].mxu0
        %v2221 = vadd.f32 0.0, %v2220
        %v2222 = vpop.f32.mrb[0].mxu0
        %2223 = vmatprep.mubr.f32.mxu0 0.0
        %2224 = vmatmul.mubr.f32.gmra.mrb[0].mxu0 %v2046
        %v2225 = vpop.f32.mrb[0].mxu0
        %v2226 = vadd.f32 0.0, %v2225
        %v2227 = vpop.f32.mrb[0].mxu0
        %2228 = vmatprep.mubr.f32.mxu0 0.0
        %2229 = vmatmul.mubr.f32.gmra.mrb[0].mxu0 %v2049
        %v2230 = vpop.f32.mrb[0].mxu0
        %v2231 = vadd.f32 0.0, %v2230
        %v2232 = vpop.f32.mrb[0].mxu0
        %2233 = vmatprep.mubr.f32.mxu0 0.0
        %2234 = vmatmul.mubr.f32.gmra.mrb[0].mxu0 %v2052
        %v2235 = vpop.f32.mrb[0].mxu0
        %v2236 = vadd.f32 0.0, %v2235
        %v2237 = vpop.f32.mrb[0].mxu0
        %2238 = vmatprep.mubr.f32.mxu0 0.0
        %2239 = vmatmul.mubr.f32.gmra.mrb[0].mxu0 %v2055
        %v2240 = vpop.f32.mrb[0].mxu0
        %v2241 = vadd.f32 0.0, %v2240
        %v2242 = vpop.f32.mrb[0].mxu0
        %2243 = vmatprep.mubr.f32.mxu0 0.0
        %2244 = vmatmul.mubr.f32.gmra.mrb[0].mxu0 %v2058
        %v2245 = vpop.f32.mrb[0].mxu0
        %v2246 = vadd.f32 0.0, %v2245
        %v2247 = vpop.f32.mrb[0].mxu0
        %2248 = vmatprep.mubr.f32.mxu0 0.0
        %2249 = vmatmul.mubr.f32.gmra.mrb[0].mxu0 %v2061
        %v2250 = vpop.f32.mrb[0].mxu0
        %v2251 = vadd.f32 0.0, %v2250
        %v2252 = vpop.f32.mrb[0].mxu0
        %2253 = vmatprep.mubr.f32.mxu0 0.0
        %2254 = vmatmul.mubr.f32.gmra.mrb[0].mxu0 %v2064
        %v2255 = vpop.f32.mrb[0].mxu0
        %v2256 = vadd.f32 0.0, %v2255
        %v2257 = vpop.f32.mrb[0].mxu0
        %2258 = vmatprep.mubr.f32.mxu0 0.0
        %2259 = vmatmul.mubr.f32.gmra.mrb[0].mxu0 %v2067
        %v2260 = vpop.f32.mrb[0].mxu0
        %v2261 = vadd.f32 0.0, %v2260
        %v2262 = vpop.f32.mrb[0].mxu0
        %2263 = vmatprep.mubr.f32.mxu0 0.0
        %2264 = vmatmul.mubr.f32.gmra.mrb[0].mxu0 %v2070
        %v2265 = vpop.f32.mrb[0].mxu0
        %v2266 = vadd.f32 0.0, %v2265
        %v2267 = vpop.f32.mrb[0].mxu0
        %2268 = vmatprep.mubr.f32.mxu0 0.0
        %2269 = vmatmul.mubr.f32.gmra.mrb[0].mxu0 %v2073
        %v2270 = vpop.f32.mrb[0].mxu0
        %v2271 = vadd.f32 0.0, %v2270
        %v2272 = vpop.f32.mrb[0].mxu0
        %2273 = vmatprep.mubr.f32.mxu0 0.0
        %2274 = vmatmul.mubr.f32.gmra.mrb[0].mxu0 %v2076
        %v2275 = vpop.f32.mrb[0].mxu0
        %v2276 = vadd.f32 0.0, %v2275
        %v2277 = vpop.f32.mrb[0].mxu0
        %2278 = vmatprep.mubr.f32.mxu0 0.0
        %2279 = vmatmul.mubr.f32.gmra.mrb[0].mxu0 %v2079
        %v2280 = vpop.f32.mrb[0].mxu0
        %v2281 = vadd.f32 0.0, %v2280
        %v2282 = vpop.f32.mrb[0].mxu0
        %2283 = vmatprep.mubr.f32.mxu0 0.0
        %2284 = vmatmul.mubr.f32.gmra.mrb[0].mxu0 %v2082
        %v2285 = vpop.f32.mrb[0].mxu0
        %v2286 = vadd.f32 0.0, %v2285
        %v2287 = vpop.f32.mrb[0].mxu0
        %2288 = vmatprep.mubr.f32.mxu0 0.0
        %2289 = vmatmul.mubr.f32.gmra.mrb[0].mxu0 %v2085
        %v2290 = vpop.f32.mrb[0].mxu0
        %v2291 = vadd.f32 0.0, %v2290
        %v2292 = vpop.f32.mrb[0].mxu0
        %2293 = vmatprep.mubr.f32.mxu0 0.0
        %2294 = vmatmul.mubr.f32.gmra.mrb[0].mxu0 %v2088
        %v2295 = vpop.f32.mrb[0].mxu0
        %v2296 = vadd.f32 0.0, %v2295
        %v2297 = vpop.f32.mrb[0].mxu0
        %2298 = vmatprep.mubr.f32.mxu0 0.0
        %2299 = vmatmul.mubr.f32.gmra.mrb[0].mxu0 %v2091
        %v2300 = vpop.f32.mrb[0].mxu0
        %v2301 = vadd.f32 0.0, %v2300
        %v2302 = vpop.f32.mrb[0].mxu0
        %2303 = vmatprep.mubr.f32.mxu0 0.0
        %2304 = vmatmul.mubr.f32.gmra.mrb[0].mxu0 %v2094
        %v2305 = vpop.f32.mrb[0].mxu0
        %v2306 = vadd.f32 0.0, %v2305
        %v2307 = vpop.f32.mrb[0].mxu0
        %2308 = vmatprep.mubr.f32.mxu0 0.0
        %2309 = vmatmul.mubr.f32.gmra.mrb[0].mxu0 %v2097
        %v2310 = vpop.f32.mrb[0].mxu0
        %v2311 = vadd.f32 0.0, %v2310
        %v2312 = vpop.f32.mrb[0].mxu0
        %2313 = vmatprep.mubr.f32.mxu0 0.0
        %2314 = vmatmul.mubr.f32.gmra.mrb[0].mxu0 %v2100
        %v2315 = vpop.f32.mrb[0].mxu0
        %v2316 = vadd.f32 0.0, %v2315
        %v2317 = vpop.f32.mrb[0].mxu0
        %2318 = vmatprep.mubr.f32.mxu0 0.0
        %2319 = vmatmul.mubr.f32.gmra.mrb[0].mxu0 %v2103
        %v2320 = vpop.f32.mrb[0].mxu0
        %v2321 = vadd.f32 0.0, %v2320
        %v2322 = vpop.f32.mrb[0].mxu0
        %2323 = vmatprep.mubr.f32.mxu0 0.0
        %2324 = vmatmul.mubr.f32.gmra.mrb[0].mxu0 %v2106
        %v2325 = vpop.f32.mrb[0].mxu0
        %v2326 = vadd.f32 0.0, %v2325
        %v2327 = vpop.f32.mrb[0].mxu0
        %2328 = vmatprep.mubr.f32.mxu0 0.0
        %2329 = vmatmul.mubr.f32.gmra.mrb[0].mxu0 %v2109
        %v2330 = vpop.f32.mrb[0].mxu0
        %v2331 = vadd.f32 0.0, %v2330
        %v2332 = vpop.f32.mrb[0].mxu0
        %2333 = vmatprep.mubr.f32.mxu0 0.0
        %2334 = vmatmul.mubr.f32.gmra.mrb[0].mxu0 %v2112
        %v2335 = vpop.f32.mrb[0].mxu0
        %v2336 = vadd.f32 0.0, %v2335
        %v2337 = vpop.f32.mrb[0].mxu0
        %2338 = vmatprep.mubr.f32.mxu0 0.0
        %2339 = vmatmul.mubr.f32.gmra.mrb[0].mxu0 %v2115
        %v2340 = vpop.f32.mrb[0].mxu0
        %v2341 = vadd.f32 0.0, %v2340
        %v2342 = vpop.f32.mrb[0].mxu0
        %2343 = vmatprep.mubr.f32.mxu0 0.0
        %2344 = vmatmul.mubr.f32.gmra.mrb[0].mxu0 %v2118
        %v2345 = vpop.f32.mrb[0].mxu0
        %v2346 = vadd.f32 0.0, %v2345
        %v2347 = vpop.f32.mrb[0].mxu0
        %2348 = vdwg.mxu0
        %v2349 = vld [vmem:[%s2] sm:$0x1]
        %v2351 = vlaneseq
        %v2352 = vshrl.u32 %v2351, 7
        %v2353 = vsub.s32 0, %v2352
        %v2354 = vrot.slane %v2349, %v2353
        %v2356 = vmul.f32 %v2191, %v2354
        %v2357 = vmul.f32 %v2196, %v2354
        %v2358 = vmul.f32 %v2201, %v2354
        %v2359 = vmul.f32 %v2206, %v2354
        %v2360 = vmul.f32 %v2211, %v2354
        %v2361 = vmul.f32 %v2216, %v2354
        %v2362 = vmul.f32 %v2221, %v2354
        %v2363 = vmul.f32 %v2226, %v2354
        %v2364 = vmul.f32 %v2231, %v2354
        %v2365 = vmul.f32 %v2236, %v2354
        %v2366 = vmul.f32 %v2241, %v2354
        %v2367 = vmul.f32 %v2246, %v2354
        %v2368 = vmul.f32 %v2251, %v2354
        %v2369 = vmul.f32 %v2256, %v2354
        %v2370 = vmul.f32 %v2261, %v2354
        %v2371 = vmul.f32 %v2266, %v2354
        %v2372 = vmul.f32 %v2271, %v2354
        %v2373 = vmul.f32 %v2276, %v2354
        %v2374 = vmul.f32 %v2281, %v2354
        %v2375 = vmul.f32 %v2286, %v2354
        %v2376 = vmul.f32 %v2291, %v2354
        %v2377 = vmul.f32 %v2296, %v2354
        %v2378 = vmul.f32 %v2301, %v2354
        %v2379 = vmul.f32 %v2306, %v2354
        %v2380 = vmul.f32 %v2311, %v2354
        %v2381 = vmul.f32 %v2316, %v2354
        %v2382 = vmul.f32 %v2321, %v2354
        %v2383 = vmul.f32 %v2326, %v2354
        %v2384 = vmul.f32 %v2331, %v2354
        %v2385 = vmul.f32 %v2336, %v2354
        %v2386 = vmul.f32 %v2341, %v2354
        %v2387 = vmul.f32 %v2346, %v2354
        %v2388 = vld [vmem:[%s3] sm:$0x1]
        %v2390 = vlaneseq
        %v2391 = vshrl.u32 %v2390, 7
        %v2392 = vsub.s32 0, %v2391
        %v2393 = vrot.slane %v2388, %v2392
        %v2395 = vadd.f32 %v2356, %v2393
        %v2396 = vadd.f32 %v2357, %v2393
        %v2397 = vadd.f32 %v2358, %v2393
        %v2398 = vadd.f32 %v2359, %v2393
        %v2399 = vadd.f32 %v2360, %v2393
        %v2400 = vadd.f32 %v2361, %v2393
        %v2401 = vadd.f32 %v2362, %v2393
        %v2402 = vadd.f32 %v2363, %v2393
        %v2403 = vadd.f32 %v2364, %v2393
        %v2404 = vadd.f32 %v2365, %v2393
        %v2405 = vadd.f32 %v2366, %v2393
        %v2406 = vadd.f32 %v2367, %v2393
        %v2407 = vadd.f32 %v2368, %v2393
        %v2408 = vadd.f32 %v2369, %v2393
        %v2409 = vadd.f32 %v2370, %v2393
        %v2410 = vadd.f32 %v2371, %v2393
        %v2411 = vadd.f32 %v2372, %v2393
        %v2412 = vadd.f32 %v2373, %v2393
        %v2413 = vadd.f32 %v2374, %v2393
        %v2414 = vadd.f32 %v2375, %v2393
        %v2415 = vadd.f32 %v2376, %v2393
        %v2416 = vadd.f32 %v2377, %v2393
        %v2417 = vadd.f32 %v2378, %v2393
        %v2418 = vadd.f32 %v2379, %v2393
        %v2419 = vadd.f32 %v2380, %v2393
        %v2420 = vadd.f32 %v2381, %v2393
        %v2421 = vadd.f32 %v2382, %v2393
        %v2422 = vadd.f32 %v2383, %v2393
        %v2423 = vadd.f32 %v2384, %v2393
        %v2424 = vadd.f32 %v2385, %v2393
        %v2425 = vadd.f32 %v2386, %v2393
        %v2426 = vadd.f32 %v2387, %v2393
        %v2427 = vmax.f32 %v2395, 0.0
        %v2428 = vmax.f32 %v2396, 0.0
        %v2429 = vmax.f32 %v2397, 0.0
        %v2430 = vmax.f32 %v2398, 0.0
        %v2431 = vmax.f32 %v2399, 0.0
        %v2432 = vmax.f32 %v2400, 0.0
        %v2433 = vmax.f32 %v2401, 0.0
        %v2434 = vmax.f32 %v2402, 0.0
        %v2435 = vmax.f32 %v2403, 0.0
        %v2436 = vmax.f32 %v2404, 0.0
        %v2437 = vmax.f32 %v2405, 0.0
        %v2438 = vmax.f32 %v2406, 0.0
        %v2439 = vmax.f32 %v2407, 0.0
        %v2440 = vmax.f32 %v2408, 0.0
        %v2441 = vmax.f32 %v2409, 0.0
        %v2442 = vmax.f32 %v2410, 0.0
        %v2443 = vmax.f32 %v2411, 0.0
        %v2444 = vmax.f32 %v2412, 0.0
        %v2445 = vmax.f32 %v2413, 0.0
        %v2446 = vmax.f32 %v2414, 0.0
        %v2447 = vmax.f32 %v2415, 0.0
        %v2448 = vmax.f32 %v2416, 0.0
        %v2449 = vmax.f32 %v2417, 0.0
        %v2450 = vmax.f32 %v2418, 0.0
        %v2451 = vmax.f32 %v2419, 0.0
        %v2452 = vmax.f32 %v2420, 0.0
        %v2453 = vmax.f32 %v2421, 0.0
        %v2454 = vmax.f32 %v2422, 0.0
        %v2455 = vmax.f32 %v2423, 0.0
        %v2456 = vmax.f32 %v2424, 0.0
        %v2457 = vmax.f32 %v2425, 0.0
        %v2458 = vmax.f32 %v2426, 0.0
        %v2491 = vrot.slane %v2427, 7
        %v2492 = vrot.slane %v2428, 7
        %v2493 = vsel %vm357, %v2491, %v2492
        %v2494 = vrot.slane %v2429, 7
        %v2495 = vrot.slane %v2430, 7
        %v2496 = vsel %vm357, %v2494, %v2495
        %v2497 = vrot.slane %v2431, 7
        %v2498 = vrot.slane %v2432, 7
        %v2499 = vsel %vm357, %v2497, %v2498
        %v2500 = vrot.slane %v2433, 7
        %v2501 = vrot.slane %v2434, 7
        %v2502 = vsel %vm357, %v2500, %v2501
        %v2503 = vrot.slane %v2435, 7
        %v2504 = vrot.slane %v2436, 7
        %v2505 = vsel %vm357, %v2503, %v2504
        %v2506 = vrot.slane %v2437, 7
        %v2507 = vrot.slane %v2438, 7
        %v2508 = vsel %vm357, %v2506, %v2507
        %v2509 = vrot.slane %v2439, 7
        %v2510 = vrot.slane %v2440, 7
        %v2511 = vsel %vm357, %v2509, %v2510
        %v2512 = vrot.slane %v2441, 7
        %v2513 = vrot.slane %v2442, 7
        %v2514 = vsel %vm357, %v2512, %v2513
        %v2515 = vrot.slane %v2443, 7
        %v2516 = vrot.slane %v2444, 7
        %v2517 = vsel %vm357, %v2515, %v2516
        %v2518 = vrot.slane %v2445, 7
        %v2519 = vrot.slane %v2446, 7
        %v2520 = vsel %vm357, %v2518, %v2519
        %v2521 = vrot.slane %v2447, 7
        %v2522 = vrot.slane %v2448, 7
        %v2523 = vsel %vm357, %v2521, %v2522
        %v2524 = vrot.slane %v2449, 7
        %v2525 = vrot.slane %v2450, 7
        %v2526 = vsel %vm357, %v2524, %v2525
        %v2527 = vrot.slane %v2451, 7
        %v2528 = vrot.slane %v2452, 7
        %v2529 = vsel %vm357, %v2527, %v2528
        %v2530 = vrot.slane %v2453, 7
        %v2531 = vrot.slane %v2454, 7
        %v2532 = vsel %vm357, %v2530, %v2531
        %v2533 = vrot.slane %v2455, 7
        %v2534 = vrot.slane %v2456, 7
        %v2535 = vsel %vm357, %v2533, %v2534
        %v2536 = vrot.slane %v2457, 7
        %v2537 = vrot.slane %v2458, 7
        %v2538 = vsel %vm357, %v2536, %v2537
        %v2587 = vsel %vm357, 0.0, %v2491
        %v2588 = vsel %vm357, 0.0, %v2494
        %v2589 = vsel %vm357, 0.0, %v2497
        %v2590 = vsel %vm357, 0.0, %v2500
        %v2591 = vsel %vm357, 0.0, %v2503
        %v2592 = vsel %vm357, 0.0, %v2506
        %v2593 = vsel %vm357, 0.0, %v2509
        %v2594 = vsel %vm357, 0.0, %v2512
        %v2595 = vsel %vm357, 0.0, %v2515
        %v2596 = vsel %vm357, 0.0, %v2518
        %v2597 = vsel %vm357, 0.0, %v2521
        %v2598 = vsel %vm357, 0.0, %v2524
        %v2599 = vsel %vm357, 0.0, %v2527
        %v2600 = vsel %vm357, 0.0, %v2530
        %v2601 = vsel %vm357, 0.0, %v2533
        %v2602 = vsel %vm357, 0.0, %v2536
        %v2603 = vsel %vm357, %v2492, 0.0
        %v2604 = vsel %vm357, %v2495, 0.0
        %v2605 = vsel %vm357, %v2498, 0.0
        %v2606 = vsel %vm357, %v2501, 0.0
        %v2607 = vsel %vm357, %v2504, 0.0
        %v2608 = vsel %vm357, %v2507, 0.0
        %v2609 = vsel %vm357, %v2510, 0.0
        %v2610 = vsel %vm357, %v2513, 0.0
        %v2611 = vsel %vm357, %v2516, 0.0
        %v2612 = vsel %vm357, %v2519, 0.0
        %v2613 = vsel %vm357, %v2522, 0.0
        %v2614 = vsel %vm357, %v2525, 0.0
        %v2615 = vsel %vm357, %v2528, 0.0
        %v2616 = vsel %vm357, %v2531, 0.0
        %v2617 = vsel %vm357, %v2534, 0.0
        %v2618 = vsel %vm357, %v2537, 0.0
        %2619 = vst [vmem:[#allocation3] sm:$0xff] %v457
        %2620 = vst [vmem:[#allocation3 + $0x48] sm:$0xff] %v359
        %2621 = vst [vmem:[#allocation3 + $0x90] sm:$0xff] %v2587
        %2622 = vst [vmem:[#allocation3 + $0xd8] sm:$0xff] %v2493
        %2623 = vst [vmem:[#allocation3 + $0x120] sm:$0xff] %v2588
        %2624 = vst [vmem:[#allocation3 + $0x168] sm:$0xff] %v2496
        %2625 = vst [vmem:[#allocation3 + $0x1b0] sm:$0xff] %v2589
        %2626 = vst [vmem:[#allocation3 + $0x1f8] sm:$0xff] %v2499
        %2627 = vst [vmem:[#allocation3 + $0x240] sm:$0xff] %v2590
        %2628 = vst [vmem:[#allocation3 + $0x288] sm:$0xff] %v2502
        %2629 = vst [vmem:[#allocation3 + $0x2d0] sm:$0xff] %v2591
        %2630 = vst [vmem:[#allocation3 + $0x318] sm:$0xff] %v2505
        %2631 = vst [vmem:[#allocation3 + $0x360] sm:$0xff] %v2592
        %2632 = vst [vmem:[#allocation3 + $0x3a8] sm:$0xff] %v2508
        %2633 = vst [vmem:[#allocation3 + $0x3f0] sm:$0xff] %v2593
        %2634 = vst [vmem:[#allocation3 + $0x438] sm:$0xff] %v2511
        %2635 = vst [vmem:[#allocation3 + $0x480] sm:$0xff] %v2594
        %2636 = vst [vmem:[#allocation3 + $0x4c8] sm:$0xff] %v2514
        %2637 = vst [vmem:[#allocation3 + $0x510] sm:$0xff] %v2595
        %2638 = vst [vmem:[#allocation3 + $0x558] sm:$0xff] %v2517
        %2639 = vst [vmem:[#allocation3 + $0x5a0] sm:$0xff] %v2596
        %2640 = vst [vmem:[#allocation3 + $0x5e8] sm:$0xff] %v2520
        %2641 = vst [vmem:[#allocation3 + $0x630] sm:$0xff] %v2597
        %2642 = vst [vmem:[#allocation3 + $0x678] sm:$0xff] %v2523
        %2643 = vst [vmem:[#allocation3 + $0x6c0] sm:$0xff] %v2598
        %2644 = vst [vmem:[#allocation3 + $0x708] sm:$0xff] %v2526
        %2645 = vst [vmem:[#allocation3 + $0x750] sm:$0xff] %v2599
        %2646 = vst [vmem:[#allocation3 + $0x798] sm:$0xff] %v2529
        %2647 = vst [vmem:[#allocation3 + $0x7e0] sm:$0xff] %v2600
        %2648 = vst [vmem:[#allocation3 + $0x828] sm:$0xff] %v2532
        %2649 = vst [vmem:[#allocation3 + $0x870] sm:$0xff] %v2601
        %2650 = vst [vmem:[#allocation3 + $0x8b8] sm:$0xff] %v2535
        %vm2681 = vcmask 1046528
        %v2682 = vrot.slane %v457, 1
        %v2683 = vrot.slane %v359, 1
        %v2684 = vsel %vm2681, %v2682, %v2683
        %v2685 = vrot.slane %v474, 1
        %v2686 = vsel %vm2681, %v2683, %v2685
        %v2687 = vrot.slane %v2587, 1
        %v2688 = vrot.slane %v2493, 1
        %v2689 = vsel %vm2681, %v2687, %v2688
        %v2690 = vrot.slane %v2603, 1
        %v2691 = vsel %vm2681, %v2688, %v2690
        %v2692 = vrot.slane %v2588, 1
        %v2693 = vrot.slane %v2496, 1
        %v2694 = vsel %vm2681, %v2692, %v2693
        %v2695 = vrot.slane %v2604, 1
        %v2696 = vsel %vm2681, %v2693, %v2695
        %v2697 = vrot.slane %v2589, 1
        %v2698 = vrot.slane %v2499, 1
        %v2699 = vsel %vm2681, %v2697, %v2698
        %v2700 = vrot.slane %v2605, 1
        %v2701 = vsel %vm2681, %v2698, %v2700
        %v2702 = vrot.slane %v2590, 1
        %v2703 = vrot.slane %v2502, 1
        %v2704 = vsel %vm2681, %v2702, %v2703
        %v2705 = vrot.slane %v2606, 1
        %v2706 = vsel %vm2681, %v2703, %v2705
        %v2707 = vrot.slane %v2591, 1
        %v2708 = vrot.slane %v2505, 1
        %v2709 = vsel %vm2681, %v2707, %v2708
        %v2710 = vrot.slane %v2607, 1
        %v2711 = vsel %vm2681, %v2708, %v2710
        %v2712 = vrot.slane %v2592, 1
        %v2713 = vrot.slane %v2508, 1
        %v2714 = vsel %vm2681, %v2712, %v2713
        %v2715 = vrot.slane %v2608, 1
        %v2716 = vsel %vm2681, %v2713, %v2715
        %v2717 = vrot.slane %v2593, 1
        %v2718 = vrot.slane %v2511, 1
        %v2719 = vsel %vm2681, %v2717, %v2718
        %v2720 = vrot.slane %v2609, 1
        %v2721 = vsel %vm2681, %v2718, %v2720
        %v2722 = vrot.slane %v2594, 1
        %v2723 = vrot.slane %v2514, 1
        %v2724 = vsel %vm2681, %v2722, %v2723
        %v2725 = vrot.slane %v2610, 1
        %v2726 = vsel %vm2681, %v2723, %v2725
        %v2727 = vrot.slane %v2595, 1
        %v2728 = vrot.slane %v2517, 1
        %v2729 = vsel %vm2681, %v2727, %v2728
        %v2730 = vrot.slane %v2611, 1
        %v2731 = vsel %vm2681, %v2728, %v2730
        %v2732 = vrot.slane %v2596, 1
        %v2733 = vrot.slane %v2520, 1
        %v2734 = vsel %vm2681, %v2732, %v2733
        %v2735 = vrot.slane %v2612, 1
        %v2736 = vsel %vm2681, %v2733, %v2735
        %v2737 = vrot.slane %v2597, 1
        %v2738 = vrot.slane %v2523, 1
        %v2739 = vsel %vm2681, %v2737, %v2738
        %v2740 = vrot.slane %v2613, 1
        %v2741 = vsel %vm2681, %v2738, %v2740
        %v2742 = vrot.slane %v2598, 1
        %v2743 = vrot.slane %v2526, 1
        %v2744 = vsel %vm2681, %v2742, %v2743
        %v2745 = vrot.slane %v2614, 1
        %v2746 = vsel %vm2681, %v2743, %v2745
        %v2747 = vrot.slane %v2599, 1
        %v2748 = vrot.slane %v2529, 1
        %v2749 = vsel %vm2681, %v2747, %v2748
        %v2750 = vrot.slane %v2615, 1
        %v2751 = vsel %vm2681, %v2748, %v2750
        %v2752 = vrot.slane %v2600, 1
        %v2753 = vrot.slane %v2532, 1
        %v2754 = vsel %vm2681, %v2752, %v2753
        %v2755 = vrot.slane %v2616, 1
        %v2756 = vsel %vm2681, %v2753, %v2755
        %v2757 = vrot.slane %v2601, 1
        %v2758 = vrot.slane %v2535, 1
        %v2759 = vsel %vm2681, %v2757, %v2758
        %v2760 = vrot.slane %v2617, 1
        %v2761 = vsel %vm2681, %v2758, %v2760
        %2794 = vst [vmem:[#allocation3 + $0x8] sm:$0xff] %v2684
        %2795 = vst [vmem:[#allocation3 + $0x50] sm:$0xff] %v2686
        %2796 = vst [vmem:[#allocation3 + $0x98] sm:$0xff] %v2689
        %2797 = vst [vmem:[#allocation3 + $0xe0] sm:$0xff] %v2691
        %2798 = vst [vmem:[#allocation3 + $0x128] sm:$0xff] %v2694
        %2799 = vst [vmem:[#allocation3 + $0x170] sm:$0xff] %v2696
        %2800 = vst [vmem:[#allocation3 + $0x1b8] sm:$0xff] %v2699
        %2801 = vst [vmem:[#allocation3 + $0x200] sm:$0xff] %v2701
        %2802 = vst [vmem:[#allocation3 + $0x248] sm:$0xff] %v2704
        %2803 = vst [vmem:[#allocation3 + $0x290] sm:$0xff] %v2706
        %2804 = vst [vmem:[#allocation3 + $0x2d8] sm:$0xff] %v2709
        %2805 = vst [vmem:[#allocation3 + $0x320] sm:$0xff] %v2711
        %2806 = vst [vmem:[#allocation3 + $0x368] sm:$0xff] %v2714
        %2807 = vst [vmem:[#allocation3 + $0x3b0] sm:$0xff] %v2716
        %2808 = vst [vmem:[#allocation3 + $0x3f8] sm:$0xff] %v2719
        %2809 = vst [vmem:[#allocation3 + $0x440] sm:$0xff] %v2721
        %2810 = vst [vmem:[#allocation3 + $0x488] sm:$0xff] %v2724
        %2811 = vst [vmem:[#allocation3 + $0x4d0] sm:$0xff] %v2726
        %2812 = vst [vmem:[#allocation3 + $0x518] sm:$0xff] %v2729
        %2813 = vst [vmem:[#allocation3 + $0x560] sm:$0xff] %v2731
        %2814 = vst [vmem:[#allocation3 + $0x5a8] sm:$0xff] %v2734
        %2815 = vst [vmem:[#allocation3 + $0x5f0] sm:$0xff] %v2736
        %2816 = vst [vmem:[#allocation3 + $0x638] sm:$0xff] %v2739
        %2817 = vst [vmem:[#allocation3 + $0x680] sm:$0xff] %v2741
        %2818 = vst [vmem:[#allocation3 + $0x6c8] sm:$0xff] %v2744
        %2819 = vst [vmem:[#allocation3 + $0x710] sm:$0xff] %v2746
        %2820 = vst [vmem:[#allocation3 + $0x758] sm:$0xff] %v2749
        %2821 = vst [vmem:[#allocation3 + $0x7a0] sm:$0xff] %v2751
        %2822 = vst [vmem:[#allocation3 + $0x7e8] sm:$0xff] %v2754
        %2823 = vst [vmem:[#allocation3 + $0x830] sm:$0xff] %v2756
        %2824 = vst [vmem:[#allocation3 + $0x878] sm:$0xff] %v2759
        %2825 = vst [vmem:[#allocation3 + $0x8c0] sm:$0xff] %v2761
        %vm2826 = vcmask 1045504
        %v2827 = vrot.slane %v457, 2
        %v2828 = vrot.slane %v359, 2
        %v2829 = vsel %vm2826, %v2827, %v2828
        %v2830 = vrot.slane %v474, 2
        %v2831 = vsel %vm2826, %v2828, %v2830
        %v2832 = vrot.slane %v2587, 2
        %v2833 = vrot.slane %v2493, 2
        %v2834 = vsel %vm2826, %v2832, %v2833
        %v2835 = vrot.slane %v2603, 2
        %v2836 = vsel %vm2826, %v2833, %v2835
        %v2837 = vrot.slane %v2588, 2
        %v2838 = vrot.slane %v2496, 2
        %v2839 = vsel %vm2826, %v2837, %v2838
        %v2840 = vrot.slane %v2604, 2
        %v2841 = vsel %vm2826, %v2838, %v2840
        %v2842 = vrot.slane %v2589, 2
        %v2843 = vrot.slane %v2499, 2
        %v2844 = vsel %vm2826, %v2842, %v2843
        %v2845 = vrot.slane %v2605, 2
        %v2846 = vsel %vm2826, %v2843, %v2845
        %v2847 = vrot.slane %v2590, 2
        %v2848 = vrot.slane %v2502, 2
        %v2849 = vsel %vm2826, %v2847, %v2848
        %v2850 = vrot.slane %v2606, 2
        %v2851 = vsel %vm2826, %v2848, %v2850
        %v2852 = vrot.slane %v2591, 2
        %v2853 = vrot.slane %v2505, 2
        %v2854 = vsel %vm2826, %v2852, %v2853
        %v2855 = vrot.slane %v2607, 2
        %v2856 = vsel %vm2826, %v2853, %v2855
        %v2857 = vrot.slane %v2592, 2
        %v2858 = vrot.slane %v2508, 2
        %v2859 = vsel %vm2826, %v2857, %v2858
        %v2860 = vrot.slane %v2608, 2
        %v2861 = vsel %vm2826, %v2858, %v2860
        %v2862 = vrot.slane %v2593, 2
        %v2863 = vrot.slane %v2511, 2
        %v2864 = vsel %vm2826, %v2862, %v2863
        %v2865 = vrot.slane %v2609, 2
        %v2866 = vsel %vm2826, %v2863, %v2865
        %v2867 = vrot.slane %v2594, 2
        %v2868 = vrot.slane %v2514, 2
        %v2869 = vsel %vm2826, %v2867, %v2868
        %v2870 = vrot.slane %v2610, 2
        %v2871 = vsel %vm2826, %v2868, %v2870
        %v2872 = vrot.slane %v2595, 2
        %v2873 = vrot.slane %v2517, 2
        %v2874 = vsel %vm2826, %v2872, %v2873
        %v2875 = vrot.slane %v2611, 2
        %v2876 = vsel %vm2826, %v2873, %v2875
        %v2877 = vrot.slane %v2596, 2
        %v2878 = vrot.slane %v2520, 2
        %v2879 = vsel %vm2826, %v2877, %v2878
        %v2880 = vrot.slane %v2612, 2
        %v2881 = vsel %vm2826, %v2878, %v2880
        %v2882 = vrot.slane %v2597, 2
        %v2883 = vrot.slane %v2523, 2
        %v2884 = vsel %vm2826, %v2882, %v2883
        %v2885 = vrot.slane %v2613, 2
        %v2886 = vsel %vm2826, %v2883, %v2885
        %v2887 = vrot.slane %v2598, 2
        %v2888 = vrot.slane %v2526, 2
        %v2889 = vsel %vm2826, %v2887, %v2888
        %v2890 = vrot.slane %v2614, 2
        %v2891 = vsel %vm2826, %v2888, %v2890
        %v2892 = vrot.slane %v2599, 2
        %v2893 = vrot.slane %v2529, 2
        %v2894 = vsel %vm2826, %v2892, %v2893
        %v2895 = vrot.slane %v2615, 2
        %v2896 = vsel %vm2826, %v2893, %v2895
        %v2897 = vrot.slane %v2600, 2
        %v2898 = vrot.slane %v2532, 2
        %v2899 = vsel %vm2826, %v2897, %v2898
        %v2900 = vrot.slane %v2616, 2
        %v2901 = vsel %vm2826, %v2898, %v2900
        %v2902 = vrot.slane %v2601, 2
        %v2903 = vrot.slane %v2535, 2
        %v2904 = vsel %vm2826, %v2902, %v2903
        %v2905 = vrot.slane %v2617, 2
        %v2906 = vsel %vm2826, %v2903, %v2905
        %2939 = vst [vmem:[#allocation3 + $0x10] sm:$0xff] %v2829
        %2940 = vst [vmem:[#allocation3 + $0x58] sm:$0xff] %v2831
        %2941 = vst [vmem:[#allocation3 + $0xa0] sm:$0xff] %v2834
        %2942 = vst [vmem:[#allocation3 + $0xe8] sm:$0xff] %v2836
        %2943 = vst [vmem:[#allocation3 + $0x130] sm:$0xff] %v2839
        %2944 = vst [vmem:[#allocation3 + $0x178] sm:$0xff] %v2841
        %2945 = vst [vmem:[#allocation3 + $0x1c0] sm:$0xff] %v2844
        %2946 = vst [vmem:[#allocation3 + $0x208] sm:$0xff] %v2846
        %2947 = vst [vmem:[#allocation3 + $0x250] sm:$0xff] %v2849
        %2948 = vst [vmem:[#allocation3 + $0x298] sm:$0xff] %v2851
        %2949 = vst [vmem:[#allocation3 + $0x2e0] sm:$0xff] %v2854
        %2950 = vst [vmem:[#allocation3 + $0x328] sm:$0xff] %v2856
        %2951 = vst [vmem:[#allocation3 + $0x370] sm:$0xff] %v2859
        %2952 = vst [vmem:[#allocation3 + $0x3b8] sm:$0xff] %v2861
        %2953 = vst [vmem:[#allocation3 + $0x400] sm:$0xff] %v2864
        %2954 = vst [vmem:[#allocation3 + $0x448] sm:$0xff] %v2866
        %2955 = vst [vmem:[#allocation3 + $0x490] sm:$0xff] %v2869
        %2956 = vst [vmem:[#allocation3 + $0x4d8] sm:$0xff] %v2871
        %2957 = vst [vmem:[#allocation3 + $0x520] sm:$0xff] %v2874
        %2958 = vst [vmem:[#allocation3 + $0x568] sm:$0xff] %v2876
        %2959 = vst [vmem:[#allocation3 + $0x5b0] sm:$0xff] %v2879
        %2960 = vst [vmem:[#allocation3 + $0x5f8] sm:$0xff] %v2881
        %2961 = vst [vmem:[#allocation3 + $0x640] sm:$0xff] %v2884
        %2962 = vst [vmem:[#allocation3 + $0x688] sm:$0xff] %v2886
        %2963 = vst [vmem:[#allocation3 + $0x6d0] sm:$0xff] %v2889
        %2964 = vst [vmem:[#allocation3 + $0x718] sm:$0xff] %v2891
        %2965 = vst [vmem:[#allocation3 + $0x760] sm:$0xff] %v2894
        %2966 = vst [vmem:[#allocation3 + $0x7a8] sm:$0xff] %v2896
        %2967 = vst [vmem:[#allocation3 + $0x7f0] sm:$0xff] %v2899
        %2968 = vst [vmem:[#allocation3 + $0x838] sm:$0xff] %v2901
        %2969 = vst [vmem:[#allocation3 + $0x880] sm:$0xff] %v2904
        %2970 = vst [vmem:[#allocation3 + $0x8c8] sm:$0xff] %v2906
        %2971 = vst [vmem:[#allocation3 + $0x18] sm:$0xff] %v2587
        %2972 = vst [vmem:[#allocation3 + $0x60] sm:$0xff] %v2493
        %2973 = vst [vmem:[#allocation3 + $0xa8] sm:$0xff] %v2588
        %2974 = vst [vmem:[#allocation3 + $0xf0] sm:$0xff] %v2496
        %2975 = vst [vmem:[#allocation3 + $0x138] sm:$0xff] %v2589
        %2976 = vst [vmem:[#allocation3 + $0x180] sm:$0xff] %v2499
        %2977 = vst [vmem:[#allocation3 + $0x1c8] sm:$0xff] %v2590
        %2978 = vst [vmem:[#allocation3 + $0x210] sm:$0xff] %v2502
        %2979 = vst [vmem:[#allocation3 + $0x258] sm:$0xff] %v2591
        %2980 = vst [vmem:[#allocation3 + $0x2a0] sm:$0xff] %v2505
        %2981 = vst [vmem:[#allocation3 + $0x2e8] sm:$0xff] %v2592
        %2982 = vst [vmem:[#allocation3 + $0x330] sm:$0xff] %v2508
        %2983 = vst [vmem:[#allocation3 + $0x378] sm:$0xff] %v2593
        %2984 = vst [vmem:[#allocation3 + $0x3c0] sm:$0xff] %v2511
        %2985 = vst [vmem:[#allocation3 + $0x408] sm:$0xff] %v2594
        %2986 = vst [vmem:[#allocation3 + $0x450] sm:$0xff] %v2514
        %2987 = vst [vmem:[#allocation3 + $0x498] sm:$0xff] %v2595
        %2988 = vst [vmem:[#allocation3 + $0x4e0] sm:$0xff] %v2517
        %2989 = vst [vmem:[#allocation3 + $0x528] sm:$0xff] %v2596
        %2990 = vst [vmem:[#allocation3 + $0x570] sm:$0xff] %v2520
        %2991 = vst [vmem:[#allocation3 + $0x5b8] sm:$0xff] %v2597
        %2992 = vst [vmem:[#allocation3 + $0x600] sm:$0xff] %v2523
        %2993 = vst [vmem:[#allocation3 + $0x648] sm:$0xff] %v2598
        %2994 = vst [vmem:[#allocation3 + $0x690] sm:$0xff] %v2526
        %2995 = vst [vmem:[#allocation3 + $0x6d8] sm:$0xff] %v2599
        %2996 = vst [vmem:[#allocation3 + $0x720] sm:$0xff] %v2529
        %2997 = vst [vmem:[#allocation3 + $0x768] sm:$0xff] %v2600
        %2998 = vst [vmem:[#allocation3 + $0x7b0] sm:$0xff] %v2532
        %2999 = vst [vmem:[#allocation3 + $0x7f8] sm:$0xff] %v2601
        %3000 = vst [vmem:[#allocation3 + $0x840] sm:$0xff] %v2535
        %3001 = vst [vmem:[#allocation3 + $0x888] sm:$0xff] %v2602
        %3002 = vst [vmem:[#allocation3 + $0x8d0] sm:$0xff] %v2538
        %v3005 = vrot.slane %v2602, 1
        %v3006 = vrot.slane %v2538, 1
        %v3007 = vsel %vm2681, %v3005, %v3006
        %v3008 = vrot.slane %v2618, 1
        %v3009 = vsel %vm2681, %v3006, %v3008
        %3012 = vst [vmem:[#allocation3 + $0x20] sm:$0xff] %v2689
        %3013 = vst [vmem:[#allocation3 + $0x68] sm:$0xff] %v2691
        %3014 = vst [vmem:[#allocation3 + $0xb0] sm:$0xff] %v2694
        %3015 = vst [vmem:[#allocation3 + $0xf8] sm:$0xff] %v2696
        %3016 = vst [vmem:[#allocation3 + $0x140] sm:$0xff] %v2699
        %3017 = vst [vmem:[#allocation3 + $0x188] sm:$0xff] %v2701
        %3018 = vst [vmem:[#allocation3 + $0x1d0] sm:$0xff] %v2704
        %3019 = vst [vmem:[#allocation3 + $0x218] sm:$0xff] %v2706
        %3020 = vst [vmem:[#allocation3 + $0x260] sm:$0xff] %v2709
        %3021 = vst [vmem:[#allocation3 + $0x2a8] sm:$0xff] %v2711
        %3022 = vst [vmem:[#allocation3 + $0x2f0] sm:$0xff] %v2714
        %3023 = vst [vmem:[#allocation3 + $0x338] sm:$0xff] %v2716
        %3024 = vst [vmem:[#allocation3 + $0x380] sm:$0xff] %v2719
        %3025 = vst [vmem:[#allocation3 + $0x3c8] sm:$0xff] %v2721
        %3026 = vst [vmem:[#allocation3 + $0x410] sm:$0xff] %v2724
        %3027 = vst [vmem:[#allocation3 + $0x458] sm:$0xff] %v2726
        %3028 = vst [vmem:[#allocation3 + $0x4a0] sm:$0xff] %v2729
        %3029 = vst [vmem:[#allocation3 + $0x4e8] sm:$0xff] %v2731
        %3030 = vst [vmem:[#allocation3 + $0x530] sm:$0xff] %v2734
        %3031 = vst [vmem:[#allocation3 + $0x578] sm:$0xff] %v2736
        %3032 = vst [vmem:[#allocation3 + $0x5c0] sm:$0xff] %v2739
        %3033 = vst [vmem:[#allocation3 + $0x608] sm:$0xff] %v2741
        %3034 = vst [vmem:[#allocation3 + $0x650] sm:$0xff] %v2744
        %3035 = vst [vmem:[#allocation3 + $0x698] sm:$0xff] %v2746
        %3036 = vst [vmem:[#allocation3 + $0x6e0] sm:$0xff] %v2749
        %3037 = vst [vmem:[#allocation3 + $0x728] sm:$0xff] %v2751
        %3038 = vst [vmem:[#allocation3 + $0x770] sm:$0xff] %v2754
        %3039 = vst [vmem:[#allocation3 + $0x7b8] sm:$0xff] %v2756
        %3040 = vst [vmem:[#allocation3 + $0x800] sm:$0xff] %v2759
        %3041 = vst [vmem:[#allocation3 + $0x848] sm:$0xff] %v2761
        %3042 = vst [vmem:[#allocation3 + $0x890] sm:$0xff] %v3007
        %3043 = vst [vmem:[#allocation3 + $0x8d8] sm:$0xff] %v3009
        %v3044 = vrot.slane %v2602, 2
        %v3045 = vrot.slane %v2538, 2
        %v3046 = vsel %vm2826, %v3044, %v3045
        %v3047 = vrot.slane %v2618, 2
        %v3048 = vsel %vm2826, %v3045, %v3047
        %3051 = vst [vmem:[#allocation3 + $0x28] sm:$0xff] %v2834
        %3052 = vst [vmem:[#allocation3 + $0x70] sm:$0xff] %v2836
        %3053 = vst [vmem:[#allocation3 + $0xb8] sm:$0xff] %v2839
        %3054 = vst [vmem:[#allocation3 + $0x100] sm:$0xff] %v2841
        %3055 = vst [vmem:[#allocation3 + $0x148] sm:$0xff] %v2844
        %3056 = vst [vmem:[#allocation3 + $0x190] sm:$0xff] %v2846
        %3057 = vst [vmem:[#allocation3 + $0x1d8] sm:$0xff] %v2849
        %3058 = vst [vmem:[#allocation3 + $0x220] sm:$0xff] %v2851
        %3059 = vst [vmem:[#allocation3 + $0x268] sm:$0xff] %v2854
        %3060 = vst [vmem:[#allocation3 + $0x2b0] sm:$0xff] %v2856
        %3061 = vst [vmem:[#allocation3 + $0x2f8] sm:$0xff] %v2859
        %3062 = vst [vmem:[#allocation3 + $0x340] sm:$0xff] %v2861
        %3063 = vst [vmem:[#allocation3 + $0x388] sm:$0xff] %v2864
        %3064 = vst [vmem:[#allocation3 + $0x3d0] sm:$0xff] %v2866
        %3065 = vst [vmem:[#allocation3 + $0x418] sm:$0xff] %v2869
        %3066 = vst [vmem:[#allocation3 + $0x460] sm:$0xff] %v2871
        %3067 = vst [vmem:[#allocation3 + $0x4a8] sm:$0xff] %v2874
        %3068 = vst [vmem:[#allocation3 + $0x4f0] sm:$0xff] %v2876
        %3069 = vst [vmem:[#allocation3 + $0x538] sm:$0xff] %v2879
        %3070 = vst [vmem:[#allocation3 + $0x580] sm:$0xff] %v2881
        %3071 = vst [vmem:[#allocation3 + $0x5c8] sm:$0xff] %v2884
        %3072 = vst [vmem:[#allocation3 + $0x610] sm:$0xff] %v2886
        %3073 = vst [vmem:[#allocation3 + $0x658] sm:$0xff] %v2889
        %3074 = vst [vmem:[#allocation3 + $0x6a0] sm:$0xff] %v2891
        %3075 = vst [vmem:[#allocation3 + $0x6e8] sm:$0xff] %v2894
        %3076 = vst [vmem:[#allocation3 + $0x730] sm:$0xff] %v2896
        %3077 = vst [vmem:[#allocation3 + $0x778] sm:$0xff] %v2899
        %3078 = vst [vmem:[#allocation3 + $0x7c0] sm:$0xff] %v2901
        %3079 = vst [vmem:[#allocation3 + $0x808] sm:$0xff] %v2904
        %3080 = vst [vmem:[#allocation3 + $0x850] sm:$0xff] %v2906
        %3081 = vst [vmem:[#allocation3 + $0x898] sm:$0xff] %v3046
        %3082 = vst [vmem:[#allocation3 + $0x8e0] sm:$0xff] %v3048
        %3083 = vst [vmem:[#allocation3 + $0x30] sm:$0xff] %v2588
        %3084 = vst [vmem:[#allocation3 + $0x78] sm:$0xff] %v2496
        %3085 = vst [vmem:[#allocation3 + $0xc0] sm:$0xff] %v2589
        %3086 = vst [vmem:[#allocation3 + $0x108] sm:$0xff] %v2499
        %3087 = vst [vmem:[#allocation3 + $0x150] sm:$0xff] %v2590
        %3088 = vst [vmem:[#allocation3 + $0x198] sm:$0xff] %v2502
        %3089 = vst [vmem:[#allocation3 + $0x1e0] sm:$0xff] %v2591
        %3090 = vst [vmem:[#allocation3 + $0x228] sm:$0xff] %v2505
        %3091 = vst [vmem:[#allocation3 + $0x270] sm:$0xff] %v2592
        %3092 = vst [vmem:[#allocation3 + $0x2b8] sm:$0xff] %v2508
        %3093 = vst [vmem:[#allocation3 + $0x300] sm:$0xff] %v2593
        %3094 = vst [vmem:[#allocation3 + $0x348] sm:$0xff] %v2511
        %3095 = vst [vmem:[#allocation3 + $0x390] sm:$0xff] %v2594
        %3096 = vst [vmem:[#allocation3 + $0x3d8] sm:$0xff] %v2514
        %3097 = vst [vmem:[#allocation3 + $0x420] sm:$0xff] %v2595
        %3098 = vst [vmem:[#allocation3 + $0x468] sm:$0xff] %v2517
        %3099 = vst [vmem:[#allocation3 + $0x4b0] sm:$0xff] %v2596
        %3100 = vst [vmem:[#allocation3 + $0x4f8] sm:$0xff] %v2520
        %3101 = vst [vmem:[#allocation3 + $0x540] sm:$0xff] %v2597
        %3102 = vst [vmem:[#allocation3 + $0x588] sm:$0xff] %v2523
        %3103 = vst [vmem:[#allocation3 + $0x5d0] sm:$0xff] %v2598
        %3104 = vst [vmem:[#allocation3 + $0x618] sm:$0xff] %v2526
        %3105 = vst [vmem:[#allocation3 + $0x660] sm:$0xff] %v2599
        %3106 = vst [vmem:[#allocation3 + $0x6a8] sm:$0xff] %v2529
        %3107 = vst [vmem:[#allocation3 + $0x6f0] sm:$0xff] %v2600
        %3108 = vst [vmem:[#allocation3 + $0x738] sm:$0xff] %v2532
        %3109 = vst [vmem:[#allocation3 + $0x780] sm:$0xff] %v2601
        %3110 = vst [vmem:[#allocation3 + $0x7c8] sm:$0xff] %v2535
        %3111 = vst [vmem:[#allocation3 + $0x810] sm:$0xff] %v2602
        %3112 = vst [vmem:[#allocation3 + $0x858] sm:$0xff] %v2538
        %3113 = vst [vmem:[#allocation3 + $0x8a0] sm:$0xff] %v457
        %3114 = vst [vmem:[#allocation3 + $0x8e8] sm:$0xff] %v359
        %3115 = vst [vmem:[#allocation3 + $0x38] sm:$0xff] %v2694
        %3116 = vst [vmem:[#allocation3 + $0x80] sm:$0xff] %v2696
        %3117 = vst [vmem:[#allocation3 + $0xc8] sm:$0xff] %v2699
        %3118 = vst [vmem:[#allocation3 + $0x110] sm:$0xff] %v2701
        %3119 = vst [vmem:[#allocation3 + $0x158] sm:$0xff] %v2704
        %3120 = vst [vmem:[#allocation3 + $0x1a0] sm:$0xff] %v2706
        %3121 = vst [vmem:[#allocation3 + $0x1e8] sm:$0xff] %v2709
        %3122 = vst [vmem:[#allocation3 + $0x230] sm:$0xff] %v2711
        %3123 = vst [vmem:[#allocation3 + $0x278] sm:$0xff] %v2714
        %3124 = vst [vmem:[#allocation3 + $0x2c0] sm:$0xff] %v2716
        %3125 = vst [vmem:[#allocation3 + $0x308] sm:$0xff] %v2719
        %3126 = vst [vmem:[#allocation3 + $0x350] sm:$0xff] %v2721
        %3127 = vst [vmem:[#allocation3 + $0x398] sm:$0xff] %v2724
        %3128 = vst [vmem:[#allocation3 + $0x3e0] sm:$0xff] %v2726
        %3129 = vst [vmem:[#allocation3 + $0x428] sm:$0xff] %v2729
        %3130 = vst [vmem:[#allocation3 + $0x470] sm:$0xff] %v2731
        %3131 = vst [vmem:[#allocation3 + $0x4b8] sm:$0xff] %v2734
        %3132 = vst [vmem:[#allocation3 + $0x500] sm:$0xff] %v2736
        %3133 = vst [vmem:[#allocation3 + $0x548] sm:$0xff] %v2739
        %3134 = vst [vmem:[#allocation3 + $0x590] sm:$0xff] %v2741
        %3135 = vst [vmem:[#allocation3 + $0x5d8] sm:$0xff] %v2744
        %3136 = vst [vmem:[#allocation3 + $0x620] sm:$0xff] %v2746
        %3137 = vst [vmem:[#allocation3 + $0x668] sm:$0xff] %v2749
        %3138 = vst [vmem:[#allocation3 + $0x6b0] sm:$0xff] %v2751
        %3139 = vst [vmem:[#allocation3 + $0x6f8] sm:$0xff] %v2754
        %3140 = vst [vmem:[#allocation3 + $0x740] sm:$0xff] %v2756
        %3141 = vst [vmem:[#allocation3 + $0x788] sm:$0xff] %v2759
        %3142 = vst [vmem:[#allocation3 + $0x7d0] sm:$0xff] %v2761
        %3143 = vst [vmem:[#allocation3 + $0x818] sm:$0xff] %v3007
        %3144 = vst [vmem:[#allocation3 + $0x860] sm:$0xff] %v3009
        %3145 = vst [vmem:[#allocation3 + $0x8a8] sm:$0xff] %v2684
        %3146 = vst [vmem:[#allocation3 + $0x8f0] sm:$0xff] %v2686
        %3147 = vst [vmem:[#allocation3 + $0x40] sm:$0xff] %v2839
        %3148 = vst [vmem:[#allocation3 + $0x88] sm:$0xff] %v2841
        %3149 = vst [vmem:[#allocation3 + $0xd0] sm:$0xff] %v2844
        %3150 = vst [vmem:[#allocation3 + $0x118] sm:$0xff] %v2846
        %3151 = vst [vmem:[#allocation3 + $0x160] sm:$0xff] %v2849
        %3152 = vst [vmem:[#allocation3 + $0x1a8] sm:$0xff] %v2851
        %3153 = vst [vmem:[#allocation3 + $0x1f0] sm:$0xff] %v2854
        %3154 = vst [vmem:[#allocation3 + $0x238] sm:$0xff] %v2856
        %3155 = vst [vmem:[#allocation3 + $0x280] sm:$0xff] %v2859
        %3156 = vst [vmem:[#allocation3 + $0x2c8] sm:$0xff] %v2861
        %3157 = vst [vmem:[#allocation3 + $0x310] sm:$0xff] %v2864
        %3158 = vst [vmem:[#allocation3 + $0x358] sm:$0xff] %v2866
        %3159 = vst [vmem:[#allocation3 + $0x3a0] sm:$0xff] %v2869
        %3160 = vst [vmem:[#allocation3 + $0x3e8] sm:$0xff] %v2871
        %3161 = vst [vmem:[#allocation3 + $0x430] sm:$0xff] %v2874
        %3162 = vst [vmem:[#allocation3 + $0x478] sm:$0xff] %v2876
        %3163 = vst [vmem:[#allocation3 + $0x4c0] sm:$0xff] %v2879
        %3164 = vst [vmem:[#allocation3 + $0x508] sm:$0xff] %v2881
        %3165 = vst [vmem:[#allocation3 + $0x550] sm:$0xff] %v2884
        %3166 = vst [vmem:[#allocation3 + $0x598] sm:$0xff] %v2886
        %3167 = vst [vmem:[#allocation3 + $0x5e0] sm:$0xff] %v2889
        %3168 = vst [vmem:[#allocation3 + $0x628] sm:$0xff] %v2891
        %3169 = vst [vmem:[#allocation3 + $0x670] sm:$0xff] %v2894
        %3170 = vst [vmem:[#allocation3 + $0x6b8] sm:$0xff] %v2896
        %3171 = vst [vmem:[#allocation3 + $0x700] sm:$0xff] %v2899
        %3172 = vst [vmem:[#allocation3 + $0x748] sm:$0xff] %v2901
        %3173 = vst [vmem:[#allocation3 + $0x790] sm:$0xff] %v2904
        %3174 = vst [vmem:[#allocation3 + $0x7d8] sm:$0xff] %v2906
        %3175 = vst [vmem:[#allocation3 + $0x820] sm:$0xff] %v3046
        %3176 = vst [vmem:[#allocation3 + $0x868] sm:$0xff] %v3048
        %3177 = vst [vmem:[#allocation3 + $0x8b0] sm:$0xff] %v2829
        %3178 = vst [vmem:[#allocation3 + $0x8f8] sm:$0xff] %v2831
        %v3179 = vld [vmem:[#allocation3] sm:$0xff]
        %v3180 = vld [vmem:[#allocation3 + $0x8] sm:$0xff]
        %v3181 = vld [vmem:[#allocation3 + $0x10] sm:$0xff]
        %v3182 = vld [vmem:[#allocation3 + $0x18] sm:$0xff]
        %v3183 = vld [vmem:[#allocation3 + $0x20] sm:$0xff]
        %v3184 = vld [vmem:[#allocation3 + $0x28] sm:$0xff]
        %v3185 = vld [vmem:[#allocation3 + $0x30] sm:$0xff]
        %v3186 = vld [vmem:[#allocation3 + $0x38] sm:$0xff]
        %v3187 = vld [vmem:[#allocation3 + $0x40] sm:$0xff]
        %v3188 = vld [vmem:[#allocation3 + $0x48] sm:$0xff]
        %v3189 = vld [vmem:[#allocation3 + $0x50] sm:$0xff]
        %v3190 = vld [vmem:[#allocation3 + $0x58] sm:$0xff]
        %v3191 = vld [vmem:[#allocation3 + $0x60] sm:$0xff]
        %v3192 = vld [vmem:[#allocation3 + $0x68] sm:$0xff]
        %v3193 = vld [vmem:[#allocation3 + $0x70] sm:$0xff]
        %v3194 = vld [vmem:[#allocation3 + $0x78] sm:$0xff]
        %v3195 = vld [vmem:[#allocation3 + $0x80] sm:$0xff]
        %v3196 = vld [vmem:[#allocation3 + $0x88] sm:$0xff]
        %v3197 = vld [vmem:[#allocation3 + $0x90] sm:$0xff]
        %v3198 = vld [vmem:[#allocation3 + $0x98] sm:$0xff]
        %v3199 = vld [vmem:[#allocation3 + $0xa0] sm:$0xff]
        %v3200 = vld [vmem:[#allocation3 + $0xa8] sm:$0xff]
        %v3201 = vld [vmem:[#allocation3 + $0xb0] sm:$0xff]
        %v3202 = vld [vmem:[#allocation3 + $0xb8] sm:$0xff]
        %v3203 = vld [vmem:[#allocation3 + $0xc0] sm:$0xff]
        %v3204 = vld [vmem:[#allocation3 + $0xc8] sm:$0xff]
        %v3205 = vld [vmem:[#allocation3 + $0xd0] sm:$0xff]
        %v3206 = vld [vmem:[#allocation3 + $0xd8] sm:$0xff]
        %v3207 = vld [vmem:[#allocation3 + $0xe0] sm:$0xff]
        %v3208 = vld [vmem:[#allocation3 + $0xe8] sm:$0xff]
        %v3209 = vld [vmem:[#allocation3 + $0xf0] sm:$0xff]
        %v3210 = vld [vmem:[#allocation3 + $0xf8] sm:$0xff]
        %v3211 = vld [vmem:[#allocation3 + $0x100] sm:$0xff]
        %v3212 = vld [vmem:[#allocation3 + $0x108] sm:$0xff]
        %v3213 = vld [vmem:[#allocation3 + $0x110] sm:$0xff]
        %v3214 = vld [vmem:[#allocation3 + $0x118] sm:$0xff]
        %v3215 = vld [vmem:[#allocation3 + $0x120] sm:$0xff]
        %v3216 = vld [vmem:[#allocation3 + $0x128] sm:$0xff]
        %v3217 = vld [vmem:[#allocation3 + $0x130] sm:$0xff]
        %v3218 = vld [vmem:[#allocation3 + $0x138] sm:$0xff]
        %v3219 = vld [vmem:[#allocation3 + $0x140] sm:$0xff]
        %v3220 = vld [vmem:[#allocation3 + $0x148] sm:$0xff]
        %v3221 = vld [vmem:[#allocation3 + $0x150] sm:$0xff]
        %v3222 = vld [vmem:[#allocation3 + $0x158] sm:$0xff]
        %v3223 = vld [vmem:[#allocation3 + $0x160] sm:$0xff]
        %v3224 = vld [vmem:[#allocation3 + $0x168] sm:$0xff]
        %v3225 = vld [vmem:[#allocation3 + $0x170] sm:$0xff]
        %v3226 = vld [vmem:[#allocation3 + $0x178] sm:$0xff]
        %v3227 = vld [vmem:[#allocation3 + $0x180] sm:$0xff]
        %v3228 = vld [vmem:[#allocation3 + $0x188] sm:$0xff]
        %v3229 = vld [vmem:[#allocation3 + $0x190] sm:$0xff]
        %v3230 = vld [vmem:[#allocation3 + $0x198] sm:$0xff]
        %v3231 = vld [vmem:[#allocation3 + $0x1a0] sm:$0xff]
        %v3232 = vld [vmem:[#allocation3 + $0x1a8] sm:$0xff]
        %v3233 = vld [vmem:[#allocation3 + $0x1b0] sm:$0xff]
        %v3234 = vld [vmem:[#allocation3 + $0x1b8] sm:$0xff]
        %v3235 = vld [vmem:[#allocation3 + $0x1c0] sm:$0xff]
        %v3236 = vld [vmem:[#allocation3 + $0x1c8] sm:$0xff]
        %v3237 = vld [vmem:[#allocation3 + $0x1d0] sm:$0xff]
        %v3238 = vld [vmem:[#allocation3 + $0x1d8] sm:$0xff]
        %v3239 = vld [vmem:[#allocation3 + $0x1e0] sm:$0xff]
        %v3240 = vld [vmem:[#allocation3 + $0x1e8] sm:$0xff]
        %v3241 = vld [vmem:[#allocation3 + $0x1f0] sm:$0xff]
        %v3242 = vld [vmem:[#allocation3 + $0x1f8] sm:$0xff]
        %v3243 = vld [vmem:[#allocation3 + $0x200] sm:$0xff]
        %v3244 = vld [vmem:[#allocation3 + $0x208] sm:$0xff]
        %v3245 = vld [vmem:[#allocation3 + $0x210] sm:$0xff]
        %v3246 = vld [vmem:[#allocation3 + $0x218] sm:$0xff]
        %v3247 = vld [vmem:[#allocation3 + $0x220] sm:$0xff]
        %v3248 = vld [vmem:[#allocation3 + $0x228] sm:$0xff]
        %v3249 = vld [vmem:[#allocation3 + $0x230] sm:$0xff]
        %v3250 = vld [vmem:[#allocation3 + $0x238] sm:$0xff]
        %v3251 = vld [vmem:[#allocation3 + $0x240] sm:$0xff]
        %v3252 = vld [vmem:[#allocation3 + $0x248] sm:$0xff]
        %v3253 = vld [vmem:[#allocation3 + $0x250] sm:$0xff]
        %v3254 = vld [vmem:[#allocation3 + $0x258] sm:$0xff]
        %v3255 = vld [vmem:[#allocation3 + $0x260] sm:$0xff]
        %v3256 = vld [vmem:[#allocation3 + $0x268] sm:$0xff]
        %v3257 = vld [vmem:[#allocation3 + $0x270] sm:$0xff]
        %v3258 = vld [vmem:[#allocation3 + $0x278] sm:$0xff]
        %v3259 = vld [vmem:[#allocation3 + $0x280] sm:$0xff]
        %v3260 = vld [vmem:[#allocation3 + $0x288] sm:$0xff]
        %v3261 = vld [vmem:[#allocation3 + $0x290] sm:$0xff]
        %v3262 = vld [vmem:[#allocation3 + $0x298] sm:$0xff]
        %v3263 = vld [vmem:[#allocation3 + $0x2a0] sm:$0xff]
        %v3264 = vld [vmem:[#allocation3 + $0x2a8] sm:$0xff]
        %v3265 = vld [vmem:[#allocation3 + $0x2b0] sm:$0xff]
        %v3266 = vld [vmem:[#allocation3 + $0x2b8] sm:$0xff]
        %v3267 = vld [vmem:[#allocation3 + $0x2c0] sm:$0xff]
        %v3268 = vld [vmem:[#allocation3 + $0x2c8] sm:$0xff]
        %v3269 = vld [vmem:[#allocation3 + $0x2d0] sm:$0xff]
        %v3270 = vld [vmem:[#allocation3 + $0x2d8] sm:$0xff]
        %v3271 = vld [vmem:[#allocation3 + $0x2e0] sm:$0xff]
        %v3272 = vld [vmem:[#allocation3 + $0x2e8] sm:$0xff]
        %v3273 = vld [vmem:[#allocation3 + $0x2f0] sm:$0xff]
        %v3274 = vld [vmem:[#allocation3 + $0x2f8] sm:$0xff]
        %v3275 = vld [vmem:[#allocation3 + $0x300] sm:$0xff]
        %v3276 = vld [vmem:[#allocation3 + $0x308] sm:$0xff]
        %v3277 = vld [vmem:[#allocation3 + $0x310] sm:$0xff]
        %v3278 = vld [vmem:[#allocation3 + $0x318] sm:$0xff]
        %v3279 = vld [vmem:[#allocation3 + $0x320] sm:$0xff]
        %v3280 = vld [vmem:[#allocation3 + $0x328] sm:$0xff]
        %v3281 = vld [vmem:[#allocation3 + $0x330] sm:$0xff]
        %v3282 = vld [vmem:[#allocation3 + $0x338] sm:$0xff]
        %v3283 = vld [vmem:[#allocation3 + $0x340] sm:$0xff]
        %v3284 = vld [vmem:[#allocation3 + $0x348] sm:$0xff]
        %v3285 = vld [vmem:[#allocation3 + $0x350] sm:$0xff]
        %v3286 = vld [vmem:[#allocation3 + $0x358] sm:$0xff]
        %v3287 = vld [vmem:[#allocation3 + $0x360] sm:$0xff]
        %v3288 = vld [vmem:[#allocation3 + $0x368] sm:$0xff]
        %v3289 = vld [vmem:[#allocation3 + $0x370] sm:$0xff]
        %v3290 = vld [vmem:[#allocation3 + $0x378] sm:$0xff]
        %v3291 = vld [vmem:[#allocation3 + $0x380] sm:$0xff]
        %v3292 = vld [vmem:[#allocation3 + $0x388] sm:$0xff]
        %v3293 = vld [vmem:[#allocation3 + $0x390] sm:$0xff]
        %v3294 = vld [vmem:[#allocation3 + $0x398] sm:$0xff]
        %v3295 = vld [vmem:[#allocation3 + $0x3a0] sm:$0xff]
        %v3296 = vld [vmem:[#allocation3 + $0x3a8] sm:$0xff]
        %v3297 = vld [vmem:[#allocation3 + $0x3b0] sm:$0xff]
        %v3298 = vld [vmem:[#allocation3 + $0x3b8] sm:$0xff]
        %v3299 = vld [vmem:[#allocation3 + $0x3c0] sm:$0xff]
        %v3300 = vld [vmem:[#allocation3 + $0x3c8] sm:$0xff]
        %v3301 = vld [vmem:[#allocation3 + $0x3d0] sm:$0xff]
        %v3302 = vld [vmem:[#allocation3 + $0x3d8] sm:$0xff]
        %v3303 = vld [vmem:[#allocation3 + $0x3e0] sm:$0xff]
        %v3304 = vld [vmem:[#allocation3 + $0x3e8] sm:$0xff]
        %v3305 = vld [vmem:[#allocation3 + $0x3f0] sm:$0xff]
        %v3306 = vld [vmem:[#allocation3 + $0x3f8] sm:$0xff]
        %v3307 = vld [vmem:[#allocation3 + $0x400] sm:$0xff]
        %v3308 = vld [vmem:[#allocation3 + $0x408] sm:$0xff]
        %v3309 = vld [vmem:[#allocation3 + $0x410] sm:$0xff]
        %v3310 = vld [vmem:[#allocation3 + $0x418] sm:$0xff]
        %v3311 = vld [vmem:[#allocation3 + $0x420] sm:$0xff]
        %v3312 = vld [vmem:[#allocation3 + $0x428] sm:$0xff]
        %v3313 = vld [vmem:[#allocation3 + $0x430] sm:$0xff]
        %v3314 = vld [vmem:[#allocation3 + $0x438] sm:$0xff]
        %v3315 = vld [vmem:[#allocation3 + $0x440] sm:$0xff]
        %v3316 = vld [vmem:[#allocation3 + $0x448] sm:$0xff]
        %v3317 = vld [vmem:[#allocation3 + $0x450] sm:$0xff]
        %v3318 = vld [vmem:[#allocation3 + $0x458] sm:$0xff]
        %v3319 = vld [vmem:[#allocation3 + $0x460] sm:$0xff]
        %v3320 = vld [vmem:[#allocation3 + $0x468] sm:$0xff]
        %v3321 = vld [vmem:[#allocation3 + $0x470] sm:$0xff]
        %v3322 = vld [vmem:[#allocation3 + $0x478] sm:$0xff]
        %v3323 = vld [vmem:[#allocation3 + $0x480] sm:$0xff]
        %v3324 = vld [vmem:[#allocation3 + $0x488] sm:$0xff]
        %v3325 = vld [vmem:[#allocation3 + $0x490] sm:$0xff]
        %v3326 = vld [vmem:[#allocation3 + $0x498] sm:$0xff]
        %v3327 = vld [vmem:[#allocation3 + $0x4a0] sm:$0xff]
        %v3328 = vld [vmem:[#allocation3 + $0x4a8] sm:$0xff]
        %v3329 = vld [vmem:[#allocation3 + $0x4b0] sm:$0xff]
        %v3330 = vld [vmem:[#allocation3 + $0x4b8] sm:$0xff]
        %v3331 = vld [vmem:[#allocation3 + $0x4c0] sm:$0xff]
        %v3332 = vld [vmem:[#allocation3 + $0x4c8] sm:$0xff]
        %v3333 = vld [vmem:[#allocation3 + $0x4d0] sm:$0xff]
        %v3334 = vld [vmem:[#allocation3 + $0x4d8] sm:$0xff]
        %v3335 = vld [vmem:[#allocation3 + $0x4e0] sm:$0xff]
        %v3336 = vld [vmem:[#allocation3 + $0x4e8] sm:$0xff]
        %v3337 = vld [vmem:[#allocation3 + $0x4f0] sm:$0xff]
        %v3338 = vld [vmem:[#allocation3 + $0x4f8] sm:$0xff]
        %v3339 = vld [vmem:[#allocation3 + $0x500] sm:$0xff]
        %v3340 = vld [vmem:[#allocation3 + $0x508] sm:$0xff]
        %v3341 = vld [vmem:[#allocation3 + $0x510] sm:$0xff]
        %v3342 = vld [vmem:[#allocation3 + $0x518] sm:$0xff]
        %v3343 = vld [vmem:[#allocation3 + $0x520] sm:$0xff]
        %v3344 = vld [vmem:[#allocation3 + $0x528] sm:$0xff]
        %v3345 = vld [vmem:[#allocation3 + $0x530] sm:$0xff]
        %v3346 = vld [vmem:[#allocation3 + $0x538] sm:$0xff]
        %v3347 = vld [vmem:[#allocation3 + $0x540] sm:$0xff]
        %v3348 = vld [vmem:[#allocation3 + $0x548] sm:$0xff]
        %v3349 = vld [vmem:[#allocation3 + $0x550] sm:$0xff]
        %v3350 = vld [vmem:[#allocation3 + $0x558] sm:$0xff]
        %v3351 = vld [vmem:[#allocation3 + $0x560] sm:$0xff]
        %v3352 = vld [vmem:[#allocation3 + $0x568] sm:$0xff]
        %v3353 = vld [vmem:[#allocation3 + $0x570] sm:$0xff]
        %v3354 = vld [vmem:[#allocation3 + $0x578] sm:$0xff]
        %v3355 = vld [vmem:[#allocation3 + $0x580] sm:$0xff]
        %v3356 = vld [vmem:[#allocation3 + $0x588] sm:$0xff]
        %v3357 = vld [vmem:[#allocation3 + $0x590] sm:$0xff]
        %v3358 = vld [vmem:[#allocation3 + $0x598] sm:$0xff]
        %v3359 = vld [vmem:[#allocation3 + $0x5a0] sm:$0xff]
        %v3360 = vld [vmem:[#allocation3 + $0x5a8] sm:$0xff]
        %v3361 = vld [vmem:[#allocation3 + $0x5b0] sm:$0xff]
        %v3362 = vld [vmem:[#allocation3 + $0x5b8] sm:$0xff]
        %v3363 = vld [vmem:[#allocation3 + $0x5c0] sm:$0xff]
        %v3364 = vld [vmem:[#allocation3 + $0x5c8] sm:$0xff]
        %v3365 = vld [vmem:[#allocation3 + $0x5d0] sm:$0xff]
        %v3366 = vld [vmem:[#allocation3 + $0x5d8] sm:$0xff]
        %v3367 = vld [vmem:[#allocation3 + $0x5e0] sm:$0xff]
        %v3368 = vld [vmem:[#allocation3 + $0x5e8] sm:$0xff]
        %v3369 = vld [vmem:[#allocation3 + $0x5f0] sm:$0xff]
        %v3370 = vld [vmem:[#allocation3 + $0x5f8] sm:$0xff]
        %v3371 = vld [vmem:[#allocation3 + $0x600] sm:$0xff]
        %v3372 = vld [vmem:[#allocation3 + $0x608] sm:$0xff]
        %v3373 = vld [vmem:[#allocation3 + $0x610] sm:$0xff]
        %v3374 = vld [vmem:[#allocation3 + $0x618] sm:$0xff]
        %v3375 = vld [vmem:[#allocation3 + $0x620] sm:$0xff]
        %v3376 = vld [vmem:[#allocation3 + $0x628] sm:$0xff]
        %v3377 = vld [vmem:[#allocation3 + $0x630] sm:$0xff]
        %v3378 = vld [vmem:[#allocation3 + $0x638] sm:$0xff]
        %v3379 = vld [vmem:[#allocation3 + $0x640] sm:$0xff]
        %v3380 = vld [vmem:[#allocation3 + $0x648] sm:$0xff]
        %v3381 = vld [vmem:[#allocation3 + $0x650] sm:$0xff]
        %v3382 = vld [vmem:[#allocation3 + $0x658] sm:$0xff]
        %v3383 = vld [vmem:[#allocation3 + $0x660] sm:$0xff]
        %v3384 = vld [vmem:[#allocation3 + $0x668] sm:$0xff]
        %v3385 = vld [vmem:[#allocation3 + $0x670] sm:$0xff]
        %v3386 = vld [vmem:[#allocation3 + $0x678] sm:$0xff]
        %v3387 = vld [vmem:[#allocation3 + $0x680] sm:$0xff]
        %v3388 = vld [vmem:[#allocation3 + $0x688] sm:$0xff]
        %v3389 = vld [vmem:[#allocation3 + $0x690] sm:$0xff]
        %v3390 = vld [vmem:[#allocation3 + $0x698] sm:$0xff]
        %v3391 = vld [vmem:[#allocation3 + $0x6a0] sm:$0xff]
        %v3392 = vld [vmem:[#allocation3 + $0x6a8] sm:$0xff]
        %v3393 = vld [vmem:[#allocation3 + $0x6b0] sm:$0xff]
        %v3394 = vld [vmem:[#allocation3 + $0x6b8] sm:$0xff]
        %v3395 = vld [vmem:[#allocation3 + $0x6c0] sm:$0xff]
        %v3396 = vld [vmem:[#allocation3 + $0x6c8] sm:$0xff]
        %v3397 = vld [vmem:[#allocation3 + $0x6d0] sm:$0xff]
        %v3398 = vld [vmem:[#allocation3 + $0x6d8] sm:$0xff]
        %v3399 = vld [vmem:[#allocation3 + $0x6e0] sm:$0xff]
        %v3400 = vld [vmem:[#allocation3 + $0x6e8] sm:$0xff]
        %v3401 = vld [vmem:[#allocation3 + $0x6f0] sm:$0xff]
        %v3402 = vld [vmem:[#allocation3 + $0x6f8] sm:$0xff]
        %v3403 = vld [vmem:[#allocation3 + $0x700] sm:$0xff]
        %v3404 = vld [vmem:[#allocation3 + $0x708] sm:$0xff]
        %v3405 = vld [vmem:[#allocation3 + $0x710] sm:$0xff]
        %v3406 = vld [vmem:[#allocation3 + $0x718] sm:$0xff]
        %v3407 = vld [vmem:[#allocation3 + $0x720] sm:$0xff]
        %v3408 = vld [vmem:[#allocation3 + $0x728] sm:$0xff]
        %v3409 = vld [vmem:[#allocation3 + $0x730] sm:$0xff]
        %v3410 = vld [vmem:[#allocation3 + $0x738] sm:$0xff]
        %v3411 = vld [vmem:[#allocation3 + $0x740] sm:$0xff]
        %v3412 = vld [vmem:[#allocation3 + $0x748] sm:$0xff]
        %v3413 = vld [vmem:[#allocation3 + $0x750] sm:$0xff]
        %v3414 = vld [vmem:[#allocation3 + $0x758] sm:$0xff]
        %v3415 = vld [vmem:[#allocation3 + $0x760] sm:$0xff]
        %v3416 = vld [vmem:[#allocation3 + $0x768] sm:$0xff]
        %v3417 = vld [vmem:[#allocation3 + $0x770] sm:$0xff]
        %v3418 = vld [vmem:[#allocation3 + $0x778] sm:$0xff]
        %v3419 = vld [vmem:[#allocation3 + $0x780] sm:$0xff]
        %v3420 = vld [vmem:[#allocation3 + $0x788] sm:$0xff]
        %v3421 = vld [vmem:[#allocation3 + $0x790] sm:$0xff]
        %v3422 = vld [vmem:[#allocation3 + $0x798] sm:$0xff]
        %v3423 = vld [vmem:[#allocation3 + $0x7a0] sm:$0xff]
        %v3424 = vld [vmem:[#allocation3 + $0x7a8] sm:$0xff]
        %v3425 = vld [vmem:[#allocation3 + $0x7b0] sm:$0xff]
        %v3426 = vld [vmem:[#allocation3 + $0x7b8] sm:$0xff]
        %v3427 = vld [vmem:[#allocation3 + $0x7c0] sm:$0xff]
        %v3428 = vld [vmem:[#allocation3 + $0x7c8] sm:$0xff]
        %v3429 = vld [vmem:[#allocation3 + $0x7d0] sm:$0xff]
        %v3430 = vld [vmem:[#allocation3 + $0x7d8] sm:$0xff]
        %v3431 = vld [vmem:[#allocation3 + $0x7e0] sm:$0xff]
        %v3432 = vld [vmem:[#allocation3 + $0x7e8] sm:$0xff]
        %v3433 = vld [vmem:[#allocation3 + $0x7f0] sm:$0xff]
        %v3434 = vld [vmem:[#allocation3 + $0x7f8] sm:$0xff]
        %v3435 = vld [vmem:[#allocation3 + $0x800] sm:$0xff]
        %v3436 = vld [vmem:[#allocation3 + $0x808] sm:$0xff]
        %v3437 = vld [vmem:[#allocation3 + $0x810] sm:$0xff]
        %v3438 = vld [vmem:[#allocation3 + $0x818] sm:$0xff]
        %v3439 = vld [vmem:[#allocation3 + $0x820] sm:$0xff]
        %v3440 = vld [vmem:[#allocation3 + $0x828] sm:$0xff]
        %v3441 = vld [vmem:[#allocation3 + $0x830] sm:$0xff]
        %v3442 = vld [vmem:[#allocation3 + $0x838] sm:$0xff]
        %v3443 = vld [vmem:[#allocation3 + $0x840] sm:$0xff]
        %v3444 = vld [vmem:[#allocation3 + $0x848] sm:$0xff]
        %v3445 = vld [vmem:[#allocation3 + $0x850] sm:$0xff]
        %v3446 = vld [vmem:[#allocation3 + $0x858] sm:$0xff]
        %v3447 = vld [vmem:[#allocation3 + $0x860] sm:$0xff]
        %v3448 = vld [vmem:[#allocation3 + $0x868] sm:$0xff]
        %v3449 = vld [vmem:[#allocation3 + $0x870] sm:$0xff]
        %v3450 = vld [vmem:[#allocation3 + $0x878] sm:$0xff]
        %v3451 = vld [vmem:[#allocation3 + $0x880] sm:$0xff]
        %v3452 = vld [vmem:[#allocation3 + $0x888] sm:$0xff]
        %v3453 = vld [vmem:[#allocation3 + $0x890] sm:$0xff]
        %v3454 = vld [vmem:[#allocation3 + $0x898] sm:$0xff]
        %v3455 = vld [vmem:[#allocation3 + $0x8a0] sm:$0xff]
        %v3456 = vld [vmem:[#allocation3 + $0x8a8] sm:$0xff]
        %v3457 = vld [vmem:[#allocation3 + $0x8b0] sm:$0xff]
        %v3458 = vld [vmem:[#allocation3 + $0x8b8] sm:$0xff]
        %v3459 = vld [vmem:[#allocation3 + $0x8c0] sm:$0xff]
        %v3460 = vld [vmem:[#allocation3 + $0x8c8] sm:$0xff]
        %v3461 = vld [vmem:[#allocation3 + $0x8d0] sm:$0xff]
        %v3462 = vld [vmem:[#allocation3 + $0x8d8] sm:$0xff]
        %v3463 = vld [vmem:[#allocation3 + $0x8e0] sm:$0xff]
        %v3464 = vld [vmem:[#allocation3 + $0x8e8] sm:$0xff]
        %v3465 = vld [vmem:[#allocation3 + $0x8f0] sm:$0xff]
        %v3466 = vld [vmem:[#allocation3 + $0x8f8] sm:$0xff]
        %v3467 = vld [vmem:[#allocation4] sm:$0xff]
        %v3468 = vld [vmem:[#allocation4 + $0x8] sm:$0xff]
        %v3469 = vld [vmem:[#allocation4 + $0x10] sm:$0xff]
        %v3470 = vld [vmem:[#allocation4 + $0x18] sm:$0xff]
        %v3471 = vld [vmem:[#allocation4 + $0x20] sm:$0xff]
        %v3472 = vld [vmem:[#allocation4 + $0x28] sm:$0xff]
        %v3473 = vld [vmem:[#allocation4 + $0x30] sm:$0xff]
        %v3474 = vld [vmem:[#allocation4 + $0x38] sm:$0xff]
        %v3475 = vld [vmem:[#allocation4 + $0x40] sm:$0xff]
        %v3476 = vld [vmem:[#allocation4 + $0x48] sm:$0xff]
        %v3477 = vld [vmem:[#allocation4 + $0x50] sm:$0xff]
        %v3478 = vld [vmem:[#allocation4 + $0x58] sm:$0xff]
        %v3479 = vld [vmem:[#allocation4 + $0x60] sm:$0xff]
        %v3480 = vld [vmem:[#allocation4 + $0x68] sm:$0xff]
        %v3481 = vld [vmem:[#allocation4 + $0x70] sm:$0xff]
        %v3482 = vld [vmem:[#allocation4 + $0x78] sm:$0xff]
        %v3483 = vld [vmem:[#allocation4 + $0x80] sm:$0xff]
        %v3484 = vld [vmem:[#allocation4 + $0x88] sm:$0xff]
        %v3485 = vld [vmem:[#allocation4 + $0x90] sm:$0xff]
        %v3486 = vld [vmem:[#allocation4 + $0x98] sm:$0xff]
        %v3487 = vld [vmem:[#allocation4 + $0xa0] sm:$0xff]
        %v3488 = vld [vmem:[#allocation4 + $0xa8] sm:$0xff]
        %v3489 = vld [vmem:[#allocation4 + $0xb0] sm:$0xff]
        %v3490 = vld [vmem:[#allocation4 + $0xb8] sm:$0xff]
        %v3491 = vld [vmem:[#allocation4 + $0xc0] sm:$0xff]
        %v3492 = vld [vmem:[#allocation4 + $0xc8] sm:$0xff]
        %v3493 = vld [vmem:[#allocation4 + $0xd0] sm:$0xff]
        %v3494 = vld [vmem:[#allocation4 + $0xd8] sm:$0xff]
        %v3495 = vld [vmem:[#allocation4 + $0xe0] sm:$0xff]
        %v3496 = vld [vmem:[#allocation4 + $0xe8] sm:$0xff]
        %v3497 = vld [vmem:[#allocation4 + $0xf0] sm:$0xff]
        %v3498 = vld [vmem:[#allocation4 + $0xf8] sm:$0xff]
        %v3499 = vld [vmem:[#allocation4 + $0x100] sm:$0xff]
        %v3500 = vld [vmem:[#allocation4 + $0x108] sm:$0xff]
        %v3501 = vld [vmem:[#allocation4 + $0x110] sm:$0xff]
        %v3502 = vld [vmem:[#allocation4 + $0x118] sm:$0xff]
        %v3503 = vld [vmem:[#allocation4 + $0x120] sm:$0xff]
        %v3504 = vld [vmem:[#allocation4 + $0x128] sm:$0xff]
        %v3505 = vld [vmem:[#allocation4 + $0x130] sm:$0xff]
        %v3506 = vld [vmem:[#allocation4 + $0x138] sm:$0xff]
        %v3507 = vld [vmem:[#allocation4 + $0x140] sm:$0xff]
        %v3508 = vld [vmem:[#allocation4 + $0x148] sm:$0xff]
        %v3509 = vld [vmem:[#allocation4 + $0x150] sm:$0xff]
        %v3510 = vld [vmem:[#allocation4 + $0x158] sm:$0xff]
        %v3511 = vld [vmem:[#allocation4 + $0x160] sm:$0xff]
        %v3512 = vld [vmem:[#allocation4 + $0x168] sm:$0xff]
        %v3513 = vld [vmem:[#allocation4 + $0x170] sm:$0xff]
        %v3514 = vld [vmem:[#allocation4 + $0x178] sm:$0xff]
        %v3515 = vld [vmem:[#allocation4 + $0x180] sm:$0xff]
        %v3516 = vld [vmem:[#allocation4 + $0x188] sm:$0xff]
        %v3517 = vld [vmem:[#allocation4 + $0x190] sm:$0xff]
        %v3518 = vld [vmem:[#allocation4 + $0x198] sm:$0xff]
        %v3519 = vld [vmem:[#allocation4 + $0x1a0] sm:$0xff]
        %v3520 = vld [vmem:[#allocation4 + $0x1a8] sm:$0xff]
        %v3521 = vld [vmem:[#allocation4 + $0x1b0] sm:$0xff]
        %v3522 = vld [vmem:[#allocation4 + $0x1b8] sm:$0xff]
        %v3523 = vld [vmem:[#allocation4 + $0x1c0] sm:$0xff]
        %v3524 = vld [vmem:[#allocation4 + $0x1c8] sm:$0xff]
        %v3525 = vld [vmem:[#allocation4 + $0x1d0] sm:$0xff]
        %v3526 = vld [vmem:[#allocation4 + $0x1d8] sm:$0xff]
        %v3527 = vld [vmem:[#allocation4 + $0x1e0] sm:$0xff]
        %v3528 = vld [vmem:[#allocation4 + $0x1e8] sm:$0xff]
        %v3529 = vld [vmem:[#allocation4 + $0x1f0] sm:$0xff]
        %v3530 = vld [vmem:[#allocation4 + $0x1f8] sm:$0xff]
        %v3531 = vld [vmem:[#allocation4 + $0x200] sm:$0xff]
        %v3532 = vld [vmem:[#allocation4 + $0x208] sm:$0xff]
        %v3533 = vld [vmem:[#allocation4 + $0x210] sm:$0xff]
        %v3534 = vld [vmem:[#allocation4 + $0x218] sm:$0xff]
        %v3535 = vld [vmem:[#allocation4 + $0x220] sm:$0xff]
        %v3536 = vld [vmem:[#allocation4 + $0x228] sm:$0xff]
        %v3537 = vld [vmem:[#allocation4 + $0x230] sm:$0xff]
        %v3538 = vld [vmem:[#allocation4 + $0x238] sm:$0xff]
        %v3539 = vld [vmem:[#allocation4 + $0x240] sm:$0xff]
        %v3540 = vld [vmem:[#allocation4 + $0x248] sm:$0xff]
        %v3541 = vld [vmem:[#allocation4 + $0x250] sm:$0xff]
        %v3542 = vld [vmem:[#allocation4 + $0x258] sm:$0xff]
        %v3543 = vld [vmem:[#allocation4 + $0x260] sm:$0xff]
        %v3544 = vld [vmem:[#allocation4 + $0x268] sm:$0xff]
        %v3545 = vld [vmem:[#allocation4 + $0x270] sm:$0xff]
        %v3546 = vld [vmem:[#allocation4 + $0x278] sm:$0xff]
        %v3547 = vld [vmem:[#allocation4 + $0x280] sm:$0xff]
        %v3548 = vld [vmem:[#allocation4 + $0x288] sm:$0xff]
        %v3549 = vld [vmem:[#allocation4 + $0x290] sm:$0xff]
        %v3550 = vld [vmem:[#allocation4 + $0x298] sm:$0xff]
        %v3551 = vld [vmem:[#allocation4 + $0x2a0] sm:$0xff]
        %v3552 = vld [vmem:[#allocation4 + $0x2a8] sm:$0xff]
        %v3553 = vld [vmem:[#allocation4 + $0x2b0] sm:$0xff]
        %v3554 = vld [vmem:[#allocation4 + $0x2b8] sm:$0xff]
        %v3555 = vld [vmem:[#allocation4 + $0x2c0] sm:$0xff]
        %v3556 = vld [vmem:[#allocation4 + $0x2c8] sm:$0xff]
        %v3557 = vld [vmem:[#allocation4 + $0x2d0] sm:$0xff]
        %v3558 = vld [vmem:[#allocation4 + $0x2d8] sm:$0xff]
        %v3559 = vld [vmem:[#allocation4 + $0x2e0] sm:$0xff]
        %v3560 = vld [vmem:[#allocation4 + $0x2e8] sm:$0xff]
        %v3561 = vld [vmem:[#allocation4 + $0x2f0] sm:$0xff]
        %v3562 = vld [vmem:[#allocation4 + $0x2f8] sm:$0xff]
        %v3563 = vld [vmem:[#allocation4 + $0x300] sm:$0xff]
        %v3564 = vld [vmem:[#allocation4 + $0x308] sm:$0xff]
        %v3565 = vld [vmem:[#allocation4 + $0x310] sm:$0xff]
        %v3566 = vld [vmem:[#allocation4 + $0x318] sm:$0xff]
        %v3567 = vld [vmem:[#allocation4 + $0x320] sm:$0xff]
        %v3568 = vld [vmem:[#allocation4 + $0x328] sm:$0xff]
        %v3569 = vld [vmem:[#allocation4 + $0x330] sm:$0xff]
        %v3570 = vld [vmem:[#allocation4 + $0x338] sm:$0xff]
        %v3571 = vld [vmem:[#allocation4 + $0x340] sm:$0xff]
        %v3572 = vld [vmem:[#allocation4 + $0x348] sm:$0xff]
        %v3573 = vld [vmem:[#allocation4 + $0x350] sm:$0xff]
        %v3574 = vld [vmem:[#allocation4 + $0x358] sm:$0xff]
        %v3575 = vld [vmem:[#allocation4 + $0x360] sm:$0xff]
        %v3576 = vld [vmem:[#allocation4 + $0x368] sm:$0xff]
        %v3577 = vld [vmem:[#allocation4 + $0x370] sm:$0xff]
        %v3578 = vld [vmem:[#allocation4 + $0x378] sm:$0xff]
        %v3579 = vld [vmem:[#allocation4 + $0x380] sm:$0xff]
        %v3580 = vld [vmem:[#allocation4 + $0x388] sm:$0xff]
        %v3581 = vld [vmem:[#allocation4 + $0x390] sm:$0xff]
        %v3582 = vld [vmem:[#allocation4 + $0x398] sm:$0xff]
        %v3583 = vld [vmem:[#allocation4 + $0x3a0] sm:$0xff]
        %v3584 = vld [vmem:[#allocation4 + $0x3a8] sm:$0xff]
        %v3585 = vld [vmem:[#allocation4 + $0x3b0] sm:$0xff]
        %v3586 = vld [vmem:[#allocation4 + $0x3b8] sm:$0xff]
        %v3587 = vld [vmem:[#allocation4 + $0x3c0] sm:$0xff]
        %v3588 = vld [vmem:[#allocation4 + $0x3c8] sm:$0xff]
        %v3589 = vld [vmem:[#allocation4 + $0x3d0] sm:$0xff]
        %v3590 = vld [vmem:[#allocation4 + $0x3d8] sm:$0xff]
        %v3591 = vld [vmem:[#allocation4 + $0x3e0] sm:$0xff]
        %v3592 = vld [vmem:[#allocation4 + $0x3e8] sm:$0xff]
        %v3593 = vld [vmem:[#allocation4 + $0x3f0] sm:$0xff]
        %v3594 = vld [vmem:[#allocation4 + $0x3f8] sm:$0xff]
        %v3595 = vld [vmem:[#allocation4 + $0x400] sm:$0xff]
        %v3596 = vld [vmem:[#allocation4 + $0x408] sm:$0xff]
        %v3597 = vld [vmem:[#allocation4 + $0x410] sm:$0xff]
        %v3598 = vld [vmem:[#allocation4 + $0x418] sm:$0xff]
        %v3599 = vld [vmem:[#allocation4 + $0x420] sm:$0xff]
        %v3600 = vld [vmem:[#allocation4 + $0x428] sm:$0xff]
        %v3601 = vld [vmem:[#allocation4 + $0x430] sm:$0xff]
        %v3602 = vld [vmem:[#allocation4 + $0x438] sm:$0xff]
        %v3603 = vld [vmem:[#allocation4 + $0x440] sm:$0xff]
        %v3604 = vld [vmem:[#allocation4 + $0x448] sm:$0xff]
        %v3605 = vld [vmem:[#allocation4 + $0x450] sm:$0xff]
        %v3606 = vld [vmem:[#allocation4 + $0x458] sm:$0xff]
        %v3607 = vld [vmem:[#allocation4 + $0x460] sm:$0xff]
        %v3608 = vld [vmem:[#allocation4 + $0x468] sm:$0xff]
        %v3609 = vld [vmem:[#allocation4 + $0x470] sm:$0xff]
        %v3610 = vld [vmem:[#allocation4 + $0x478] sm:$0xff]
        %3611 = vmatprep.subr.mxu0 0.0
        %3612 = vmatpush1.msra.mxu0 %v3467
        %3613 = vmatprep.subr.mxu0 0.0
        %3614 = vmatpush1.msra.mxu0 %v3468
        %3615 = vmatprep.subr.mxu0 0.0
        %3616 = vmatpush1.msra.mxu0 %v3469
        %3617 = vmatprep.subr.mxu0 0.0
        %3618 = vmatpush1.msra.mxu0 %v3470
        %3619 = vmatprep.subr.mxu0 0.0
        %3620 = vmatpush1.msra.mxu0 %v3471
        %3621 = vmatprep.subr.mxu0 0.0
        %3622 = vmatpush1.msra.mxu0 %v3472
        %3623 = vmatprep.subr.mxu0 0.0
        %3624 = vmatpush1.msra.mxu0 %v3473
        %3625 = vmatprep.subr.mxu0 0.0
        %3626 = vmatpush1.msra.mxu0 %v3474
        %3627 = vmatprep.subr.mxu0 0.0
        %3628 = vmatpush1.msra.mxu0 %v3475
        %3629 = vmatprep.subr.mxu0 0.0
        %3630 = vmatpush1.msra.mxu0 %v3476
        %3631 = vmatprep.subr.mxu0 0.0
        %3632 = vmatpush1.msra.mxu0 %v3477
        %3633 = vmatprep.subr.mxu0 0.0
        %3634 = vmatpush1.msra.mxu0 %v3478
        %3635 = vmatprep.subr.mxu0 0.0
        %3636 = vmatpush1.msra.mxu0 %v3479
        %3637 = vmatprep.subr.mxu0 0.0
        %3638 = vmatpush1.msra.mxu0 %v3480
        %3639 = vmatprep.subr.mxu0 0.0
        %3640 = vmatpush1.msra.mxu0 %v3481
        %3641 = vmatprep.subr.mxu0 0.0
        %3642 = vmatpush1.msra.mxu0 %v3482
        %3643 = vmatprep.subr.mxu0 0.0
        %3644 = vmatpush1.msra.mxu0 %v3483
        %3645 = vmatprep.subr.mxu0 0.0
        %3646 = vmatpush1.msra.mxu0 %v3484
        %3647 = vmatprep.subr.mxu0 0.0
        %3648 = vmatpush1.msra.mxu0 %v3485
        %3649 = vmatprep.subr.mxu0 0.0
        %3650 = vmatpush1.msra.mxu0 %v3486
        %3651 = vmatprep.subr.mxu0 0.0
        %3652 = vmatpush1.msra.mxu0 %v3487
        %3653 = vmatprep.subr.mxu0 0.0
        %3654 = vmatpush1.msra.mxu0 %v3488
        %3655 = vmatprep.subr.mxu0 0.0
        %3656 = vmatpush1.msra.mxu0 %v3489
        %3657 = vmatprep.subr.mxu0 0.0
        %3658 = vmatpush1.msra.mxu0 %v3490
        %3659 = vmatprep.subr.mxu0 0.0
        %3660 = vmatpush1.msra.mxu0 %v3491
        %3661 = vmatprep.subr.mxu0 0.0
        %3662 = vmatpush1.msra.mxu0 %v3492
        %3663 = vmatprep.subr.mxu0 0.0
        %3664 = vmatpush1.msra.mxu0 %v3493
        %3665 = vmatprep.subr.mxu0 0.0
        %3666 = vmatpush1.msra.mxu0 %v3494
        %3667 = vmatprep.subr.mxu0 0.0
        %3668 = vmatpush1.msra.mxu0 %v3495
        %3669 = vmatprep.subr.mxu0 0.0
        %3670 = vmatpush1.msra.mxu0 %v3496
        %3671 = vmatprep.subr.mxu0 0.0
        %3672 = vmatpush1.msra.mxu0 %v3497
        %3673 = vmatprep.subr.mxu0 0.0
        %3674 = vmatpush1.msra.mxu0 %v3498
        %3675 = vmatprep.mubr.f32.mxu0 %v3180
        %3676 = vmatmul.mubr.f32.gmra.mrb[0].mxu0 %v3179
        %v3677 = vpop.f32.mrb[0].mxu0
        %v3678 = vadd.f32 0.0, %v3677
        %v3679 = vpop.f32.mrb[0].mxu0
        %3680 = vmatprep.mubr.f32.mxu0 %v3189
        %3681 = vmatmul.mubr.f32.gmra.mrb[0].mxu0 %v3188
        %v3682 = vpop.f32.mrb[0].mxu0
        %v3683 = vadd.f32 0.0, %v3682
        %v3684 = vpop.f32.mrb[0].mxu0
        %3685 = vmatprep.mubr.f32.mxu0 %v3198
        %3686 = vmatmul.mubr.f32.gmra.mrb[0].mxu0 %v3197
        %v3687 = vpop.f32.mrb[0].mxu0
        %v3688 = vadd.f32 0.0, %v3687
        %v3689 = vpop.f32.mrb[0].mxu0
        %3690 = vmatprep.mubr.f32.mxu0 %v3207
        %3691 = vmatmul.mubr.f32.gmra.mrb[0].mxu0 %v3206
        %v3692 = vpop.f32.mrb[0].mxu0
        %v3693 = vadd.f32 0.0, %v3692
        %v3694 = vpop.f32.mrb[0].mxu0
        %3695 = vmatprep.mubr.f32.mxu0 %v3216
        %3696 = vmatmul.mubr.f32.gmra.mrb[0].mxu0 %v3215
        %v3697 = vpop.f32.mrb[0].mxu0
        %v3698 = vadd.f32 0.0, %v3697
        %v3699 = vpop.f32.mrb[0].mxu0
        %3700 = vmatprep.mubr.f32.mxu0 %v3225
        %3701 = vmatmul.mubr.f32.gmra.mrb[0].mxu0 %v3224
        %v3702 = vpop.f32.mrb[0].mxu0
        %v3703 = vadd.f32 0.0, %v3702
        %v3704 = vpop.f32.mrb[0].mxu0
        %3705 = vmatprep.mubr.f32.mxu0 %v3234
        %3706 = vmatmul.mubr.f32.gmra.mrb[0].mxu0 %v3233
        %v3707 = vpop.f32.mrb[0].mxu0
        %v3708 = vadd.f32 0.0, %v3707
        %v3709 = vpop.f32.mrb[0].mxu0
        %3710 = vmatprep.mubr.f32.mxu0 %v3243
        %3711 = vmatmul.mubr.f32.gmra.mrb[0].mxu0 %v3242
        %v3712 = vpop.f32.mrb[0].mxu0
        %v3713 = vadd.f32 0.0, %v3712
        %v3714 = vpop.f32.mrb[0].mxu0
        %3715 = vmatprep.mubr.f32.mxu0 %v3252
        %3716 = vmatmul.mubr.f32.gmra.mrb[0].mxu0 %v3251
        %v3717 = vpop.f32.mrb[0].mxu0
        %v3718 = vadd.f32 0.0, %v3717
        %v3719 = vpop.f32.mrb[0].mxu0
        %3720 = vmatprep.mubr.f32.mxu0 %v3261
        %3721 = vmatmul.mubr.f32.gmra.mrb[0].mxu0 %v3260
        %v3722 = vpop.f32.mrb[0].mxu0
        %v3723 = vadd.f32 0.0, %v3722
        %v3724 = vpop.f32.mrb[0].mxu0
        %3725 = vmatprep.mubr.f32.mxu0 %v3270
        %3726 = vmatmul.mubr.f32.gmra.mrb[0].mxu0 %v3269
        %v3727 = vpop.f32.mrb[0].mxu0
        %v3728 = vadd.f32 0.0, %v3727
        %v3729 = vpop.f32.mrb[0].mxu0
        %3730 = vmatprep.mubr.f32.mxu0 %v3279
        %3731 = vmatmul.mubr.f32.gmra.mrb[0].mxu0 %v3278
        %v3732 = vpop.f32.mrb[0].mxu0
        %v3733 = vadd.f32 0.0, %v3732
        %v3734 = vpop.f32.mrb[0].mxu0
        %3735 = vmatprep.mubr.f32.mxu0 %v3288
        %3736 = vmatmul.mubr.f32.gmra.mrb[0].mxu0 %v3287
        %v3737 = vpop.f32.mrb[0].mxu0
        %v3738 = vadd.f32 0.0, %v3737
        %v3739 = vpop.f32.mrb[0].mxu0
        %3740 = vmatprep.mubr.f32.mxu0 %v3297
        %3741 = vmatmul.mubr.f32.gmra.mrb[0].mxu0 %v3296
        %v3742 = vpop.f32.mrb[0].mxu0
        %v3743 = vadd.f32 0.0, %v3742
        %v3744 = vpop.f32.mrb[0].mxu0
        %3745 = vmatprep.mubr.f32.mxu0 %v3306
        %3746 = vmatmul.mubr.f32.gmra.mrb[0].mxu0 %v3305
        %v3747 = vpop.f32.mrb[0].mxu0
        %v3748 = vadd.f32 0.0, %v3747
        %v3749 = vpop.f32.mrb[0].mxu0
        %3750 = vmatprep.mubr.f32.mxu0 %v3315
        %3751 = vmatmul.mubr.f32.gmra.mrb[0].mxu0 %v3314
        %v3752 = vpop.f32.mrb[0].mxu0
        %v3753 = vadd.f32 0.0, %v3752
        %v3754 = vpop.f32.mrb[0].mxu0
        %3755 = vmatprep.mubr.f32.mxu0 %v3324
        %3756 = vmatmul.mubr.f32.gmra.mrb[0].mxu0 %v3323
        %v3757 = vpop.f32.mrb[0].mxu0
        %v3758 = vadd.f32 0.0, %v3757
        %v3759 = vpop.f32.mrb[0].mxu0
        %3760 = vmatprep.mubr.f32.mxu0 %v3333
        %3761 = vmatmul.mubr.f32.gmra.mrb[0].mxu0 %v3332
        %v3762 = vpop.f32.mrb[0].mxu0
        %v3763 = vadd.f32 0.0, %v3762
        %v3764 = vpop.f32.mrb[0].mxu0
        %3765 = vmatprep.mubr.f32.mxu0 %v3342
        %3766 = vmatmul.mubr.f32.gmra.mrb[0].mxu0 %v3341
        %v3767 = vpop.f32.mrb[0].mxu0
        %v3768 = vadd.f32 0.0, %v3767
        %v3769 = vpop.f32.mrb[0].mxu0
        %3770 = vmatprep.mubr.f32.mxu0 %v3351
        %3771 = vmatmul.mubr.f32.gmra.mrb[0].mxu0 %v3350
        %v3772 = vpop.f32.mrb[0].mxu0
        %v3773 = vadd.f32 0.0, %v3772
        %v3774 = vpop.f32.mrb[0].mxu0
        %3775 = vmatprep.mubr.f32.mxu0 %v3360
        %3776 = vmatmul.mubr.f32.gmra.mrb[0].mxu0 %v3359
        %v3777 = vpop.f32.mrb[0].mxu0
        %v3778 = vadd.f32 0.0, %v3777
        %v3779 = vpop.f32.mrb[0].mxu0
        %3780 = vmatprep.mubr.f32.mxu0 %v3369
        %3781 = vmatmul.mubr.f32.gmra.mrb[0].mxu0 %v3368
        %v3782 = vpop.f32.mrb[0].mxu0
        %v3783 = vadd.f32 0.0, %v3782
        %v3784 = vpop.f32.mrb[0].mxu0
        %3785 = vmatprep.mubr.f32.mxu0 %v3378
        %3786 = vmatmul.mubr.f32.gmra.mrb[0].mxu0 %v3377
        %v3787 = vpop.f32.mrb[0].mxu0
        %v3788 = vadd.f32 0.0, %v3787
        %v3789 = vpop.f32.mrb[0].mxu0
        %3790 = vmatprep.mubr.f32.mxu0 %v3387
        %3791 = vmatmul.mubr.f32.gmra.mrb[0].mxu0 %v3386
        %v3792 = vpop.f32.mrb[0].mxu0
        %v3793 = vadd.f32 0.0, %v3792
        %v3794 = vpop.f32.mrb[0].mxu0
        %3795 = vmatprep.mubr.f32.mxu0 %v3396
        %3796 = vmatmul.mubr.f32.gmra.mrb[0].mxu0 %v3395
        %v3797 = vpop.f32.mrb[0].mxu0
        %v3798 = vadd.f32 0.0, %v3797
        %v3799 = vpop.f32.mrb[0].mxu0
        %3800 = vmatprep.mubr.f32.mxu0 %v3405
        %3801 = vmatmul.mubr.f32.gmra.mrb[0].mxu0 %v3404
        %v3802 = vpop.f32.mrb[0].mxu0
        %v3803 = vadd.f32 0.0, %v3802
        %v3804 = vpop.f32.mrb[0].mxu0
        %3805 = vmatprep.mubr.f32.mxu0 %v3414
        %3806 = vmatmul.mubr.f32.gmra.mrb[0].mxu0 %v3413
        %v3807 = vpop.f32.mrb[0].mxu0
        %v3808 = vadd.f32 0.0, %v3807
        %v3809 = vpop.f32.mrb[0].mxu0
        %3810 = vmatprep.mubr.f32.mxu0 %v3423
        %3811 = vmatmul.mubr.f32.gmra.mrb[0].mxu0 %v3422
        %v3812 = vpop.f32.mrb[0].mxu0
        %v3813 = vadd.f32 0.0, %v3812
        %v3814 = vpop.f32.mrb[0].mxu0
        %3815 = vmatprep.mubr.f32.mxu0 %v3432
        %3816 = vmatmul.mubr.f32.gmra.mrb[0].mxu0 %v3431
        %v3817 = vpop.f32.mrb[0].mxu0
        %v3818 = vadd.f32 0.0, %v3817
        %v3819 = vpop.f32.mrb[0].mxu0
        %3820 = vmatprep.mubr.f32.mxu0 %v3441
        %3821 = vmatmul.mubr.f32.gmra.mrb[0].mxu0 %v3440
        %v3822 = vpop.f32.mrb[0].mxu0
        %v3823 = vadd.f32 0.0, %v3822
        %v3824 = vpop.f32.mrb[0].mxu0
        %3825 = vmatprep.mubr.f32.mxu0 %v3450
        %3826 = vmatmul.mubr.f32.gmra.mrb[0].mxu0 %v3449
        %v3827 = vpop.f32.mrb[0].mxu0
        %v3828 = vadd.f32 0.0, %v3827
        %v3829 = vpop.f32.mrb[0].mxu0
        %3830 = vmatprep.mubr.f32.mxu0 %v3459
        %3831 = vmatmul.mubr.f32.gmra.mrb[0].mxu0 %v3458
        %v3832 = vpop.f32.mrb[0].mxu0
        %v3833 = vadd.f32 0.0, %v3832
        %v3834 = vpop.f32.mrb[0].mxu0
        %3835 = vdwg.mxu0
        %3836 = vmatprep.subr.mxu0 0.0
        %3837 = vmatpush1.msra.mxu0 %v3499
        %3838 = vmatprep.subr.mxu0 0.0
        %3839 = vmatpush1.msra.mxu0 %v3500
        %3840 = vmatprep.subr.mxu0 0.0
        %3841 = vmatpush1.msra.mxu0 %v3501
        %3842 = vmatprep.subr.mxu0 0.0
        %3843 = vmatpush1.msra.mxu0 %v3502
        %3844 = vmatprep.subr.mxu0 0.0
        %3845 = vmatpush1.msra.mxu0 %v3503
        %3846 = vmatprep.subr.mxu0 0.0
        %3847 = vmatpush1.msra.mxu0 %v3504
        %3848 = vmatprep.subr.mxu0 0.0
        %3849 = vmatpush1.msra.mxu0 %v3505
        %3850 = vmatprep.subr.mxu0 0.0
        %3851 = vmatpush1.msra.mxu0 %v3506
        %3852 = vmatprep.subr.mxu0 0.0
        %3853 = vmatpush1.msra.mxu0 %v3507
        %3854 = vmatprep.subr.mxu0 0.0
        %3855 = vmatpush1.msra.mxu0 %v3508
        %3856 = vmatprep.subr.mxu0 0.0
        %3857 = vmatpush1.msra.mxu0 %v3509
        %3858 = vmatprep.subr.mxu0 0.0
        %3859 = vmatpush1.msra.mxu0 %v3510
        %3860 = vmatprep.subr.mxu0 0.0
        %3861 = vmatpush1.msra.mxu0 %v3511
        %3862 = vmatprep.subr.mxu0 0.0
        %3863 = vmatpush1.msra.mxu0 %v3512
        %3864 = vmatprep.subr.mxu0 0.0
        %3865 = vmatpush1.msra.mxu0 %v3513
        %3866 = vmatprep.subr.mxu0 0.0
        %3867 = vmatpush1.msra.mxu0 %v3514
        %3868 = vmatprep.subr.mxu0 0.0
        %3869 = vmatpush1.msra.mxu0 %v3515
        %3870 = vmatprep.subr.mxu0 0.0
        %3871 = vmatpush1.msra.mxu0 %v3516
        %3872 = vmatprep.subr.mxu0 0.0
        %3873 = vmatpush1.msra.mxu0 %v3517
        %3874 = vmatprep.subr.mxu0 0.0
        %3875 = vmatpush1.msra.mxu0 %v3518
        %3876 = vmatprep.subr.mxu0 0.0
        %3877 = vmatpush1.msra.mxu0 %v3519
        %3878 = vmatprep.subr.mxu0 0.0
        %3879 = vmatpush1.msra.mxu0 %v3520
        %3880 = vmatprep.subr.mxu0 0.0
        %3881 = vmatpush1.msra.mxu0 %v3521
        %3882 = vmatprep.subr.mxu0 0.0
        %3883 = vmatpush1.msra.mxu0 %v3522
        %3884 = vmatprep.subr.mxu0 0.0
        %3885 = vmatpush1.msra.mxu0 %v3523
        %3886 = vmatprep.subr.mxu0 0.0
        %3887 = vmatpush1.msra.mxu0 %v3524
        %3888 = vmatprep.subr.mxu0 0.0
        %3889 = vmatpush1.msra.mxu0 %v3525
        %3890 = vmatprep.subr.mxu0 0.0
        %3891 = vmatpush1.msra.mxu0 %v3526
        %3892 = vmatprep.subr.mxu0 0.0
        %3893 = vmatpush1.msra.mxu0 %v3527
        %3894 = vmatprep.subr.mxu0 0.0
        %3895 = vmatpush1.msra.mxu0 %v3528
        %3896 = vmatprep.subr.mxu0 0.0
        %3897 = vmatpush1.msra.mxu0 %v3529
        %3898 = vmatprep.subr.mxu0 0.0
        %3899 = vmatpush1.msra.mxu0 %v3530
        %3900 = vmatprep.mubr.f32.mxu0 %v3182
        %3901 = vmatmul.mubr.f32.gmra.mrb[0].mxu0 %v3181
        %v3902 = vpop.f32.mrb[0].mxu0
        %v3903 = vadd.f32 %v3678, %v3902
        %v3904 = vpop.f32.mrb[0].mxu0
        %3905 = vmatprep.mubr.f32.mxu0 %v3191
        %3906 = vmatmul.mubr.f32.gmra.mrb[0].mxu0 %v3190
        %v3907 = vpop.f32.mrb[0].mxu0
        %v3908 = vadd.f32 %v3683, %v3907
        %v3909 = vpop.f32.mrb[0].mxu0
        %3910 = vmatprep.mubr.f32.mxu0 %v3200
        %3911 = vmatmul.mubr.f32.gmra.mrb[0].mxu0 %v3199
        %v3912 = vpop.f32.mrb[0].mxu0
        %v3913 = vadd.f32 %v3688, %v3912
        %v3914 = vpop.f32.mrb[0].mxu0
        %3915 = vmatprep.mubr.f32.mxu0 %v3209
        %3916 = vmatmul.mubr.f32.gmra.mrb[0].mxu0 %v3208
        %v3917 = vpop.f32.mrb[0].mxu0
        %v3918 = vadd.f32 %v3693, %v3917
        %v3919 = vpop.f32.mrb[0].mxu0
        %3920 = vmatprep.mubr.f32.mxu0 %v3218
        %3921 = vmatmul.mubr.f32.gmra.mrb[0].mxu0 %v3217
        %v3922 = vpop.f32.mrb[0].mxu0
        %v3923 = vadd.f32 %v3698, %v3922
        %v3924 = vpop.f32.mrb[0].mxu0
        %3925 = vmatprep.mubr.f32.mxu0 %v3227
        %3926 = vmatmul.mubr.f32.gmra.mrb[0].mxu0 %v3226
        %v3927 = vpop.f32.mrb[0].mxu0
        %v3928 = vadd.f32 %v3703, %v3927
        %v3929 = vpop.f32.mrb[0].mxu0
        %3930 = vmatprep.mubr.f32.mxu0 %v3236
        %3931 = vmatmul.mubr.f32.gmra.mrb[0].mxu0 %v3235
        %v3932 = vpop.f32.mrb[0].mxu0
        %v3933 = vadd.f32 %v3708, %v3932
        %v3934 = vpop.f32.mrb[0].mxu0
        %3935 = vmatprep.mubr.f32.mxu0 %v3245
        %3936 = vmatmul.mubr.f32.gmra.mrb[0].mxu0 %v3244
        %v3937 = vpop.f32.mrb[0].mxu0
        %v3938 = vadd.f32 %v3713, %v3937
        %v3939 = vpop.f32.mrb[0].mxu0
        %3940 = vmatprep.mubr.f32.mxu0 %v3254
        %3941 = vmatmul.mubr.f32.gmra.mrb[0].mxu0 %v3253
        %v3942 = vpop.f32.mrb[0].mxu0
        %v3943 = vadd.f32 %v3718, %v3942
        %v3944 = vpop.f32.mrb[0].mxu0
        %3945 = vmatprep.mubr.f32.mxu0 %v3263
        %3946 = vmatmul.mubr.f32.gmra.mrb[0].mxu0 %v3262
        %v3947 = vpop.f32.mrb[0].mxu0
        %v3948 = vadd.f32 %v3723, %v3947
        %v3949 = vpop.f32.mrb[0].mxu0
        %3950 = vmatprep.mubr.f32.mxu0 %v3272
        %3951 = vmatmul.mubr.f32.gmra.mrb[0].mxu0 %v3271
        %v3952 = vpop.f32.mrb[0].mxu0
        %v3953 = vadd.f32 %v3728, %v3952
        %v3954 = vpop.f32.mrb[0].mxu0
        %3955 = vmatprep.mubr.f32.mxu0 %v3281
        %3956 = vmatmul.mubr.f32.gmra.mrb[0].mxu0 %v3280
        %v3957 = vpop.f32.mrb[0].mxu0
        %v3958 = vadd.f32 %v3733, %v3957
        %v3959 = vpop.f32.mrb[0].mxu0
        %3960 = vmatprep.mubr.f32.mxu0 %v3290
        %3961 = vmatmul.mubr.f32.gmra.mrb[0].mxu0 %v3289
        %v3962 = vpop.f32.mrb[0].mxu0
        %v3963 = vadd.f32 %v3738, %v3962
        %v3964 = vpop.f32.mrb[0].mxu0
        %3965 = vmatprep.mubr.f32.mxu0 %v3299
        %3966 = vmatmul.mubr.f32.gmra.mrb[0].mxu0 %v3298
        %v3967 = vpop.f32.mrb[0].mxu0
        %v3968 = vadd.f32 %v3743, %v3967
        %v3969 = vpop.f32.mrb[0].mxu0
        %3970 = vmatprep.mubr.f32.mxu0 %v3308
        %3971 = vmatmul.mubr.f32.gmra.mrb[0].mxu0 %v3307
        %v3972 = vpop.f32.mrb[0].mxu0
        %v3973 = vadd.f32 %v3748, %v3972
        %v3974 = vpop.f32.mrb[0].mxu0
        %3975 = vmatprep.mubr.f32.mxu0 %v3317
        %3976 = vmatmul.mubr.f32.gmra.mrb[0].mxu0 %v3316
        %v3977 = vpop.f32.mrb[0].mxu0
        %v3978 = vadd.f32 %v3753, %v3977
        %v3979 = vpop.f32.mrb[0].mxu0
        %3980 = vmatprep.mubr.f32.mxu0 %v3326
        %3981 = vmatmul.mubr.f32.gmra.mrb[0].mxu0 %v3325
        %v3982 = vpop.f32.mrb[0].mxu0
        %v3983 = vadd.f32 %v3758, %v3982
        %v3984 = vpop.f32.mrb[0].mxu0
        %3985 = vmatprep.mubr.f32.mxu0 %v3335
        %3986 = vmatmul.mubr.f32.gmra.mrb[0].mxu0 %v3334
        %v3987 = vpop.f32.mrb[0].mxu0
        %v3988 = vadd.f32 %v3763, %v3987
        %v3989 = vpop.f32.mrb[0].mxu0
        %3990 = vmatprep.mubr.f32.mxu0 %v3344
        %3991 = vmatmul.mubr.f32.gmra.mrb[0].mxu0 %v3343
        %v3992 = vpop.f32.mrb[0].mxu0
        %v3993 = vadd.f32 %v3768, %v3992
        %v3994 = vpop.f32.mrb[0].mxu0
        %3995 = vmatprep.mubr.f32.mxu0 %v3353
        %3996 = vmatmul.mubr.f32.gmra.mrb[0].mxu0 %v3352
        %v3997 = vpop.f32.mrb[0].mxu0
        %v3998 = vadd.f32 %v3773, %v3997
        %v3999 = vpop.f32.mrb[0].mxu0
        %4000 = vmatprep.mubr.f32.mxu0 %v3362
        %4001 = vmatmul.mubr.f32.gmra.mrb[0].mxu0 %v3361
        %v4002 = vpop.f32.mrb[0].mxu0
        %v4003 = vadd.f32 %v3778, %v4002
        %v4004 = vpop.f32.mrb[0].mxu0
        %4005 = vmatprep.mubr.f32.mxu0 %v3371
        %4006 = vmatmul.mubr.f32.gmra.mrb[0].mxu0 %v3370
        %v4007 = vpop.f32.mrb[0].mxu0
        %v4008 = vadd.f32 %v3783, %v4007
        %v4009 = vpop.f32.mrb[0].mxu0
        %4010 = vmatprep.mubr.f32.mxu0 %v3380
        %4011 = vmatmul.mubr.f32.gmra.mrb[0].mxu0 %v3379
        %v4012 = vpop.f32.mrb[0].mxu0
        %v4013 = vadd.f32 %v3788, %v4012
        %v4014 = vpop.f32.mrb[0].mxu0
        %4015 = vmatprep.mubr.f32.mxu0 %v3389
        %4016 = vmatmul.mubr.f32.gmra.mrb[0].mxu0 %v3388
        %v4017 = vpop.f32.mrb[0].mxu0
        %v4018 = vadd.f32 %v3793, %v4017
        %v4019 = vpop.f32.mrb[0].mxu0
        %4020 = vmatprep.mubr.f32.mxu0 %v3398
        %4021 = vmatmul.mubr.f32.gmra.mrb[0].mxu0 %v3397
        %v4022 = vpop.f32.mrb[0].mxu0
        %v4023 = vadd.f32 %v3798, %v4022
        %v4024 = vpop.f32.mrb[0].mxu0
        %4025 = vmatprep.mubr.f32.mxu0 %v3407
        %4026 = vmatmul.mubr.f32.gmra.mrb[0].mxu0 %v3406
        %v4027 = vpop.f32.mrb[0].mxu0
        %v4028 = vadd.f32 %v3803, %v4027
        %v4029 = vpop.f32.mrb[0].mxu0
        %4030 = vmatprep.mubr.f32.mxu0 %v3416
        %4031 = vmatmul.mubr.f32.gmra.mrb[0].mxu0 %v3415
        %v4032 = vpop.f32.mrb[0].mxu0
        %v4033 = vadd.f32 %v3808, %v4032
        %v4034 = vpop.f32.mrb[0].mxu0
        %4035 = vmatprep.mubr.f32.mxu0 %v3425
        %4036 = vmatmul.mubr.f32.gmra.mrb[0].mxu0 %v3424
        %v4037 = vpop.f32.mrb[0].mxu0
        %v4038 = vadd.f32 %v3813, %v4037
        %v4039 = vpop.f32.mrb[0].mxu0
        %4040 = vmatprep.mubr.f32.mxu0 %v3434
        %4041 = vmatmul.mubr.f32.gmra.mrb[0].mxu0 %v3433
        %v4042 = vpop.f32.mrb[0].mxu0
        %v4043 = vadd.f32 %v3818, %v4042
        %v4044 = vpop.f32.mrb[0].mxu0
        %4045 = vmatprep.mubr.f32.mxu0 %v3443
        %4046 = vmatmul.mubr.f32.gmra.mrb[0].mxu0 %v3442
        %v4047 = vpop.f32.mrb[0].mxu0
        %v4048 = vadd.f32 %v3823, %v4047
        %v4049 = vpop.f32.mrb[0].mxu0
        %4050 = vmatprep.mubr.f32.mxu0 %v3452
        %4051 = vmatmul.mubr.f32.gmra.mrb[0].mxu0 %v3451
        %v4052 = vpop.f32.mrb[0].mxu0
        %v4053 = vadd.f32 %v3828, %v4052
        %v4054 = vpop.f32.mrb[0].mxu0
        %4055 = vmatprep.mubr.f32.mxu0 %v3461
        %4056 = vmatmul.mubr.f32.gmra.mrb[0].mxu0 %v3460
        %v4057 = vpop.f32.mrb[0].mxu0
        %v4058 = vadd.f32 %v3833, %v4057
        %v4059 = vpop.f32.mrb[0].mxu0
        %4060 = vdwg.mxu0
        %4061 = vmatprep.subr.mxu0 0.0
        %4062 = vmatpush1.msra.mxu0 %v3531
        %4063 = vmatprep.subr.mxu0 0.0
        %4064 = vmatpush1.msra.mxu0 %v3532
        %4065 = vmatprep.subr.mxu0 0.0
        %4066 = vmatpush1.msra.mxu0 %v3533
        %4067 = vmatprep.subr.mxu0 0.0
        %4068 = vmatpush1.msra.mxu0 %v3534
        %4069 = vmatprep.subr.mxu0 0.0
        %4070 = vmatpush1.msra.mxu0 %v3535
        %4071 = vmatprep.subr.mxu0 0.0
        %4072 = vmatpush1.msra.mxu0 %v3536
        %4073 = vmatprep.subr.mxu0 0.0
        %4074 = vmatpush1.msra.mxu0 %v3537
        %4075 = vmatprep.subr.mxu0 0.0
        %4076 = vmatpush1.msra.mxu0 %v3538
        %4077 = vmatprep.subr.mxu0 0.0
        %4078 = vmatpush1.msra.mxu0 %v3539
        %4079 = vmatprep.subr.mxu0 0.0
        %4080 = vmatpush1.msra.mxu0 %v3540
        %4081 = vmatprep.subr.mxu0 0.0
        %4082 = vmatpush1.msra.mxu0 %v3541
        %4083 = vmatprep.subr.mxu0 0.0
        %4084 = vmatpush1.msra.mxu0 %v3542
        %4085 = vmatprep.subr.mxu0 0.0
        %4086 = vmatpush1.msra.mxu0 %v3543
        %4087 = vmatprep.subr.mxu0 0.0
        %4088 = vmatpush1.msra.mxu0 %v3544
        %4089 = vmatprep.subr.mxu0 0.0
        %4090 = vmatpush1.msra.mxu0 %v3545
        %4091 = vmatprep.subr.mxu0 0.0
        %4092 = vmatpush1.msra.mxu0 %v3546
        %4093 = vmatprep.subr.mxu0 0.0
        %4094 = vmatpush1.msra.mxu0 %v3547
        %4095 = vmatprep.subr.mxu0 0.0
        %4096 = vmatpush1.msra.mxu0 %v3548
        %4097 = vmatprep.subr.mxu0 0.0
        %4098 = vmatpush1.msra.mxu0 %v3549
        %4099 = vmatprep.subr.mxu0 0.0
        %4100 = vmatpush1.msra.mxu0 %v3550
        %4101 = vmatprep.subr.mxu0 0.0
        %4102 = vmatpush1.msra.mxu0 %v3551
        %4103 = vmatprep.subr.mxu0 0.0
        %4104 = vmatpush1.msra.mxu0 %v3552
        %4105 = vmatprep.subr.mxu0 0.0
        %4106 = vmatpush1.msra.mxu0 %v3553
        %4107 = vmatprep.subr.mxu0 0.0
        %4108 = vmatpush1.msra.mxu0 %v3554
        %4109 = vmatprep.subr.mxu0 0.0
        %4110 = vmatpush1.msra.mxu0 %v3555
        %4111 = vmatprep.subr.mxu0 0.0
        %4112 = vmatpush1.msra.mxu0 %v3556
        %4113 = vmatprep.subr.mxu0 0.0
        %4114 = vmatpush1.msra.mxu0 %v3557
        %4115 = vmatprep.subr.mxu0 0.0
        %4116 = vmatpush1.msra.mxu0 %v3558
        %4117 = vmatprep.subr.mxu0 0.0
        %4118 = vmatpush1.msra.mxu0 %v3559
        %4119 = vmatprep.subr.mxu0 0.0
        %4120 = vmatpush1.msra.mxu0 %v3560
        %4121 = vmatprep.subr.mxu0 0.0
        %4122 = vmatpush1.msra.mxu0 %v3561
        %4123 = vmatprep.subr.mxu0 0.0
        %4124 = vmatpush1.msra.mxu0 %v3562
        %4125 = vmatprep.mubr.f32.mxu0 %v3184
        %4126 = vmatmul.mubr.f32.gmra.mrb[0].mxu0 %v3183
        %v4127 = vpop.f32.mrb[0].mxu0
        %v4128 = vadd.f32 %v3903, %v4127
        %v4129 = vpop.f32.mrb[0].mxu0
        %4130 = vmatprep.mubr.f32.mxu0 %v3193
        %4131 = vmatmul.mubr.f32.gmra.mrb[0].mxu0 %v3192
        %v4132 = vpop.f32.mrb[0].mxu0
        %v4133 = vadd.f32 %v3908, %v4132
        %v4134 = vpop.f32.mrb[0].mxu0
        %4135 = vmatprep.mubr.f32.mxu0 %v3202
        %4136 = vmatmul.mubr.f32.gmra.mrb[0].mxu0 %v3201
        %v4137 = vpop.f32.mrb[0].mxu0
        %v4138 = vadd.f32 %v3913, %v4137
        %v4139 = vpop.f32.mrb[0].mxu0
        %4140 = vmatprep.mubr.f32.mxu0 %v3211
        %4141 = vmatmul.mubr.f32.gmra.mrb[0].mxu0 %v3210
        %v4142 = vpop.f32.mrb[0].mxu0
        %v4143 = vadd.f32 %v3918, %v4142
        %v4144 = vpop.f32.mrb[0].mxu0
        %4145 = vmatprep.mubr.f32.mxu0 %v3220
        %4146 = vmatmul.mubr.f32.gmra.mrb[0].mxu0 %v3219
        %v4147 = vpop.f32.mrb[0].mxu0
        %v4148 = vadd.f32 %v3923, %v4147
        %v4149 = vpop.f32.mrb[0].mxu0
        %4150 = vmatprep.mubr.f32.mxu0 %v3229
        %4151 = vmatmul.mubr.f32.gmra.mrb[0].mxu0 %v3228
        %v4152 = vpop.f32.mrb[0].mxu0
        %v4153 = vadd.f32 %v3928, %v4152
        %v4154 = vpop.f32.mrb[0].mxu0
        %4155 = vmatprep.mubr.f32.mxu0 %v3238
        %4156 = vmatmul.mubr.f32.gmra.mrb[0].mxu0 %v3237
        %v4157 = vpop.f32.mrb[0].mxu0
        %v4158 = vadd.f32 %v3933, %v4157
        %v4159 = vpop.f32.mrb[0].mxu0
        %4160 = vmatprep.mubr.f32.mxu0 %v3247
        %4161 = vmatmul.mubr.f32.gmra.mrb[0].mxu0 %v3246
        %v4162 = vpop.f32.mrb[0].mxu0
        %v4163 = vadd.f32 %v3938, %v4162
        %v4164 = vpop.f32.mrb[0].mxu0
        %4165 = vmatprep.mubr.f32.mxu0 %v3256
        %4166 = vmatmul.mubr.f32.gmra.mrb[0].mxu0 %v3255
        %v4167 = vpop.f32.mrb[0].mxu0
        %v4168 = vadd.f32 %v3943, %v4167
        %v4169 = vpop.f32.mrb[0].mxu0
        %4170 = vmatprep.mubr.f32.mxu0 %v3265
        %4171 = vmatmul.mubr.f32.gmra.mrb[0].mxu0 %v3264
        %v4172 = vpop.f32.mrb[0].mxu0
        %v4173 = vadd.f32 %v3948, %v4172
        %v4174 = vpop.f32.mrb[0].mxu0
        %4175 = vmatprep.mubr.f32.mxu0 %v3274
        %4176 = vmatmul.mubr.f32.gmra.mrb[0].mxu0 %v3273
        %v4177 = vpop.f32.mrb[0].mxu0
        %v4178 = vadd.f32 %v3953, %v4177
        %v4179 = vpop.f32.mrb[0].mxu0
        %4180 = vmatprep.mubr.f32.mxu0 %v3283
        %4181 = vmatmul.mubr.f32.gmra.mrb[0].mxu0 %v3282
        %v4182 = vpop.f32.mrb[0].mxu0
        %v4183 = vadd.f32 %v3958, %v4182
        %v4184 = vpop.f32.mrb[0].mxu0
        %4185 = vmatprep.mubr.f32.mxu0 %v3292
        %4186 = vmatmul.mubr.f32.gmra.mrb[0].mxu0 %v3291
        %v4187 = vpop.f32.mrb[0].mxu0
        %v4188 = vadd.f32 %v3963, %v4187
        %v4189 = vpop.f32.mrb[0].mxu0
        %4190 = vmatprep.mubr.f32.mxu0 %v3301
        %4191 = vmatmul.mubr.f32.gmra.mrb[0].mxu0 %v3300
        %v4192 = vpop.f32.mrb[0].mxu0
        %v4193 = vadd.f32 %v3968, %v4192
        %v4194 = vpop.f32.mrb[0].mxu0
        %4195 = vmatprep.mubr.f32.mxu0 %v3310
        %4196 = vmatmul.mubr.f32.gmra.mrb[0].mxu0 %v3309
        %v4197 = vpop.f32.mrb[0].mxu0
        %v4198 = vadd.f32 %v3973, %v4197
        %v4199 = vpop.f32.mrb[0].mxu0
        %4200 = vmatprep.mubr.f32.mxu0 %v3319
        %4201 = vmatmul.mubr.f32.gmra.mrb[0].mxu0 %v3318
        %v4202 = vpop.f32.mrb[0].mxu0
        %v4203 = vadd.f32 %v3978, %v4202
        %v4204 = vpop.f32.mrb[0].mxu0
        %4205 = vmatprep.mubr.f32.mxu0 %v3328
        %4206 = vmatmul.mubr.f32.gmra.mrb[0].mxu0 %v3327
        %v4207 = vpop.f32.mrb[0].mxu0
        %v4208 = vadd.f32 %v3983, %v4207
        %v4209 = vpop.f32.mrb[0].mxu0
        %4210 = vmatprep.mubr.f32.mxu0 %v3337
        %4211 = vmatmul.mubr.f32.gmra.mrb[0].mxu0 %v3336
        %v4212 = vpop.f32.mrb[0].mxu0
        %v4213 = vadd.f32 %v3988, %v4212
        %v4214 = vpop.f32.mrb[0].mxu0
        %4215 = vmatprep.mubr.f32.mxu0 %v3346
        %4216 = vmatmul.mubr.f32.gmra.mrb[0].mxu0 %v3345
        %v4217 = vpop.f32.mrb[0].mxu0
        %v4218 = vadd.f32 %v3993, %v4217
        %v4219 = vpop.f32.mrb[0].mxu0
        %4220 = vmatprep.mubr.f32.mxu0 %v3355
        %4221 = vmatmul.mubr.f32.gmra.mrb[0].mxu0 %v3354
        %v4222 = vpop.f32.mrb[0].mxu0
        %v4223 = vadd.f32 %v3998, %v4222
        %v4224 = vpop.f32.mrb[0].mxu0
        %4225 = vmatprep.mubr.f32.mxu0 %v3364
        %4226 = vmatmul.mubr.f32.gmra.mrb[0].mxu0 %v3363
        %v4227 = vpop.f32.mrb[0].mxu0
        %v4228 = vadd.f32 %v4003, %v4227
        %v4229 = vpop.f32.mrb[0].mxu0
        %4230 = vmatprep.mubr.f32.mxu0 %v3373
        %4231 = vmatmul.mubr.f32.gmra.mrb[0].mxu0 %v3372
        %v4232 = vpop.f32.mrb[0].mxu0
        %v4233 = vadd.f32 %v4008, %v4232
        %v4234 = vpop.f32.mrb[0].mxu0
        %4235 = vmatprep.mubr.f32.mxu0 %v3382
        %4236 = vmatmul.mubr.f32.gmra.mrb[0].mxu0 %v3381
        %v4237 = vpop.f32.mrb[0].mxu0
        %v4238 = vadd.f32 %v4013, %v4237
        %v4239 = vpop.f32.mrb[0].mxu0
        %4240 = vmatprep.mubr.f32.mxu0 %v3391
        %4241 = vmatmul.mubr.f32.gmra.mrb[0].mxu0 %v3390
        %v4242 = vpop.f32.mrb[0].mxu0
        %v4243 = vadd.f32 %v4018, %v4242
        %v4244 = vpop.f32.mrb[0].mxu0
        %4245 = vmatprep.mubr.f32.mxu0 %v3400
        %4246 = vmatmul.mubr.f32.gmra.mrb[0].mxu0 %v3399
        %v4247 = vpop.f32.mrb[0].mxu0
        %v4248 = vadd.f32 %v4023, %v4247
        %v4249 = vpop.f32.mrb[0].mxu0
        %4250 = vmatprep.mubr.f32.mxu0 %v3409
        %4251 = vmatmul.mubr.f32.gmra.mrb[0].mxu0 %v3408
        %v4252 = vpop.f32.mrb[0].mxu0
        %v4253 = vadd.f32 %v4028, %v4252
        %v4254 = vpop.f32.mrb[0].mxu0
        %4255 = vmatprep.mubr.f32.mxu0 %v3418
        %4256 = vmatmul.mubr.f32.gmra.mrb[0].mxu0 %v3417
        %v4257 = vpop.f32.mrb[0].mxu0
        %v4258 = vadd.f32 %v4033, %v4257
        %v4259 = vpop.f32.mrb[0].mxu0
        %4260 = vmatprep.mubr.f32.mxu0 %v3427
        %4261 = vmatmul.mubr.f32.gmra.mrb[0].mxu0 %v3426
        %v4262 = vpop.f32.mrb[0].mxu0
        %v4263 = vadd.f32 %v4038, %v4262
        %v4264 = vpop.f32.mrb[0].mxu0
        %4265 = vmatprep.mubr.f32.mxu0 %v3436
        %4266 = vmatmul.mubr.f32.gmra.mrb[0].mxu0 %v3435
        %v4267 = vpop.f32.mrb[0].mxu0
        %v4268 = vadd.f32 %v4043, %v4267
        %v4269 = vpop.f32.mrb[0].mxu0
        %4270 = vmatprep.mubr.f32.mxu0 %v3445
        %4271 = vmatmul.mubr.f32.gmra.mrb[0].mxu0 %v3444
        %v4272 = vpop.f32.mrb[0].mxu0
        %v4273 = vadd.f32 %v4048, %v4272
        %v4274 = vpop.f32.mrb[0].mxu0
        %4275 = vmatprep.mubr.f32.mxu0 %v3454
        %4276 = vmatmul.mubr.f32.gmra.mrb[0].mxu0 %v3453
        %v4277 = vpop.f32.mrb[0].mxu0
        %v4278 = vadd.f32 %v4053, %v4277
        %v4279 = vpop.f32.mrb[0].mxu0
        %4280 = vmatprep.mubr.f32.mxu0 %v3463
        %4281 = vmatmul.mubr.f32.gmra.mrb[0].mxu0 %v3462
        %v4282 = vpop.f32.mrb[0].mxu0
        %v4283 = vadd.f32 %v4058, %v4282
        %v4284 = vpop.f32.mrb[0].mxu0
        %4285 = vdwg.mxu0
        %4286 = vmatprep.subr.mxu0 0.0
        %4287 = vmatpush1.msra.mxu0 %v3563
        %4288 = vmatprep.subr.mxu0 0.0
        %4289 = vmatpush1.msra.mxu0 %v3564
        %4290 = vmatprep.subr.mxu0 0.0
        %4291 = vmatpush1.msra.mxu0 %v3565
        %4292 = vmatprep.subr.mxu0 0.0
        %4293 = vmatpush1.msra.mxu0 %v3566
        %4294 = vmatprep.subr.mxu0 0.0
        %4295 = vmatpush1.msra.mxu0 %v3567
        %4296 = vmatprep.subr.mxu0 0.0
        %4297 = vmatpush1.msra.mxu0 %v3568
        %4298 = vmatprep.subr.mxu0 0.0
        %4299 = vmatpush1.msra.mxu0 %v3569
        %4300 = vmatprep.subr.mxu0 0.0
        %4301 = vmatpush1.msra.mxu0 %v3570
        %4302 = vmatprep.subr.mxu0 0.0
        %4303 = vmatpush1.msra.mxu0 %v3571
        %4304 = vmatprep.subr.mxu0 0.0
        %4305 = vmatpush1.msra.mxu0 %v3572
        %4306 = vmatprep.subr.mxu0 0.0
        %4307 = vmatpush1.msra.mxu0 %v3573
        %4308 = vmatprep.subr.mxu0 0.0
        %4309 = vmatpush1.msra.mxu0 %v3574
        %4310 = vmatprep.subr.mxu0 0.0
        %4311 = vmatpush1.msra.mxu0 %v3575
        %4312 = vmatprep.subr.mxu0 0.0
        %4313 = vmatpush1.msra.mxu0 %v3576
        %4314 = vmatprep.subr.mxu0 0.0
        %4315 = vmatpush1.msra.mxu0 %v3577
        %4316 = vmatprep.subr.mxu0 0.0
        %4317 = vmatpush1.msra.mxu0 %v3578
        %4318 = vmatprep.subr.mxu0 0.0
        %4319 = vmatpush1.msra.mxu0 %v3579
        %4320 = vmatprep.subr.mxu0 0.0
        %4321 = vmatpush1.msra.mxu0 %v3580
        %4322 = vmatprep.subr.mxu0 0.0
        %4323 = vmatpush1.msra.mxu0 %v3581
        %4324 = vmatprep.subr.mxu0 0.0
        %4325 = vmatpush1.msra.mxu0 %v3582
        %4326 = vmatprep.subr.mxu0 0.0
        %4327 = vmatpush1.msra.mxu0 %v3583
        %4328 = vmatprep.subr.mxu0 0.0
        %4329 = vmatpush1.msra.mxu0 %v3584
        %4330 = vmatprep.subr.mxu0 0.0
        %4331 = vmatpush1.msra.mxu0 %v3585
        %4332 = vmatprep.subr.mxu0 0.0
        %4333 = vmatpush1.msra.mxu0 %v3586
        %4334 = vmatprep.subr.mxu0 0.0
        %4335 = vmatpush1.msra.mxu0 %v3587
        %4336 = vmatprep.subr.mxu0 0.0
        %4337 = vmatpush1.msra.mxu0 %v3588
        %4338 = vmatprep.subr.mxu0 0.0
        %4339 = vmatpush1.msra.mxu0 %v3589
        %4340 = vmatprep.subr.mxu0 0.0
        %4341 = vmatpush1.msra.mxu0 %v3590
        %4342 = vmatprep.subr.mxu0 0.0
        %4343 = vmatpush1.msra.mxu0 %v3591
        %4344 = vmatprep.subr.mxu0 0.0
        %4345 = vmatpush1.msra.mxu0 %v3592
        %4346 = vmatprep.subr.mxu0 0.0
        %4347 = vmatpush1.msra.mxu0 %v3593
        %4348 = vmatprep.subr.mxu0 0.0
        %4349 = vmatpush1.msra.mxu0 %v3594
        %4350 = vmatprep.mubr.f32.mxu0 %v3186
        %4351 = vmatmul.mubr.f32.gmra.mrb[0].mxu0 %v3185
        %v4352 = vpop.f32.mrb[0].mxu0
        %v4353 = vadd.f32 %v4128, %v4352
        %v4354 = vpop.f32.mrb[0].mxu0
        %4355 = vmatprep.mubr.f32.mxu0 %v3195
        %4356 = vmatmul.mubr.f32.gmra.mrb[0].mxu0 %v3194
        %v4357 = vpop.f32.mrb[0].mxu0
        %v4358 = vadd.f32 %v4133, %v4357
        %v4359 = vpop.f32.mrb[0].mxu0
        %4360 = vmatprep.mubr.f32.mxu0 %v3204
        %4361 = vmatmul.mubr.f32.gmra.mrb[0].mxu0 %v3203
        %v4362 = vpop.f32.mrb[0].mxu0
        %v4363 = vadd.f32 %v4138, %v4362
        %v4364 = vpop.f32.mrb[0].mxu0
        %4365 = vmatprep.mubr.f32.mxu0 %v3213
        %4366 = vmatmul.mubr.f32.gmra.mrb[0].mxu0 %v3212
        %v4367 = vpop.f32.mrb[0].mxu0
        %v4368 = vadd.f32 %v4143, %v4367
        %v4369 = vpop.f32.mrb[0].mxu0
        %4370 = vmatprep.mubr.f32.mxu0 %v3222
        %4371 = vmatmul.mubr.f32.gmra.mrb[0].mxu0 %v3221
        %v4372 = vpop.f32.mrb[0].mxu0
        %v4373 = vadd.f32 %v4148, %v4372
        %v4374 = vpop.f32.mrb[0].mxu0
        %4375 = vmatprep.mubr.f32.mxu0 %v3231
        %4376 = vmatmul.mubr.f32.gmra.mrb[0].mxu0 %v3230
        %v4377 = vpop.f32.mrb[0].mxu0
        %v4378 = vadd.f32 %v4153, %v4377
        %v4379 = vpop.f32.mrb[0].mxu0
        %4380 = vmatprep.mubr.f32.mxu0 %v3240
        %4381 = vmatmul.mubr.f32.gmra.mrb[0].mxu0 %v3239
        %v4382 = vpop.f32.mrb[0].mxu0
        %v4383 = vadd.f32 %v4158, %v4382
        %v4384 = vpop.f32.mrb[0].mxu0
        %4385 = vmatprep.mubr.f32.mxu0 %v3249
        %4386 = vmatmul.mubr.f32.gmra.mrb[0].mxu0 %v3248
        %v4387 = vpop.f32.mrb[0].mxu0
        %v4388 = vadd.f32 %v4163, %v4387
        %v4389 = vpop.f32.mrb[0].mxu0
        %4390 = vmatprep.mubr.f32.mxu0 %v3258
        %4391 = vmatmul.mubr.f32.gmra.mrb[0].mxu0 %v3257
        %v4392 = vpop.f32.mrb[0].mxu0
        %v4393 = vadd.f32 %v4168, %v4392
        %v4394 = vpop.f32.mrb[0].mxu0
        %4395 = vmatprep.mubr.f32.mxu0 %v3267
        %4396 = vmatmul.mubr.f32.gmra.mrb[0].mxu0 %v3266
        %v4397 = vpop.f32.mrb[0].mxu0
        %v4398 = vadd.f32 %v4173, %v4397
        %v4399 = vpop.f32.mrb[0].mxu0
        %4400 = vmatprep.mubr.f32.mxu0 %v3276
        %4401 = vmatmul.mubr.f32.gmra.mrb[0].mxu0 %v3275
        %v4402 = vpop.f32.mrb[0].mxu0
        %v4403 = vadd.f32 %v4178, %v4402
        %v4404 = vpop.f32.mrb[0].mxu0
        %4405 = vmatprep.mubr.f32.mxu0 %v3285
        %4406 = vmatmul.mubr.f32.gmra.mrb[0].mxu0 %v3284
        %v4407 = vpop.f32.mrb[0].mxu0
        %v4408 = vadd.f32 %v4183, %v4407
        %v4409 = vpop.f32.mrb[0].mxu0
        %4410 = vmatprep.mubr.f32.mxu0 %v3294
        %4411 = vmatmul.mubr.f32.gmra.mrb[0].mxu0 %v3293
        %v4412 = vpop.f32.mrb[0].mxu0
        %v4413 = vadd.f32 %v4188, %v4412
        %v4414 = vpop.f32.mrb[0].mxu0
        %4415 = vmatprep.mubr.f32.mxu0 %v3303
        %4416 = vmatmul.mubr.f32.gmra.mrb[0].mxu0 %v3302
        %v4417 = vpop.f32.mrb[0].mxu0
        %v4418 = vadd.f32 %v4193, %v4417
        %v4419 = vpop.f32.mrb[0].mxu0
        %4420 = vmatprep.mubr.f32.mxu0 %v3312
        %4421 = vmatmul.mubr.f32.gmra.mrb[0].mxu0 %v3311
        %v4422 = vpop.f32.mrb[0].mxu0
        %v4423 = vadd.f32 %v4198, %v4422
        %v4424 = vpop.f32.mrb[0].mxu0
        %4425 = vmatprep.mubr.f32.mxu0 %v3321
        %4426 = vmatmul.mubr.f32.gmra.mrb[0].mxu0 %v3320
        %v4427 = vpop.f32.mrb[0].mxu0
        %v4428 = vadd.f32 %v4203, %v4427
        %v4429 = vpop.f32.mrb[0].mxu0
        %4430 = vmatprep.mubr.f32.mxu0 %v3330
        %4431 = vmatmul.mubr.f32.gmra.mrb[0].mxu0 %v3329
        %v4432 = vpop.f32.mrb[0].mxu0
        %v4433 = vadd.f32 %v4208, %v4432
        %v4434 = vpop.f32.mrb[0].mxu0
        %4435 = vmatprep.mubr.f32.mxu0 %v3339
        %4436 = vmatmul.mubr.f32.gmra.mrb[0].mxu0 %v3338
        %v4437 = vpop.f32.mrb[0].mxu0
        %v4438 = vadd.f32 %v4213, %v4437
        %v4439 = vpop.f32.mrb[0].mxu0
        %4440 = vmatprep.mubr.f32.mxu0 %v3348
        %4441 = vmatmul.mubr.f32.gmra.mrb[0].mxu0 %v3347
        %v4442 = vpop.f32.mrb[0].mxu0
        %v4443 = vadd.f32 %v4218, %v4442
        %v4444 = vpop.f32.mrb[0].mxu0
        %4445 = vmatprep.mubr.f32.mxu0 %v3357
        %4446 = vmatmul.mubr.f32.gmra.mrb[0].mxu0 %v3356
        %v4447 = vpop.f32.mrb[0].mxu0
        %v4448 = vadd.f32 %v4223, %v4447
        %v4449 = vpop.f32.mrb[0].mxu0
        %4450 = vmatprep.mubr.f32.mxu0 %v3366
        %4451 = vmatmul.mubr.f32.gmra.mrb[0].mxu0 %v3365
        %v4452 = vpop.f32.mrb[0].mxu0
        %v4453 = vadd.f32 %v4228, %v4452
        %v4454 = vpop.f32.mrb[0].mxu0
        %4455 = vmatprep.mubr.f32.mxu0 %v3375
        %4456 = vmatmul.mubr.f32.gmra.mrb[0].mxu0 %v3374
        %v4457 = vpop.f32.mrb[0].mxu0
        %v4458 = vadd.f32 %v4233, %v4457
        %v4459 = vpop.f32.mrb[0].mxu0
        %4460 = vmatprep.mubr.f32.mxu0 %v3384
        %4461 = vmatmul.mubr.f32.gmra.mrb[0].mxu0 %v3383
        %v4462 = vpop.f32.mrb[0].mxu0
        %v4463 = vadd.f32 %v4238, %v4462
        %v4464 = vpop.f32.mrb[0].mxu0
        %4465 = vmatprep.mubr.f32.mxu0 %v3393
        %4466 = vmatmul.mubr.f32.gmra.mrb[0].mxu0 %v3392
        %v4467 = vpop.f32.mrb[0].mxu0
        %v4468 = vadd.f32 %v4243, %v4467
        %v4469 = vpop.f32.mrb[0].mxu0
        %4470 = vmatprep.mubr.f32.mxu0 %v3402
        %4471 = vmatmul.mubr.f32.gmra.mrb[0].mxu0 %v3401
        %v4472 = vpop.f32.mrb[0].mxu0
        %v4473 = vadd.f32 %v4248, %v4472
        %v4474 = vpop.f32.mrb[0].mxu0
        %4475 = vmatprep.mubr.f32.mxu0 %v3411
        %4476 = vmatmul.mubr.f32.gmra.mrb[0].mxu0 %v3410
        %v4477 = vpop.f32.mrb[0].mxu0
        %v4478 = vadd.f32 %v4253, %v4477
        %v4479 = vpop.f32.mrb[0].mxu0
        %4480 = vmatprep.mubr.f32.mxu0 %v3420
        %4481 = vmatmul.mubr.f32.gmra.mrb[0].mxu0 %v3419
        %v4482 = vpop.f32.mrb[0].mxu0
        %v4483 = vadd.f32 %v4258, %v4482
        %v4484 = vpop.f32.mrb[0].mxu0
        %4485 = vmatprep.mubr.f32.mxu0 %v3429
        %4486 = vmatmul.mubr.f32.gmra.mrb[0].mxu0 %v3428
        %v4487 = vpop.f32.mrb[0].mxu0
        %v4488 = vadd.f32 %v4263, %v4487
        %v4489 = vpop.f32.mrb[0].mxu0
        %4490 = vmatprep.mubr.f32.mxu0 %v3438
        %4491 = vmatmul.mubr.f32.gmra.mrb[0].mxu0 %v3437
        %v4492 = vpop.f32.mrb[0].mxu0
        %v4493 = vadd.f32 %v4268, %v4492
        %v4494 = vpop.f32.mrb[0].mxu0
        %4495 = vmatprep.mubr.f32.mxu0 %v3447
        %4496 = vmatmul.mubr.f32.gmra.mrb[0].mxu0 %v3446
        %v4497 = vpop.f32.mrb[0].mxu0
        %v4498 = vadd.f32 %v4273, %v4497
        %v4499 = vpop.f32.mrb[0].mxu0
        %4500 = vmatprep.mubr.f32.mxu0 %v3456
        %4501 = vmatmul.mubr.f32.gmra.mrb[0].mxu0 %v3455
        %v4502 = vpop.f32.mrb[0].mxu0
        %v4503 = vadd.f32 %v4278, %v4502
        %v4504 = vpop.f32.mrb[0].mxu0
        %4505 = vmatprep.mubr.f32.mxu0 %v3465
        %4506 = vmatmul.mubr.f32.gmra.mrb[0].mxu0 %v3464
        %v4507 = vpop.f32.mrb[0].mxu0
        %v4508 = vadd.f32 %v4283, %v4507
        %v4509 = vpop.f32.mrb[0].mxu0
        %4510 = vdwg.mxu0
        %4511 = vmatprep.subr.mxu0 0.0
        %4512 = vmatpush1.msra.mxu0 %v3595
        %4513 = vmatprep.subr.mxu0 0.0
        %4514 = vmatpush1.msra.mxu0 %v3596
        %4515 = vmatprep.subr.mxu0 0.0
        %4516 = vmatpush1.msra.mxu0 %v3597
        %4517 = vmatprep.subr.mxu0 0.0
        %4518 = vmatpush1.msra.mxu0 %v3598
        %4519 = vmatprep.subr.mxu0 0.0
        %4520 = vmatpush1.msra.mxu0 %v3599
        %4521 = vmatprep.subr.mxu0 0.0
        %4522 = vmatpush1.msra.mxu0 %v3600
        %4523 = vmatprep.subr.mxu0 0.0
        %4524 = vmatpush1.msra.mxu0 %v3601
        %4525 = vmatprep.subr.mxu0 0.0
        %4526 = vmatpush1.msra.mxu0 %v3602
        %4527 = vmatprep.subr.mxu0 0.0
        %4528 = vmatpush1.msra.mxu0 %v3603
        %4529 = vmatprep.subr.mxu0 0.0
        %4530 = vmatpush1.msra.mxu0 %v3604
        %4531 = vmatprep.subr.mxu0 0.0
        %4532 = vmatpush1.msra.mxu0 %v3605
        %4533 = vmatprep.subr.mxu0 0.0
        %4534 = vmatpush1.msra.mxu0 %v3606
        %4535 = vmatprep.subr.mxu0 0.0
        %4536 = vmatpush1.msra.mxu0 %v3607
        %4537 = vmatprep.subr.mxu0 0.0
        %4538 = vmatpush1.msra.mxu0 %v3608
        %4539 = vmatprep.subr.mxu0 0.0
        %4540 = vmatpush1.msra.mxu0 %v3609
        %4541 = vmatprep.subr.mxu0 0.0
        %4542 = vmatpush1.msra.mxu0 %v3610
        %4543 = vmatprep.subr.mxu0 0.0
        %4544 = vmatpush1.msra.mxu0 0.0
        %4545 = vmatprep.subr.mxu0 0.0
        %4546 = vmatpush1.msra.mxu0 0.0
        %4547 = vmatprep.subr.mxu0 0.0
        %4548 = vmatpush1.msra.mxu0 0.0
        %4549 = vmatprep.subr.mxu0 0.0
        %4550 = vmatpush1.msra.mxu0 0.0
        %4551 = vmatprep.subr.mxu0 0.0
        %4552 = vmatpush1.msra.mxu0 0.0
        %4553 = vmatprep.subr.mxu0 0.0
        %4554 = vmatpush1.msra.mxu0 0.0
        %4555 = vmatprep.subr.mxu0 0.0
        %4556 = vmatpush1.msra.mxu0 0.0
        %4557 = vmatprep.subr.mxu0 0.0
        %4558 = vmatpush1.msra.mxu0 0.0
        %4559 = vmatprep.subr.mxu0 0.0
        %4560 = vmatpush1.msra.mxu0 0.0
        %4561 = vmatprep.subr.mxu0 0.0
        %4562 = vmatpush1.msra.mxu0 0.0
        %4563 = vmatprep.subr.mxu0 0.0
        %4564 = vmatpush1.msra.mxu0 0.0
        %4565 = vmatprep.subr.mxu0 0.0
        %4566 = vmatpush1.msra.mxu0 0.0
        %4567 = vmatprep.subr.mxu0 0.0
        %4568 = vmatpush1.msra.mxu0 0.0
        %4569 = vmatprep.subr.mxu0 0.0
        %4570 = vmatpush1.msra.mxu0 0.0
        %4571 = vmatprep.subr.mxu0 0.0
        %4572 = vmatpush1.msra.mxu0 0.0
        %4573 = vmatprep.subr.mxu0 0.0
        %4574 = vmatpush1.msra.mxu0 0.0
        %4575 = vmatprep.mubr.f32.mxu0 0.0
        %4576 = vmatmul.mubr.f32.gmra.mrb[0].mxu0 %v3187
        %v4577 = vpop.f32.mrb[0].mxu0
        %v4578 = vadd.f32 %v4353, %v4577
        %v4579 = vpop.f32.mrb[0].mxu0
        %4580 = vmatprep.mubr.f32.mxu0 0.0
        %4581 = vmatmul.mubr.f32.gmra.mrb[0].mxu0 %v3196
        %v4582 = vpop.f32.mrb[0].mxu0
        %v4583 = vadd.f32 %v4358, %v4582
        %v4584 = vpop.f32.mrb[0].mxu0
        %4585 = vmatprep.mubr.f32.mxu0 0.0
        %4586 = vmatmul.mubr.f32.gmra.mrb[0].mxu0 %v3205
        %v4587 = vpop.f32.mrb[0].mxu0
        %v4588 = vadd.f32 %v4363, %v4587
        %v4589 = vpop.f32.mrb[0].mxu0
        %4590 = vmatprep.mubr.f32.mxu0 0.0
        %4591 = vmatmul.mubr.f32.gmra.mrb[0].mxu0 %v3214
        %v4592 = vpop.f32.mrb[0].mxu0
        %v4593 = vadd.f32 %v4368, %v4592
        %v4594 = vpop.f32.mrb[0].mxu0
        %4595 = vmatprep.mubr.f32.mxu0 0.0
        %4596 = vmatmul.mubr.f32.gmra.mrb[0].mxu0 %v3223
        %v4597 = vpop.f32.mrb[0].mxu0
        %v4598 = vadd.f32 %v4373, %v4597
        %v4599 = vpop.f32.mrb[0].mxu0
        %4600 = vmatprep.mubr.f32.mxu0 0.0
        %4601 = vmatmul.mubr.f32.gmra.mrb[0].mxu0 %v3232
        %v4602 = vpop.f32.mrb[0].mxu0
        %v4603 = vadd.f32 %v4378, %v4602
        %v4604 = vpop.f32.mrb[0].mxu0
        %4605 = vmatprep.mubr.f32.mxu0 0.0
        %4606 = vmatmul.mubr.f32.gmra.mrb[0].mxu0 %v3241
        %v4607 = vpop.f32.mrb[0].mxu0
        %v4608 = vadd.f32 %v4383, %v4607
        %v4609 = vpop.f32.mrb[0].mxu0
        %4610 = vmatprep.mubr.f32.mxu0 0.0
        %4611 = vmatmul.mubr.f32.gmra.mrb[0].mxu0 %v3250
        %v4612 = vpop.f32.mrb[0].mxu0
        %v4613 = vadd.f32 %v4388, %v4612
        %v4614 = vpop.f32.mrb[0].mxu0
        %4615 = vmatprep.mubr.f32.mxu0 0.0
        %4616 = vmatmul.mubr.f32.gmra.mrb[0].mxu0 %v3259
        %v4617 = vpop.f32.mrb[0].mxu0
        %v4618 = vadd.f32 %v4393, %v4617
        %v4619 = vpop.f32.mrb[0].mxu0
        %4620 = vmatprep.mubr.f32.mxu0 0.0
        %4621 = vmatmul.mubr.f32.gmra.mrb[0].mxu0 %v3268
        %v4622 = vpop.f32.mrb[0].mxu0
        %v4623 = vadd.f32 %v4398, %v4622
        %v4624 = vpop.f32.mrb[0].mxu0
        %4625 = vmatprep.mubr.f32.mxu0 0.0
        %4626 = vmatmul.mubr.f32.gmra.mrb[0].mxu0 %v3277
        %v4627 = vpop.f32.mrb[0].mxu0
        %v4628 = vadd.f32 %v4403, %v4627
        %v4629 = vpop.f32.mrb[0].mxu0
        %4630 = vmatprep.mubr.f32.mxu0 0.0
        %4631 = vmatmul.mubr.f32.gmra.mrb[0].mxu0 %v3286
        %v4632 = vpop.f32.mrb[0].mxu0
        %v4633 = vadd.f32 %v4408, %v4632
        %v4634 = vpop.f32.mrb[0].mxu0
        %4635 = vmatprep.mubr.f32.mxu0 0.0
        %4636 = vmatmul.mubr.f32.gmra.mrb[0].mxu0 %v3295
        %v4637 = vpop.f32.mrb[0].mxu0
        %v4638 = vadd.f32 %v4413, %v4637
        %v4639 = vpop.f32.mrb[0].mxu0
        %4640 = vmatprep.mubr.f32.mxu0 0.0
        %4641 = vmatmul.mubr.f32.gmra.mrb[0].mxu0 %v3304
        %v4642 = vpop.f32.mrb[0].mxu0
        %v4643 = vadd.f32 %v4418, %v4642
        %v4644 = vpop.f32.mrb[0].mxu0
        %4645 = vmatprep.mubr.f32.mxu0 0.0
        %4646 = vmatmul.mubr.f32.gmra.mrb[0].mxu0 %v3313
        %v4647 = vpop.f32.mrb[0].mxu0
        %v4648 = vadd.f32 %v4423, %v4647
        %v4649 = vpop.f32.mrb[0].mxu0
        %4650 = vmatprep.mubr.f32.mxu0 0.0
        %4651 = vmatmul.mubr.f32.gmra.mrb[0].mxu0 %v3322
        %v4652 = vpop.f32.mrb[0].mxu0
        %v4653 = vadd.f32 %v4428, %v4652
        %v4654 = vpop.f32.mrb[0].mxu0
        %4655 = vmatprep.mubr.f32.mxu0 0.0
        %4656 = vmatmul.mubr.f32.gmra.mrb[0].mxu0 %v3331
        %v4657 = vpop.f32.mrb[0].mxu0
        %v4658 = vadd.f32 %v4433, %v4657
        %v4659 = vpop.f32.mrb[0].mxu0
        %4660 = vmatprep.mubr.f32.mxu0 0.0
        %4661 = vmatmul.mubr.f32.gmra.mrb[0].mxu0 %v3340
        %v4662 = vpop.f32.mrb[0].mxu0
        %v4663 = vadd.f32 %v4438, %v4662
        %v4664 = vpop.f32.mrb[0].mxu0
        %4665 = vmatprep.mubr.f32.mxu0 0.0
        %4666 = vmatmul.mubr.f32.gmra.mrb[0].mxu0 %v3349
        %v4667 = vpop.f32.mrb[0].mxu0
        %v4668 = vadd.f32 %v4443, %v4667
        %v4669 = vpop.f32.mrb[0].mxu0
        %4670 = vmatprep.mubr.f32.mxu0 0.0
        %4671 = vmatmul.mubr.f32.gmra.mrb[0].mxu0 %v3358
        %v4672 = vpop.f32.mrb[0].mxu0
        %v4673 = vadd.f32 %v4448, %v4672
        %v4674 = vpop.f32.mrb[0].mxu0
        %4675 = vmatprep.mubr.f32.mxu0 0.0
        %4676 = vmatmul.mubr.f32.gmra.mrb[0].mxu0 %v3367
        %v4677 = vpop.f32.mrb[0].mxu0
        %v4678 = vadd.f32 %v4453, %v4677
        %v4679 = vpop.f32.mrb[0].mxu0
        %4680 = vmatprep.mubr.f32.mxu0 0.0
        %4681 = vmatmul.mubr.f32.gmra.mrb[0].mxu0 %v3376
        %v4682 = vpop.f32.mrb[0].mxu0
        %v4683 = vadd.f32 %v4458, %v4682
        %v4684 = vpop.f32.mrb[0].mxu0
        %4685 = vmatprep.mubr.f32.mxu0 0.0
        %4686 = vmatmul.mubr.f32.gmra.mrb[0].mxu0 %v3385
        %v4687 = vpop.f32.mrb[0].mxu0
        %v4688 = vadd.f32 %v4463, %v4687
        %v4689 = vpop.f32.mrb[0].mxu0
        %4690 = vmatprep.mubr.f32.mxu0 0.0
        %4691 = vmatmul.mubr.f32.gmra.mrb[0].mxu0 %v3394
        %v4692 = vpop.f32.mrb[0].mxu0
        %v4693 = vadd.f32 %v4468, %v4692
        %v4694 = vpop.f32.mrb[0].mxu0
        %4695 = vmatprep.mubr.f32.mxu0 0.0
        %4696 = vmatmul.mubr.f32.gmra.mrb[0].mxu0 %v3403
        %v4697 = vpop.f32.mrb[0].mxu0
        %v4698 = vadd.f32 %v4473, %v4697
        %v4699 = vpop.f32.mrb[0].mxu0
        %4700 = vmatprep.mubr.f32.mxu0 0.0
        %4701 = vmatmul.mubr.f32.gmra.mrb[0].mxu0 %v3412
        %v4702 = vpop.f32.mrb[0].mxu0
        %v4703 = vadd.f32 %v4478, %v4702
        %v4704 = vpop.f32.mrb[0].mxu0
        %4705 = vmatprep.mubr.f32.mxu0 0.0
        %4706 = vmatmul.mubr.f32.gmra.mrb[0].mxu0 %v3421
        %v4707 = vpop.f32.mrb[0].mxu0
        %v4708 = vadd.f32 %v4483, %v4707
        %v4709 = vpop.f32.mrb[0].mxu0
        %4710 = vmatprep.mubr.f32.mxu0 0.0
        %4711 = vmatmul.mubr.f32.gmra.mrb[0].mxu0 %v3430
        %v4712 = vpop.f32.mrb[0].mxu0
        %v4713 = vadd.f32 %v4488, %v4712
        %v4714 = vpop.f32.mrb[0].mxu0
        %4715 = vmatprep.mubr.f32.mxu0 0.0
        %4716 = vmatmul.mubr.f32.gmra.mrb[0].mxu0 %v3439
        %v4717 = vpop.f32.mrb[0].mxu0
        %v4718 = vadd.f32 %v4493, %v4717
        %v4719 = vpop.f32.mrb[0].mxu0
        %4720 = vmatprep.mubr.f32.mxu0 0.0
        %4721 = vmatmul.mubr.f32.gmra.mrb[0].mxu0 %v3448
        %v4722 = vpop.f32.mrb[0].mxu0
        %v4723 = vadd.f32 %v4498, %v4722
        %v4724 = vpop.f32.mrb[0].mxu0
        %4725 = vmatprep.mubr.f32.mxu0 0.0
        %4726 = vmatmul.mubr.f32.gmra.mrb[0].mxu0 %v3457
        %v4727 = vpop.f32.mrb[0].mxu0
        %v4728 = vadd.f32 %v4503, %v4727
        %v4729 = vpop.f32.mrb[0].mxu0
        %4730 = vmatprep.mubr.f32.mxu0 0.0
        %4731 = vmatmul.mubr.f32.gmra.mrb[0].mxu0 %v3466
        %v4732 = vpop.f32.mrb[0].mxu0
        %v4733 = vadd.f32 %v4508, %v4732
        %v4734 = vpop.f32.mrb[0].mxu0
        %4735 = vdwg.mxu0
        %v4736 = vld [vmem:[%s5] sm:$0x1]
        %v4738 = vlaneseq
        %v4739 = vshrl.u32 %v4738, 7
        %v4740 = vsub.s32 0, %v4739
        %v4741 = vrot.slane %v4736, %v4740
        %v4743 = vmul.f32 %v4578, %v4741
        %v4744 = vmul.f32 %v4583, %v4741
        %v4745 = vmul.f32 %v4588, %v4741
        %v4746 = vmul.f32 %v4593, %v4741
        %v4747 = vmul.f32 %v4598, %v4741
        %v4748 = vmul.f32 %v4603, %v4741
        %v4749 = vmul.f32 %v4608, %v4741
        %v4750 = vmul.f32 %v4613, %v4741
        %v4751 = vmul.f32 %v4618, %v4741
        %v4752 = vmul.f32 %v4623, %v4741
        %v4753 = vmul.f32 %v4628, %v4741
        %v4754 = vmul.f32 %v4633, %v4741
        %v4755 = vmul.f32 %v4638, %v4741
        %v4756 = vmul.f32 %v4643, %v4741
        %v4757 = vmul.f32 %v4648, %v4741
        %v4758 = vmul.f32 %v4653, %v4741
        %v4759 = vmul.f32 %v4658, %v4741
        %v4760 = vmul.f32 %v4663, %v4741
        %v4761 = vmul.f32 %v4668, %v4741
        %v4762 = vmul.f32 %v4673, %v4741
        %v4763 = vmul.f32 %v4678, %v4741
        %v4764 = vmul.f32 %v4683, %v4741
        %v4765 = vmul.f32 %v4688, %v4741
        %v4766 = vmul.f32 %v4693, %v4741
        %v4767 = vmul.f32 %v4698, %v4741
        %v4768 = vmul.f32 %v4703, %v4741
        %v4769 = vmul.f32 %v4708, %v4741
        %v4770 = vmul.f32 %v4713, %v4741
        %v4771 = vmul.f32 %v4718, %v4741
        %v4772 = vmul.f32 %v4723, %v4741
        %v4773 = vmul.f32 %v4728, %v4741
        %v4774 = vmul.f32 %v4733, %v4741
        %v4775 = vld [vmem:[%s6] sm:$0x1]
        %v4777 = vlaneseq
        %v4778 = vshrl.u32 %v4777, 7
        %v4779 = vsub.s32 0, %v4778
        %v4780 = vrot.slane %v4775, %v4779
        %v4782 = vadd.f32 %v4743, %v4780
        %v4783 = vadd.f32 %v4744, %v4780
        %v4784 = vadd.f32 %v4745, %v4780
        %v4785 = vadd.f32 %v4746, %v4780
        %v4786 = vadd.f32 %v4747, %v4780
        %v4787 = vadd.f32 %v4748, %v4780
        %v4788 = vadd.f32 %v4749, %v4780
        %v4789 = vadd.f32 %v4750, %v4780
        %v4790 = vadd.f32 %v4751, %v4780
        %v4791 = vadd.f32 %v4752, %v4780
        %v4792 = vadd.f32 %v4753, %v4780
        %v4793 = vadd.f32 %v4754, %v4780
        %v4794 = vadd.f32 %v4755, %v4780
        %v4795 = vadd.f32 %v4756, %v4780
        %v4796 = vadd.f32 %v4757, %v4780
        %v4797 = vadd.f32 %v4758, %v4780
        %v4798 = vadd.f32 %v4759, %v4780
        %v4799 = vadd.f32 %v4760, %v4780
        %v4800 = vadd.f32 %v4761, %v4780
        %v4801 = vadd.f32 %v4762, %v4780
        %v4802 = vadd.f32 %v4763, %v4780
        %v4803 = vadd.f32 %v4764, %v4780
        %v4804 = vadd.f32 %v4765, %v4780
        %v4805 = vadd.f32 %v4766, %v4780
        %v4806 = vadd.f32 %v4767, %v4780
        %v4807 = vadd.f32 %v4768, %v4780
        %v4808 = vadd.f32 %v4769, %v4780
        %v4809 = vadd.f32 %v4770, %v4780
        %v4810 = vadd.f32 %v4771, %v4780
        %v4811 = vadd.f32 %v4772, %v4780
        %v4812 = vadd.f32 %v4773, %v4780
        %v4813 = vadd.f32 %v4774, %v4780
        %v4814 = vmax.f32 %v4782, 0.0
        %v4815 = vmax.f32 %v4783, 0.0
        %v4816 = vmax.f32 %v4784, 0.0
        %v4817 = vmax.f32 %v4785, 0.0
        %v4818 = vmax.f32 %v4786, 0.0
        %v4819 = vmax.f32 %v4787, 0.0
        %v4820 = vmax.f32 %v4788, 0.0
        %v4821 = vmax.f32 %v4789, 0.0
        %v4822 = vmax.f32 %v4790, 0.0
        %v4823 = vmax.f32 %v4791, 0.0
        %v4824 = vmax.f32 %v4792, 0.0
        %v4825 = vmax.f32 %v4793, 0.0
        %v4826 = vmax.f32 %v4794, 0.0
        %v4827 = vmax.f32 %v4795, 0.0
        %v4828 = vmax.f32 %v4796, 0.0
        %v4829 = vmax.f32 %v4797, 0.0
        %v4830 = vmax.f32 %v4798, 0.0
        %v4831 = vmax.f32 %v4799, 0.0
        %v4832 = vmax.f32 %v4800, 0.0
        %v4833 = vmax.f32 %v4801, 0.0
        %v4834 = vmax.f32 %v4802, 0.0
        %v4835 = vmax.f32 %v4803, 0.0
        %v4836 = vmax.f32 %v4804, 0.0
        %v4837 = vmax.f32 %v4805, 0.0
        %v4838 = vmax.f32 %v4806, 0.0
        %v4839 = vmax.f32 %v4807, 0.0
        %v4840 = vmax.f32 %v4808, 0.0
        %v4841 = vmax.f32 %v4809, 0.0
        %v4842 = vmax.f32 %v4810, 0.0
        %v4843 = vmax.f32 %v4811, 0.0
        %v4844 = vmax.f32 %v4812, 0.0
        %v4845 = vmax.f32 %v4813, 0.0
        %4846 = vst [vmem:[%s286] sm:$0xff] %v4814
        %4847 = vst [vmem:[%s286 + $0x8] sm:$0xff] %v4815
        %4848 = vst [vmem:[%s286 + $0x10] sm:$0xff] %v4816
        %4849 = vst [vmem:[%s286 + $0x18] sm:$0xff] %v4817
        %4850 = vst [vmem:[%s286 + $0x20] sm:$0xff] %v4818
        %4851 = vst [vmem:[%s286 + $0x28] sm:$0xff] %v4819
        %4852 = vst [vmem:[%s286 + $0x30] sm:$0xff] %v4820
        %4853 = vst [vmem:[%s286 + $0x38] sm:$0xff] %v4821
        %4854 = vst [vmem:[%s286 + $0x40] sm:$0xff] %v4822
        %4855 = vst [vmem:[%s286 + $0x48] sm:$0xff] %v4823
        %4856 = vst [vmem:[%s286 + $0x50] sm:$0xff] %v4824
        %4857 = vst [vmem:[%s286 + $0x58] sm:$0xff] %v4825
        %4858 = vst [vmem:[%s286 + $0x60] sm:$0xff] %v4826
        %4859 = vst [vmem:[%s286 + $0x68] sm:$0xff] %v4827
        %4860 = vst [vmem:[%s286 + $0x70] sm:$0xff] %v4828
        %4861 = vst [vmem:[%s286 + $0x78] sm:$0xff] %v4829
        %4862 = vst [vmem:[%s286 + $0x80] sm:$0xff] %v4830
        %4863 = vst [vmem:[%s286 + $0x88] sm:$0xff] %v4831
        %4864 = vst [vmem:[%s286 + $0x90] sm:$0xff] %v4832
        %4865 = vst [vmem:[%s286 + $0x98] sm:$0xff] %v4833
        %4866 = vst [vmem:[%s286 + $0xa0] sm:$0xff] %v4834
        %4867 = vst [vmem:[%s286 + $0xa8] sm:$0xff] %v4835
        %4868 = vst [vmem:[%s286 + $0xb0] sm:$0xff] %v4836
        %4869 = vst [vmem:[%s286 + $0xb8] sm:$0xff] %v4837
        %4870 = vst [vmem:[%s286 + $0xc0] sm:$0xff] %v4838
        %4871 = vst [vmem:[%s286 + $0xc8] sm:$0xff] %v4839
        %4872 = vst [vmem:[%s286 + $0xd0] sm:$0xff] %v4840
        %4873 = vst [vmem:[%s286 + $0xd8] sm:$0xff] %v4841
        %4874 = vst [vmem:[%s286 + $0xe0] sm:$0xff] %v4842
        %4875 = vst [vmem:[%s286 + $0xe8] sm:$0xff] %v4843
        %4876 = vst [vmem:[%s286 + $0xf0] sm:$0xff] %v4844
        %4877 = vst [vmem:[%s286 + $0xf8] sm:$0xff] %v4845
        %s4878 = sand.u32 %s182, 1
        %s4879 = scalar_lea.sflag [#allocation6], %s4878
        %s4880 = sand.u32 %s182, 1
        %s4881 = smul.addr %s4880, 256
        %s4882 = scalar_lea.vmem [#allocation7], %s4881
        // Predicated region
        $region53: #{tpu_custom_call.1} parent=47 // pred_check
          %p4883 = pneg %p192
        $region54: #{tpu_custom_call.1} parent=47 // pred_check_branch
          %4885 = sbr.rel (%p4883) target = $region56
        $region55: #{tpu_custom_call.1} parent=47 // pred_region
          %s4887 = ssub.s32 4096, 4096
          %4888 = vsyncadd %s4879, %s4887
          %s4889 = smul.addr %s22, 32
          %s4890 = smul.addr %s4889, 128
          %s4891 = scalar_lea.hbm %s7, %s4890
          %s4892 = sshll.u32 %s4882, 4
          %s4893 = int_to_ptr.vmem [resolvable:$true] %s4892
          %4898 = dma.vmem_to_hbm [thread:$0]  %s4893, 4096, %s4891, %s4879, 128, 128, 8
        $region56: #{tpu_custom_call.1} parent=47 // pred_fallthru
          _
      $region48: #{tpu_custom_call.1} parent=5 // pred_fallthru
        _
      %p4899 = scmp.le.s32.totalorder 2, %s17
      // Predicated region
      $region57: #{tpu_custom_call.1} parent=5 // pred_check
        %p4900 = pneg %p4899
      $region58: #{tpu_custom_call.1} parent=5 // pred_check_branch
        %4902 = sbr.rel (%p4900) target = $region60
      $region59: #{tpu_custom_call.1} parent=5 // pred_region
        %s4903 = ssub.s32 %s17, 2
        // Predicated region
        $region61: #{tpu_custom_call.1} parent=59 // pred_check
          %p4904 = pneg %p198
        $region62: #{tpu_custom_call.1} parent=59 // pred_check_branch
          %4906 = sbr.rel (%p4904) target = $region64
        $region63: #{tpu_custom_call.1} parent=59 // pred_region
          %s4907 = sand.u32 %s183, 1
          %s4908 = scalar_lea.sflag [#allocation6], %s4907
          %s4909 = sand.u32 %s183, 1
          %s4910 = smul.addr %s4909, 256
          %s4911 = scalar_lea.vmem [#allocation7], %s4910
          %4912 = dma.done %s4908, 4096
        $region64: #{tpu_custom_call.1} parent=59 // pred_fallthru
          _
      $region60: #{tpu_custom_call.1} parent=5 // pred_fallthru
        _
    $region6: #{tpu_custom_call.1} parent=1 // loop_footer
      %s21 = sadd.s32 1, %s17
    $region7: #{tpu_custom_call.1} parent=1 // loop_footer_branch
      %16 = sbr.rel target = $region3
    $region8: #{tpu_custom_call.1} parent=1 // loop_exit
      _
    %4913 = vsyncpa [#allocation5], 1
    %s4914 = scalar_lea.sflag [#allocation5], 1
    %4915 = vsyncpa %s4914, 1
    %4916 = vsyncpa [#allocation6], 1
    %s4917 = scalar_lea.sflag [#allocation6], 1
    %4918 = vsyncpa %s4917, 1

</llo_original>
